<compile_context>
chip_gen: v6e
topology: v6e:2x2x1
jax: 0.10.0
libtpu: 0.0.40
codegen_flags: <defaults>
</compile_context>

<pallas_src>
import functools

import jax
import jax.numpy as jnp
from jax.experimental import pallas as pl
from jax.experimental.pallas import tpu as pltpu


# ----------------------------------------------------------------------------
# Pallas kernels
# ----------------------------------------------------------------------------
def _linear_kernel(x_ref, w_ref, b_ref, o_ref):
    """Row-tiled Y = X @ W + b  (used for the hoisted GRU input projection)."""
    o_ref[...] = jnp.dot(x_ref[...], w_ref[...],
                         preferred_element_type=jnp.float32) + b_ref[...]


def _fc_logsoftmax_kernel(x_ref, w_ref, b_ref, o_ref):
    """Row-tiled Linear(H -> V) + log_softmax over the vocab axis."""
    # TODO: for production-size vocab (V ~ 30k, H ~ 512) tile the V axis with an
    # online logsumexp so the (H, V) weight never has to be fully VMEM-resident
    # (mandatory on v7x's 64 MiB VMEM).  Not needed at these test sizes.
    logits = jnp.dot(x_ref[...], w_ref[...],
                     preferred_element_type=jnp.float32) + b_ref[...]
    mx = jnp.max(logits, axis=-1, keepdims=True)
    lse = mx + jnp.log(jnp.sum(jnp.exp(logits - mx), axis=-1, keepdims=True))
    o_ref[...] = logits - lse


def _gru_recurrence_kernel(gi_ref, len_ref, h0_ref, whh_ref, bhh_ref,
                           out_ref, hfin_ref, *, hidden, seq_len):
    """Whole masked GRU recurrence in one kernel invocation.

    gi_ref  : (T, B, 3H)  precomputed input projections (x_t @ W_ih^T + b_ih)
    len_ref : (B, 1)      int32 sequence lengths
    h0_ref  : (B, H)      initial hidden state
    whh_ref : (H, 3H)     W_hh^T (gate order r|z|n, PyTorch convention)
    bhh_ref : (1, 3H)
    out_ref : (T, B, H)   per-step output (zero past seq_len)
    hfin_ref: (B, H)      hidden at last valid step
    """
    H = hidden
    whh = whh_ref[...]            # resident in vregs/VMEM across the whole loop
    bhh = bhh_ref[...]
    lens = len_ref[...]           # (B, 1) int32

    def step(t, h):
        gi = gi_ref[t]            # (B, 3H) -- input half already computed
        gh = jnp.dot(h, whh, preferred_element_type=jnp.float32) + bhh
        r = jax.nn.sigmoid(gi[:, 0:H] + gh[:, 0:H])
        z = jax.nn.sigmoid(gi[:, H:2 * H] + gh[:, H:2 * H])
        n = jnp.tanh(gi[:, 2 * H:3 * H] + r * gh[:, 2 * H:3 * H])
        h_new = (1.0 - z) * n + z * h
        m = (lens > t).astype(jnp.float32)     # (B, 1): 1.0 while t < seq_len
        out_ref[t] = h_new * m                 # padded positions are zero
        return m * h_new + (1.0 - m) * h       # freeze hidden past seq_len

    hfin_ref[...] = jax.lax.fori_loop(0, seq_len, step, h0_ref[...],
                                      unroll=bool(seq_len <= 16))


# ----------------------------------------------------------------------------
# Wrappers around pallas_call
# ----------------------------------------------------------------------------
def _round_up(a, m):
    return (a + m - 1) // m * m


def _rowwise_linear(kernel, x, w_t, b, *, block_rows=256):
    """Row-parallel Y = f(X @ W + b): X (M, K), W (K, N), b (1, N) -> (M, N)."""
    M, K = x.shape
    N = w_t.shape[1]
    tm = min(block_rows, _round_up(M, 8))
    Mp = _round_up(M, tm)
    if Mp != M:
        x = jnp.pad(x, ((0, Mp - M), (0, 0)))
    out = pl.pallas_call(
        kernel,
        out_shape=jax.ShapeDtypeStruct((Mp, N), jnp.float32),
        grid_spec=pltpu.PrefetchScalarGridSpec(
            num_scalar_prefetch=0,
            grid=(Mp // tm,),
            in_specs=[
                pl.BlockSpec((tm, K), lambda i: (i, 0)),   # activations (tiled rows)
                pl.BlockSpec((K, N), lambda i: (0, 0)),    # weight (constant block)
                pl.BlockSpec((1, N), lambda i: (0, 0)),    # bias
            ],
            out_specs=pl.BlockSpec((tm, N), lambda i: (i, 0)),
        ),
        compiler_params=pltpu.CompilerParams(
            dimension_semantics=("parallel",)),            # shards across TCs on v7x
    )(x, w_t, b)
    return out[:M]


def gru_forward(gi_tm, lengths, h0, whh_t, b_hh):
    """Masked GRU recurrence.  gi_tm: (T, B, 3H) f32, lengths: (B,) int32."""
    T, B, _ = gi_tm.shape
    H = h0.shape[-1]
    lens2d = lengths.reshape(B, 1).astype(jnp.int32)
    # Single invocation: everything stays VMEM-resident (fine for these sizes).
    # For very long sequences gi/out should be streamed with pltpu.emit_pipeline.
    out, h_fin = pl.pallas_call(
        functools.partial(_gru_recurrence_kernel, hidden=H, seq_len=T),
        out_shape=(jax.ShapeDtypeStruct((T, B, H), jnp.float32),
                   jax.ShapeDtypeStruct((B, H), jnp.float32)),
    )(gi_tm, lens2d, h0, whh_t, b_hh)
    return out, h_fin


# ----------------------------------------------------------------------------
# PlainSeq2Seq forward (embedding gather in plain JAX, hot path in Pallas)
# ----------------------------------------------------------------------------
def _gru_stage(tokens, lengths, h0, emb_table, wih_t, bih, whh_t, bhh):
    """Embedding gather + hoisted input projection + masked GRU recurrence."""
    B, T = tokens.shape
    E = emb_table.shape[1]
    H = whh_t.shape[0]
    # time-major embedding gather (glue, XLA gather)
    emb_tm = emb_table[tokens.T].astype(jnp.float32)              # (T, B, E)
    # hoisted input projection: one big MXU matmul over all T*B rows
    gi = _rowwise_linear(_linear_kernel, emb_tm.reshape(T * B, E), wih_t, bih)
    gi = gi.reshape(T, B, 3 * H)
    return gru_forward(gi, lengths, h0, whh_t, bhh)


def plain_seq2seq_forward(params, x, x_length, y, y_length):
    B = x.shape[0]
    H = params["enc_whh_t"].shape[0]
    V = params["dec_fc_w_t"].shape[1]

    # pad batch to a multiple of 8 sublanes; padded rows get length 0 (fully masked)
    Bp = _round_up(B, 8)
    pad = Bp - B
    if pad:
        x = jnp.pad(x, ((0, pad), (0, 0)))
        y = jnp.pad(y, ((0, pad), (0, 0)))
        x_length = jnp.pad(x_length, (0, pad))
        y_length = jnp.pad(y_length, (0, pad))

    # --- encoder: h0 = zeros (nn.GRU default); per-step encoder output is unused ---
    h0 = jnp.zeros((Bp, H), jnp.float32)
    _enc_out, hid = _gru_stage(x, x_length, h0, params["enc_emb"],
                               params["enc_wih_t"], params["enc_bih"],
                               params["enc_whh_t"], params["enc_bhh"])

    # --- decoder GRU initialized with the encoder's final hidden state ---
    dec_out_tm, _dec_hid = _gru_stage(y, y_length, hid, params["dec_emb"],
                                      params["dec_wih_t"], params["dec_bih"],
                                      params["dec_whh_t"], params["dec_bhh"])

    # --- FC + log_softmax over all B*T rows in one parallel kernel.  Rows are
    #     flattened batch-major so the vocab-sized result is already (B, T, V)
    #     ordered and needs no extra HBM transpose pass. ---
    Ty = y.shape[1]
    dec_out_bm = jnp.transpose(dec_out_tm, (1, 0, 2)).reshape(Bp * Ty, H)
    logprob = _rowwise_linear(_fc_logsoftmax_kernel, dec_out_bm,
                              params["dec_fc_w_t"], params["dec_fc_b"])
    output = logprob.reshape(Bp, Ty, V)[:B]                       # (B, Ty, V)
    return output, None


# ----------------------------------------------------------------------------
# Pure-JAX reference (for correctness check only)
# ----------------------------------------------------------------------------
def _ref_gru(emb_tm, mask_tm, h0, wih_t, whh_t, b_ih, b_hh):
    H = h0.shape[-1]

    def step(h, inp):
        x_t, m_t = inp
        gi = x_t @ wih_t + b_ih
        gh = h @ whh_t + b_hh
        r = jax.nn.sigmoid(gi[:, :H] + gh[:, :H])
        z = jax.nn.sigmoid(gi[:, H:2 * H] + gh[:, H:2 * H])
        n = jnp.tanh(gi[:, 2 * H:] + r * gh[:, 2 * H:])
        h_new = (1.0 - z) * n + z * h
        h_upd = m_t * h_new + (1.0 - m_t) * h
        return h_upd, h_new * m_t

    h_fin, outs = jax.lax.scan(step, h0, (emb_tm, mask_tm))
    return outs, h_fin


def _ref_forward(params, x, x_length, y, y_length):
    B, Tx = x.shape
    Ty = y.shape[1]
    H = params["enc_whh_t"].shape[0]
    emb_x = params["enc_emb"][x.T].astype(jnp.float32)
    mask_x = (jnp.arange(Tx)[:, None] < x_length[None, :]).astype(jnp.float32)[:, :, None]
    _, hid = _ref_gru(emb_x, mask_x, jnp.zeros((B, H), jnp.float32),
                      params["enc_wih_t"], params["enc_whh_t"],
                      params["enc_bih"], params["enc_bhh"])
    emb_y = params["dec_emb"][y.T].astype(jnp.float32)
    mask_y = (jnp.arange(Ty)[:, None] < y_length[None, :]).astype(jnp.float32)[:, :, None]
    out_tm, _ = _ref_gru(emb_y, mask_y, hid,
                         params["dec_wih_t"], params["dec_whh_t"],
                         params["dec_bih"], params["dec_bhh"])
    logits = out_tm @ params["dec_fc_w_t"] + params["dec_fc_b"]
    logprob = jax.nn.log_softmax(logits, axis=-1)
    return jnp.transpose(logprob, (1, 0, 2)), None


# ----------------------------------------------------------------------------
# Deterministic parameter init (PyTorch-style shapes; synthetic values)
# ----------------------------------------------------------------------------
def init_params(key, en_vocab, cn_vocab, embed_size, hidden_size):
    ks = jax.random.split(key, 12)
    bound = 1.0 / (hidden_size ** 0.5)

    def u(k, shape):
        return jax.random.uniform(k, shape, jnp.float32, -bound, bound)

    return {
        # encoder
        "enc_emb":   jax.random.normal(ks[0], (en_vocab, embed_size), jnp.float32),
        "enc_wih_t": u(ks[1], (embed_size, 3 * hidden_size)),    # W_ih^T, gates r|z|n
        "enc_whh_t": u(ks[2], (hidden_size, 3 * hidden_size)),   # W_hh^T
        "enc_bih":   u(ks[3], (1, 3 * hidden_size)),
        "enc_bhh":   u(ks[4], (1, 3 * hidden_size)),
        # decoder
        "dec_emb":   jax.random.normal(ks[5], (cn_vocab, embed_size), jnp.float32),
        "dec_wih_t": u(ks[6], (embed_size, 3 * hidden_size)),
        "dec_whh_t": u(ks[7], (hidden_size, 3 * hidden_size)),
        "dec_bih":   u(ks[8], (1, 3 * hidden_size)),
        "dec_bhh":   u(ks[9], (1, 3 * hidden_size)),
        "dec_fc_w_t": u(ks[10], (hidden_size, cn_vocab)),        # Linear weight^T
        "dec_fc_b":   u(ks[11], (1, cn_vocab)),
    }


if __name__ == "__main__":
    key = jax.random.PRNGKey(0)
    k_param, k_x, k_y = jax.random.split(key, 3)

    # small shapes consistent with the module's forward
    B, Tx, Ty = 2, 8, 7
    en_vocab, cn_vocab = 50, 60
    embed_size, hidden_size = 32, 32

    params = init_params(k_param, en_vocab, cn_vocab, embed_size, hidden_size)

    x = jax.random.randint(k_x, (B, Tx), 0, en_vocab, jnp.int32)
    y = jax.random.randint(k_y, (B, Ty), 0, cn_vocab, jnp.int32)
    # max length equals the padded width so the static-T output matches
    # pad_packed_sequence's (B, max_len, V) shape exactly.
    x_length = jnp.array([Tx, 5], jnp.int32)
    y_length = jnp.array([Ty, 4], jnp.int32)

    fwd = jax.jit(plain_seq2seq_forward)      # fully jittable (no int(max) sync)
    out, none_hid = fwd(params, x, x_length, y, y_length)
    out = jax.block_until_ready(out)

    # sanity check against a pure-JAX reference of the same semantics
    # (tolerance loosened vs f32-HIGHEST since the MXU now runs default precision)
    ref_out, _ = _ref_forward(params, x, x_length, y, y_length)
    assert out.shape == (B, Ty, cn_vocab)
    assert none_hid is None
    assert bool(jnp.allclose(out, ref_out, atol=5e-2, rtol=5e-2)), (
        float(jnp.max(jnp.abs(out - ref_out))))

    print("KERNEL_OK")
</pallas_src>

<mosaic_0001>
module attributes {stable_mosaic.version = 11 : i64} {
  func.func @_linear_kernel(%arg0: i32, %arg1: memref<56x32xf32, #tpu.memory_space<vmem>>, %arg2: memref<32x96xf32, #tpu.memory_space<vmem>>, %arg3: memref<1x96xf32, #tpu.memory_space<vmem>>, %arg4: memref<56x96xf32, #tpu.memory_space<vmem>>) attributes {dimension_semantics = [#tpu.dimension_semantics<parallel>], iteration_bounds = array<i64: 1>, scalar_prefetch = 0 : i64, scratch_operands = 0 : i64, tpu.core_type = #tpu.core_type<tc>, window_params = [{transform_indices = @transform_0, window_bounds = array<i64: 56, 32>}, {pipeline_mode = #tpu.pipeline_mode<synchronous>, transform_indices = @transform_1, window_bounds = array<i64: 32, 96>}, {pipeline_mode = #tpu.pipeline_mode<synchronous>, transform_indices = @transform_2, window_bounds = array<i64: 1, 96>}, {transform_indices = @transform_3, window_bounds = array<i64: 56, 96>}]} {
    %c0 = arith.constant 0 : index
    %c0_0 = arith.constant 0 : index
    %0 = vector.load %arg1[%c0, %c0_0] : memref<56x32xf32, #tpu.memory_space<vmem>>, vector<56x32xf32>
    %c0_1 = arith.constant 0 : index
    %c0_2 = arith.constant 0 : index
    %1 = vector.load %arg2[%c0_1, %c0_2] : memref<32x96xf32, #tpu.memory_space<vmem>>, vector<32x96xf32>
    %cst = arith.constant dense<0.000000e+00> : vector<56x96xf32>
    %2 = tpu.matmul %0, %1, %cst {dimension_numbers = #tpu.dot_dimension_numbers<[1], [0], [0], [1], [0, 0, 1, 1], [], []>} : vector<56x32xf32>, vector<32x96xf32>, vector<56x96xf32> -> vector<56x96xf32>
    %c0_3 = arith.constant 0 : index
    %c0_4 = arith.constant 0 : index
    %3 = vector.load %arg3[%c0_3, %c0_4] : memref<1x96xf32, #tpu.memory_space<vmem>>, vector<1x96xf32>
    %4 = vector.broadcast %3 : vector<1x96xf32> to vector<56x96xf32>
    %5 = arith.addf %2, %4 : vector<56x96xf32>
    %c0_5 = arith.constant 0 : index
    %c0_6 = arith.constant 0 : index
    %6 = vector.load %arg4[%c0_5, %c0_6] : memref<56x96xf32, #tpu.memory_space<vmem>>, vector<56x96xf32>
    tpu.vector_store %arg4[%c0_5, %c0_6], %5 {strides = array<i32>} : memref<56x96xf32, #tpu.memory_space<vmem>>, vector<56x96xf32>,
    return
  }
  func.func @transform_0(%arg0: i32) -> (i32, i32) {
    %c0_i32 = arith.constant 0 : i32
    %c0_i32_0 = arith.constant 0 : i32
    return %arg0, %c0_i32 : i32, i32
  }
  func.func @transform_1(%arg0: i32) -> (i32, i32) {
    %c0_i32 = arith.constant 0 : i32
    %c0_i32_0 = arith.constant 0 : i32
    %c0_i32_1 = arith.constant 0 : i32
    return %c0_i32, %c0_i32_0 : i32, i32
  }
  func.func @transform_2(%arg0: i32) -> (i32, i32) {
    %c0_i32 = arith.constant 0 : i32
    %c0_i32_0 = arith.constant 0 : i32
    %c0_i32_1 = arith.constant 0 : i32
    return %c0_i32, %c0_i32_0 : i32, i32
  }
  func.func @transform_3(%arg0: i32) -> (i32, i32) {
    %c0_i32 = arith.constant 0 : i32
    %c0_i32_0 = arith.constant 0 : i32
    return %arg0, %c0_i32 : i32, i32
  }
}

module attributes {stable_mosaic.version = 11 : i64} {
  func.func @_linear_kernel(%arg0: i32, %arg1: memref<64x32xf32, #tpu.memory_space<vmem>>, %arg2: memref<32x96xf32, #tpu.memory_space<vmem>>, %arg3: memref<1x96xf32, #tpu.memory_space<vmem>>, %arg4: memref<64x96xf32, #tpu.memory_space<vmem>>) attributes {dimension_semantics = [#tpu.dimension_semantics<parallel>], iteration_bounds = array<i64: 1>, scalar_prefetch = 0 : i64, scratch_operands = 0 : i64, tpu.core_type = #tpu.core_type<tc>, window_params = [{transform_indices = @transform_0, window_bounds = array<i64: 64, 32>}, {pipeline_mode = #tpu.pipeline_mode<synchronous>, transform_indices = @transform_1, window_bounds = array<i64: 32, 96>}, {pipeline_mode = #tpu.pipeline_mode<synchronous>, transform_indices = @transform_2, window_bounds = array<i64: 1, 96>}, {transform_indices = @transform_3, window_bounds = array<i64: 64, 96>}]} {
    %c0 = arith.constant 0 : index
    %c0_0 = arith.constant 0 : index
    %0 = vector.load %arg1[%c0, %c0_0] : memref<64x32xf32, #tpu.memory_space<vmem>>, vector<64x32xf32>
    %c0_1 = arith.constant 0 : index
    %c0_2 = arith.constant 0 : index
    %1 = vector.load %arg2[%c0_1, %c0_2] : memref<32x96xf32, #tpu.memory_space<vmem>>, vector<32x96xf32>
    %cst = arith.constant dense<0.000000e+00> : vector<64x96xf32>
    %2 = tpu.matmul %0, %1, %cst {dimension_numbers = #tpu.dot_dimension_numbers<[1], [0], [0], [1], [0, 0, 1, 1], [], []>} : vector<64x32xf32>, vector<32x96xf32>, vector<64x96xf32> -> vector<64x96xf32>
    %c0_3 = arith.constant 0 : index
    %c0_4 = arith.constant 0 : index
    %3 = vector.load %arg3[%c0_3, %c0_4] : memref<1x96xf32, #tpu.memory_space<vmem>>, vector<1x96xf32>
    %4 = vector.broadcast %3 : vector<1x96xf32> to vector<64x96xf32>
    %5 = arith.addf %2, %4 : vector<64x96xf32>
    %c0_5 = arith.constant 0 : index
    %c0_6 = arith.constant 0 : index
    %6 = vector.load %arg4[%c0_5, %c0_6] : memref<64x96xf32, #tpu.memory_space<vmem>>, vector<64x96xf32>
    tpu.vector_store %arg4[%c0_5, %c0_6], %5 {strides = array<i32>} : memref<64x96xf32, #tpu.memory_space<vmem>>, vector<64x96xf32>,
    return
  }
  func.func @transform_0(%arg0: i32) -> (i32, i32) {
    %c0_i32 = arith.constant 0 : i32
    %c0_i32_0 = arith.constant 0 : i32
    return %arg0, %c0_i32 : i32, i32
  }
  func.func @transform_1(%arg0: i32) -> (i32, i32) {
    %c0_i32 = arith.constant 0 : i32
    %c0_i32_0 = arith.constant 0 : i32
    %c0_i32_1 = arith.constant 0 : i32
    return %c0_i32, %c0_i32_0 : i32, i32
  }
  func.func @transform_2(%arg0: i32) -> (i32, i32) {
    %c0_i32 = arith.constant 0 : i32
    %c0_i32_0 = arith.constant 0 : i32
    %c0_i32_1 = arith.constant 0 : i32
    return %c0_i32, %c0_i32_0 : i32, i32
  }
  func.func @transform_3(%arg0: i32) -> (i32, i32) {
    %c0_i32 = arith.constant 0 : i32
    %c0_i32_0 = arith.constant 0 : i32
    return %arg0, %c0_i32 : i32, i32
  }
}

module attributes {stable_mosaic.version = 11 : i64} {
  func.func @_gru_recurrence_kernel(%arg0: memref<8x8x96xf32, #tpu.memory_space<vmem>>, %arg1: memref<8x1xi32, #tpu.memory_space<vmem>>, %arg2: memref<8x32xf32, #tpu.memory_space<vmem>>, %arg3: memref<32x96xf32, #tpu.memory_space<vmem>>, %arg4: memref<1x96xf32, #tpu.memory_space<vmem>>, %arg5: memref<8x8x32xf32, #tpu.memory_space<vmem>>, %arg6: memref<8x32xf32, #tpu.memory_space<vmem>>) attributes {dimension_semantics = [], scalar_prefetch = 0 : i64, scratch_operands = 0 : i64, tpu.core_type = #tpu.core_type<tc>} {
    %c0 = arith.constant 0 : index
    %c0_0 = arith.constant 0 : index
    %0 = vector.load %arg3[%c0, %c0_0] : memref<32x96xf32, #tpu.memory_space<vmem>>, vector<32x96xf32>
    %c0_1 = arith.constant 0 : index
    %c0_2 = arith.constant 0 : index
    %1 = vector.load %arg4[%c0_1, %c0_2] : memref<1x96xf32, #tpu.memory_space<vmem>>, vector<1x96xf32>
    %c0_3 = arith.constant 0 : index
    %c0_4 = arith.constant 0 : index
    %2 = vector.load %arg1[%c0_3, %c0_4] : memref<8x1xi32, #tpu.memory_space<vmem>>, vector<8x1xi32>
    %c0_5 = arith.constant 0 : index
    %c0_6 = arith.constant 0 : index
    %3 = vector.load %arg2[%c0_5, %c0_6] : memref<8x32xf32, #tpu.memory_space<vmem>>, vector<8x32xf32>
    %c0_i32 = arith.constant 0 : i32
    %4 = arith.index_cast %c0_i32 : i32 to index
    %c0_7 = arith.constant 0 : index
    %c0_8 = arith.constant 0 : index
    %5 = vector.load %arg0[%4, %c0_7, %c0_8] : memref<8x8x96xf32, #tpu.memory_space<vmem>>, vector<1x8x96xf32>
    %6 = vector.shape_cast %5 : vector<1x8x96xf32> to vector<8x96xf32>
    %cst = arith.constant dense<0.000000e+00> : vector<8x96xf32>
    %7 = tpu.matmul %3, %0, %cst {dimension_numbers = #tpu.dot_dimension_numbers<[1], [0], [0], [1], [0, 0, 1, 1], [], []>} : vector<8x32xf32>, vector<32x96xf32>, vector<8x96xf32> -> vector<8x96xf32>
    %8 = vector.broadcast %1 : vector<1x96xf32> to vector<8x96xf32>
    %9 = arith.addf %7, %8 : vector<8x96xf32>
    %10 = vector.extract_strided_slice %6 {offsets = [0, 0], sizes = [8, 32], strides = [1, 1]} : vector<8x96xf32> to vector<8x32xf32>
    %11 = vector.extract_strided_slice %9 {offsets = [0, 0], sizes = [8, 32], strides = [1, 1]} : vector<8x96xf32> to vector<8x32xf32>
    %12 = arith.addf %10, %11 : vector<8x32xf32>
    %13 = arith.negf %12 : vector<8x32xf32>
    %14 = math.exp %13 : vector<8x32xf32>
    %cst_9 = arith.constant 1.000000e+00 : f32
    %15 = vector.broadcast %cst_9 : f32 to vector<8x32xf32>
    %16 = arith.addf %15, %14 : vector<8x32xf32>
    %17 = arith.divf %15, %16 : vector<8x32xf32>
    %18 = vector.extract_strided_slice %6 {offsets = [0, 32], sizes = [8, 32], strides = [1, 1]} : vector<8x96xf32> to vector<8x32xf32>
    %19 = vector.extract_strided_slice %9 {offsets = [0, 32], sizes = [8, 32], strides = [1, 1]} : vector<8x96xf32> to vector<8x32xf32>
    %20 = arith.addf %18, %19 : vector<8x32xf32>
    %21 = arith.negf %20 : vector<8x32xf32>
    %22 = math.exp %21 : vector<8x32xf32>
    %cst_10 = arith.constant 1.000000e+00 : f32
    %23 = vector.broadcast %cst_10 : f32 to vector<8x32xf32>
    %24 = arith.addf %23, %22 : vector<8x32xf32>
    %25 = arith.divf %23, %24 : vector<8x32xf32>
    %26 = vector.extract_strided_slice %6 {offsets = [0, 64], sizes = [8, 32], strides = [1, 1]} : vector<8x96xf32> to vector<8x32xf32>
    %27 = vector.extract_strided_slice %9 {offsets = [0, 64], sizes = [8, 32], strides = [1, 1]} : vector<8x96xf32> to vector<8x32xf32>
    %28 = arith.mulf %17, %27 : vector<8x32xf32>
    %29 = arith.addf %26, %28 : vector<8x32xf32>
    %30 = math.tanh %29 : vector<8x32xf32>
    %cst_11 = arith.constant 1.000000e+00 : f32
    %31 = vector.broadcast %cst_11 : f32 to vector<8x32xf32>
    %32 = arith.subf %31, %25 : vector<8x32xf32>
    %33 = arith.mulf %32, %30 : vector<8x32xf32>
    %34 = arith.mulf %25, %3 : vector<8x32xf32>
    %35 = arith.addf %33, %34 : vector<8x32xf32>
    %36 = vector.broadcast %c0_i32 : i32 to vector<8x1xi32>
    %37 = arith.cmpi sgt, %2, %36 : vector<8x1xi32>
    %38 = arith.extui %37 : vector<8x1xi1> to vector<8x1xi32>
    %39 = arith.sitofp %38 : vector<8x1xi32> to vector<8x1xf32>
    %40 = vector.broadcast %39 : vector<8x1xf32> to vector<8x32xf32>
    %41 = arith.mulf %35, %40 : vector<8x32xf32>
    %42 = arith.index_cast %c0_i32 : i32 to index
    %c0_12 = arith.constant 0 : index
    %c0_13 = arith.constant 0 : index
    %43 = vector.load %arg5[%42, %c0_12, %c0_13] : memref<8x8x32xf32, #tpu.memory_space<vmem>>, vector<1x8x32xf32>
    %44 = vector.shape_cast %43 : vector<1x8x32xf32> to vector<8x32xf32>
    %45 = vector.shape_cast %41 : vector<8x32xf32> to vector<1x8x32xf32>
    tpu.vector_store %arg5[%42, %c0_12, %c0_13], %45 {strides = array<i32>} : memref<8x8x32xf32, #tpu.memory_space<vmem>>, vector<1x8x32xf32>,
    %46 = vector.broadcast %39 : vector<8x1xf32> to vector<8x32xf32>
    %47 = arith.mulf %46, %35 : vector<8x32xf32>
    %cst_14 = arith.constant 1.000000e+00 : f32
    %48 = vector.broadcast %cst_14 : f32 to vector<8x1xf32>
    %49 = arith.subf %48, %39 : vector<8x1xf32>
    %50 = vector.broadcast %49 : vector<8x1xf32> to vector<8x32xf32>
    %51 = arith.mulf %50, %3 : vector<8x32xf32>
    %52 = arith.addf %47, %51 : vector<8x32xf32>
    %c1_i32 = arith.constant 1 : i32
    %53 = arith.index_cast %c1_i32 : i32 to index
    %c0_15 = arith.constant 0 : index
    %c0_16 = arith.constant 0 : index
    %54 = vector.load %arg0[%53, %c0_15, %c0_16] : memref<8x8x96xf32, #tpu.memory_space<vmem>>, vector<1x8x96xf32>
    %55 = vector.shape_cast %54 : vector<1x8x96xf32> to vector<8x96xf32>
    %cst_17 = arith.constant dense<0.000000e+00> : vector<8x96xf32>
    %56 = tpu.matmul %52, %0, %cst_17 {dimension_numbers = #tpu.dot_dimension_numbers<[1], [0], [0], [1], [0, 0, 1, 1], [], []>} : vector<8x32xf32>, vector<32x96xf32>, vector<8x96xf32> -> vector<8x96xf32>
    %57 = vector.broadcast %1 : vector<1x96xf32> to vector<8x96xf32>
    %58 = arith.addf %56, %57 : vector<8x96xf32>
    %59 = vector.extract_strided_slice %55 {offsets = [0, 0], sizes = [8, 32], strides = [1, 1]} : vector<8x96xf32> to vector<8x32xf32>
    %60 = vector.extract_strided_slice %58 {offsets = [0, 0], sizes = [8, 32], strides = [1, 1]} : vector<8x96xf32> to vector<8x32xf32>
    %61 = arith.addf %59, %60 : vector<8x32xf32>
    %62 = arith.negf %61 : vector<8x32xf32>
    %63 = math.exp %62 : vector<8x32xf32>
    %cst_18 = arith.constant 1.000000e+00 : f32
    %64 = vector.broadcast %cst_18 : f32 to vector<8x32xf32>
    %65 = arith.addf %64, %63 : vector<8x32xf32>
    %66 = arith.divf %64, %65 : vector<8x32xf32>
    %67 = vector.extract_strided_slice %55 {offsets = [0, 32], sizes = [8, 32], strides = [1, 1]} : vector<8x96xf32> to vector<8x32xf32>
    %68 = vector.extract_strided_slice %58 {offsets = [0, 32], sizes = [8, 32], strides = [1, 1]} : vector<8x96xf32> to vector<8x32xf32>
    %69 = arith.addf %67, %68 : vector<8x32xf32>
    %70 = arith.negf %69 : vector<8x32xf32>
    %71 = math.exp %70 : vector<8x32xf32>
    %cst_19 = arith.constant 1.000000e+00 : f32
    %72 = vector.broadcast %cst_19 : f32 to vector<8x32xf32>
    %73 = arith.addf %72, %71 : vector<8x32xf32>
    %74 = arith.divf %72, %73 : vector<8x32xf32>
    %75 = vector.extract_strided_slice %55 {offsets = [0, 64], sizes = [8, 32], strides = [1, 1]} : vector<8x96xf32> to vector<8x32xf32>
    %76 = vector.extract_strided_slice %58 {offsets = [0, 64], sizes = [8, 32], strides = [1, 1]} : vector<8x96xf32> to vector<8x32xf32>
    %77 = arith.mulf %66, %76 : vector<8x32xf32>
    %78 = arith.addf %75, %77 : vector<8x32xf32>
    %79 = math.tanh %78 : vector<8x32xf32>
    %cst_20 = arith.constant 1.000000e+00 : f32
    %80 = vector.broadcast %cst_20 : f32 to vector<8x32xf32>
    %81 = arith.subf %80, %74 : vector<8x32xf32>
    %82 = arith.mulf %81, %79 : vector<8x32xf32>
    %83 = arith.mulf %74, %52 : vector<8x32xf32>
    %84 = arith.addf %82, %83 : vector<8x32xf32>
    %85 = vector.broadcast %c1_i32 : i32 to vector<8x1xi32>
    %86 = arith.cmpi sgt, %2, %85 : vector<8x1xi32>
    %87 = arith.extui %86 : vector<8x1xi1> to vector<8x1xi32>
    %88 = arith.sitofp %87 : vector<8x1xi32> to vector<8x1xf32>
    %89 = vector.broadcast %88 : vector<8x1xf32> to vector<8x32xf32>
    %90 = arith.mulf %84, %89 : vector<8x32xf32>
    %91 = arith.index_cast %c1_i32 : i32 to index
    %c0_21 = arith.constant 0 : index
    %c0_22 = arith.constant 0 : index
    %92 = vector.load %arg5[%91, %c0_21, %c0_22] : memref<8x8x32xf32, #tpu.memory_space<vmem>>, vector<1x8x32xf32>
    %93 = vector.shape_cast %92 : vector<1x8x32xf32> to vector<8x32xf32>
    %94 = vector.shape_cast %90 : vector<8x32xf32> to vector<1x8x32xf32>
    tpu.vector_store %arg5[%91, %c0_21, %c0_22], %94 {strides = array<i32>} : memref<8x8x32xf32, #tpu.memory_space<vmem>>, vector<1x8x32xf32>,
    %95 = vector.broadcast %88 : vector<8x1xf32> to vector<8x32xf32>
    %96 = arith.mulf %95, %84 : vector<8x32xf32>
    %cst_23 = arith.constant 1.000000e+00 : f32
    %97 = vector.broadcast %cst_23 : f32 to vector<8x1xf32>
    %98 = arith.subf %97, %88 : vector<8x1xf32>
    %99 = vector.broadcast %98 : vector<8x1xf32> to vector<8x32xf32>
    %100 = arith.mulf %99, %52 : vector<8x32xf32>
    %101 = arith.addf %96, %100 : vector<8x32xf32>
    %c2_i32 = arith.constant 2 : i32
    %102 = arith.index_cast %c2_i32 : i32 to index
    %c0_24 = arith.constant 0 : index
    %c0_25 = arith.constant 0 : index
    %103 = vector.load %arg0[%102, %c0_24, %c0_25] : memref<8x8x96xf32, #tpu.memory_space<vmem>>, vector<1x8x96xf32>
    %104 = vector.shape_cast %103 : vector<1x8x96xf32> to vector<8x96xf32>
    %cst_26 = arith.constant dense<0.000000e+00> : vector<8x96xf32>
    %105 = tpu.matmul %101, %0, %cst_26 {dimension_numbers = #tpu.dot_dimension_numbers<[1], [0], [0], [1], [0, 0, 1, 1], [], []>} : vector<8x32xf32>, vector<32x96xf32>, vector<8x96xf32> -> vector<8x96xf32>
    %106 = vector.broadcast %1 : vector<1x96xf32> to vector<8x96xf32>
    %107 = arith.addf %105, %106 : vector<8x96xf32>
    %108 = vector.extract_strided_slice %104 {offsets = [0, 0], sizes = [8, 32], strides = [1, 1]} : vector<8x96xf32> to vector<8x32xf32>
    %109 = vector.extract_strided_slice %107 {offsets = [0, 0], sizes = [8, 32], strides = [1, 1]} : vector<8x96xf32> to vector<8x32xf32>
    %110 = arith.addf %108, %109 : vector<8x32xf32>
    %111 = arith.negf %110 : vector<8x32xf32>
    %112 = math.exp %111 : vector<8x32xf32>
    %cst_27 = arith.constant 1.000000e+00 : f32
    %113 = vector.broadcast %cst_27 : f32 to vector<8x32xf32>
    %114 = arith.addf %113, %112 : vector<8x32xf32>
    %115 = arith.divf %113, %114 : vector<8x32xf32>
    %116 = vector.extract_strided_slice %104 {offsets = [0, 32], sizes = [8, 32], strides = [1, 1]} : vector<8x96xf32> to vector<8x32xf32>
    %117 = vector.extract_strided_slice %107 {offsets = [0, 32], sizes = [8, 32], strides = [1, 1]} : vector<8x96xf32> to vector<8x32xf32>
    %118 = arith.addf %116, %117 : vector<8x32xf32>
    %119 = arith.negf %118 : vector<8x32xf32>
    %120 = math.exp %119 : vector<8x32xf32>
    %cst_28 = arith.constant 1.000000e+00 : f32
    %121 = vector.broadcast %cst_28 : f32 to vector<8x32xf32>
    %122 = arith.addf %121, %120 : vector<8x32xf32>
    %123 = arith.divf %121, %122 : vector<8x32xf32>
    %124 = vector.extract_strided_slice %104 {offsets = [0, 64], sizes = [8, 32], strides = [1, 1]} : vector<8x96xf32> to vector<8x32xf32>
    %125 = vector.extract_strided_slice %107 {offsets = [0, 64], sizes = [8, 32], strides = [1, 1]} : vector<8x96xf32> to vector<8x32xf32>
    %126 = arith.mulf %115, %125 : vector<8x32xf32>
    %127 = arith.addf %124, %126 : vector<8x32xf32>
    %128 = math.tanh %127 : vector<8x32xf32>
    %cst_29 = arith.constant 1.000000e+00 : f32
    %129 = vector.broadcast %cst_29 : f32 to vector<8x32xf32>
    %130 = arith.subf %129, %123 : vector<8x32xf32>
    %131 = arith.mulf %130, %128 : vector<8x32xf32>
    %132 = arith.mulf %123, %101 : vector<8x32xf32>
    %133 = arith.addf %131, %132 : vector<8x32xf32>
    %134 = vector.broadcast %c2_i32 : i32 to vector<8x1xi32>
    %135 = arith.cmpi sgt, %2, %134 : vector<8x1xi32>
    %136 = arith.extui %135 : vector<8x1xi1> to vector<8x1xi32>
    %137 = arith.sitofp %136 : vector<8x1xi32> to vector<8x1xf32>
    %138 = vector.broadcast %137 : vector<8x1xf32> to vector<8x32xf32>
    %139 = arith.mulf %133, %138 : vector<8x32xf32>
    %140 = arith.index_cast %c2_i32 : i32 to index
    %c0_30 = arith.constant 0 : index
    %c0_31 = arith.constant 0 : index
    %141 = vector.load %arg5[%140, %c0_30, %c0_31] : memref<8x8x32xf32, #tpu.memory_space<vmem>>, vector<1x8x32xf32>
    %142 = vector.shape_cast %141 : vector<1x8x32xf32> to vector<8x32xf32>
    %143 = vector.shape_cast %139 : vector<8x32xf32> to vector<1x8x32xf32>
    tpu.vector_store %arg5[%140, %c0_30, %c0_31], %143 {strides = array<i32>} : memref<8x8x32xf32, #tpu.memory_space<vmem>>, vector<1x8x32xf32>,
    %144 = vector.broadcast %137 : vector<8x1xf32> to vector<8x32xf32>
    %145 = arith.mulf %144, %133 : vector<8x32xf32>
    %cst_32 = arith.constant 1.000000e+00 : f32
    %146 = vector.broadcast %cst_32 : f32 to vector<8x1xf32>
    %147 = arith.subf %146, %137 : vector<8x1xf32>
    %148 = vector.broadcast %147 : vector<8x1xf32> to vector<8x32xf32>
    %149 = arith.mulf %148, %101 : vector<8x32xf32>
    %150 = arith.addf %145, %149 : vector<8x32xf32>
    %c3_i32 = arith.constant 3 : i32
    %151 = arith.index_cast %c3_i32 : i32 to index
    %c0_33 = arith.constant 0 : index
    %c0_34 = arith.constant 0 : index
    %152 = vector.load %arg0[%151, %c0_33, %c0_34] : memref<8x8x96xf32, #tpu.memory_space<vmem>>, vector<1x8x96xf32>
    %153 = vector.shape_cast %152 : vector<1x8x96xf32> to vector<8x96xf32>
    %cst_35 = arith.constant dense<0.000000e+00> : vector<8x96xf32>
    %154 = tpu.matmul %150, %0, %cst_35 {dimension_numbers = #tpu.dot_dimension_numbers<[1], [0], [0], [1], [0, 0, 1, 1], [], []>} : vector<8x32xf32>, vector<32x96xf32>, vector<8x96xf32> -> vector<8x96xf32>
    %155 = vector.broadcast %1 : vector<1x96xf32> to vector<8x96xf32>
    %156 = arith.addf %154, %155 : vector<8x96xf32>
    %157 = vector.extract_strided_slice %153 {offsets = [0, 0], sizes = [8, 32], strides = [1, 1]} : vector<8x96xf32> to vector<8x32xf32>
    %158 = vector.extract_strided_slice %156 {offsets = [0, 0], sizes = [8, 32], strides = [1, 1]} : vector<8x96xf32> to vector<8x32xf32>
    %159 = arith.addf %157, %158 : vector<8x32xf32>
    %160 = arith.negf %159 : vector<8x32xf32>
    %161 = math.exp %160 : vector<8x32xf32>
    %cst_36 = arith.constant 1.000000e+00 : f32
    %162 = vector.broadcast %cst_36 : f32 to vector<8x32xf32>
    %163 = arith.addf %162, %161 : vector<8x32xf32>
    %164 = arith.divf %162, %163 : vector<8x32xf32>
    %165 = vector.extract_strided_slice %153 {offsets = [0, 32], sizes = [8, 32], strides = [1, 1]} : vector<8x96xf32> to vector<8x32xf32>
    %166 = vector.extract_strided_slice %156 {offsets = [0, 32], sizes = [8, 32], strides = [1, 1]} : vector<8x96xf32> to vector<8x32xf32>
    %167 = arith.addf %165, %166 : vector<8x32xf32>
    %168 = arith.negf %167 : vector<8x32xf32>
    %169 = math.exp %168 : vector<8x32xf32>
    %cst_37 = arith.constant 1.000000e+00 : f32
    %170 = vector.broadcast %cst_37 : f32 to vector<8x32xf32>
    %171 = arith.addf %170, %169 : vector<8x32xf32>
    %172 = arith.divf %170, %171 : vector<8x32xf32>
    %173 = vector.extract_strided_slice %153 {offsets = [0, 64], sizes = [8, 32], strides = [1, 1]} : vector<8x96xf32> to vector<8x32xf32>
    %174 = vector.extract_strided_slice %156 {offsets = [0, 64], sizes = [8, 32], strides = [1, 1]} : vector<8x96xf32> to vector<8x32xf32>
    %175 = arith.mulf %164, %174 : vector<8x32xf32>
    %176 = arith.addf %173, %175 : vector<8x32xf32>
    %177 = math.tanh %176 : vector<8x32xf32>
    %cst_38 = arith.constant 1.000000e+00 : f32
    %178 = vector.broadcast %cst_38 : f32 to vector<8x32xf32>
    %179 = arith.subf %178, %172 : vector<8x32xf32>
    %180 = arith.mulf %179, %177 : vector<8x32xf32>
    %181 = arith.mulf %172, %150 : vector<8x32xf32>
    %182 = arith.addf %180, %181 : vector<8x32xf32>
    %183 = vector.broadcast %c3_i32 : i32 to vector<8x1xi32>
    %184 = arith.cmpi sgt, %2, %183 : vector<8x1xi32>
    %185 = arith.extui %184 : vector<8x1xi1> to vector<8x1xi32>
    %186 = arith.sitofp %185 : vector<8x1xi32> to vector<8x1xf32>
    %187 = vector.broadcast %186 : vector<8x1xf32> to vector<8x32xf32>
    %188 = arith.mulf %182, %187 : vector<8x32xf32>
    %189 = arith.index_cast %c3_i32 : i32 to index
    %c0_39 = arith.constant 0 : index
    %c0_40 = arith.constant 0 : index
    %190 = vector.load %arg5[%189, %c0_39, %c0_40] : memref<8x8x32xf32, #tpu.memory_space<vmem>>, vector<1x8x32xf32>
    %191 = vector.shape_cast %190 : vector<1x8x32xf32> to vector<8x32xf32>
    %192 = vector.shape_cast %188 : vector<8x32xf32> to vector<1x8x32xf32>
    tpu.vector_store %arg5[%189, %c0_39, %c0_40], %192 {strides = array<i32>} : memref<8x8x32xf32, #tpu.memory_space<vmem>>, vector<1x8x32xf32>,
    %193 = vector.broadcast %186 : vector<8x1xf32> to vector<8x32xf32>
    %194 = arith.mulf %193, %182 : vector<8x32xf32>
    %cst_41 = arith.constant 1.000000e+00 : f32
    %195 = vector.broadcast %cst_41 : f32 to vector<8x1xf32>
    %196 = arith.subf %195, %186 : vector<8x1xf32>
    %197 = vector.broadcast %196 : vector<8x1xf32> to vector<8x32xf32>
    %198 = arith.mulf %197, %150 : vector<8x32xf32>
    %199 = arith.addf %194, %198 : vector<8x32xf32>
    %c4_i32 = arith.constant 4 : i32
    %200 = arith.index_cast %c4_i32 : i32 to index
    %c0_42 = arith.constant 0 : index
    %c0_43 = arith.constant 0 : index
    %201 = vector.load %arg0[%200, %c0_42, %c0_43] : memref<8x8x96xf32, #tpu.memory_space<vmem>>, vector<1x8x96xf32>
    %202 = vector.shape_cast %201 : vector<1x8x96xf32> to vector<8x96xf32>
    %cst_44 = arith.constant dense<0.000000e+00> : vector<8x96xf32>
    %203 = tpu.matmul %199, %0, %cst_44 {dimension_numbers = #tpu.dot_dimension_numbers<[1], [0], [0], [1], [0, 0, 1, 1], [], []>} : vector<8x32xf32>, vector<32x96xf32>, vector<8x96xf32> -> vector<8x96xf32>
    %204 = vector.broadcast %1 : vector<1x96xf32> to vector<8x96xf32>
    %205 = arith.addf %203, %204 : vector<8x96xf32>
    %206 = vector.extract_strided_slice %202 {offsets = [0, 0], sizes = [8, 32], strides = [1, 1]} : vector<8x96xf32> to vector<8x32xf32>
    %207 = vector.extract_strided_slice %205 {offsets = [0, 0], sizes = [8, 32], strides = [1, 1]} : vector<8x96xf32> to vector<8x32xf32>
    %208 = arith.addf %206, %207 : vector<8x32xf32>
    %209 = arith.negf %208 : vector<8x32xf32>
    %210 = math.exp %209 : vector<8x32xf32>
    %cst_45 = arith.constant 1.000000e+00 : f32
    %211 = vector.broadcast %cst_45 : f32 to vector<8x32xf32>
    %212 = arith.addf %211, %210 : vector<8x32xf32>
    %213 = arith.divf %211, %212 : vector<8x32xf32>
    %214 = vector.extract_strided_slice %202 {offsets = [0, 32], sizes = [8, 32], strides = [1, 1]} : vector<8x96xf32> to vector<8x32xf32>
    %215 = vector.extract_strided_slice %205 {offsets = [0, 32], sizes = [8, 32], strides = [1, 1]} : vector<8x96xf32> to vector<8x32xf32>
    %216 = arith.addf %214, %215 : vector<8x32xf32>
    %217 = arith.negf %216 : vector<8x32xf32>
    %218 = math.exp %217 : vector<8x32xf32>
    %cst_46 = arith.constant 1.000000e+00 : f32
    %219 = vector.broadcast %cst_46 : f32 to vector<8x32xf32>
    %220 = arith.addf %219, %218 : vector<8x32xf32>
    %221 = arith.divf %219, %220 : vector<8x32xf32>
    %222 = vector.extract_strided_slice %202 {offsets = [0, 64], sizes = [8, 32], strides = [1, 1]} : vector<8x96xf32> to vector<8x32xf32>
    %223 = vector.extract_strided_slice %205 {offsets = [0, 64], sizes = [8, 32], strides = [1, 1]} : vector<8x96xf32> to vector<8x32xf32>
    %224 = arith.mulf %213, %223 : vector<8x32xf32>
    %225 = arith.addf %222, %224 : vector<8x32xf32>
    %226 = math.tanh %225 : vector<8x32xf32>
    %cst_47 = arith.constant 1.000000e+00 : f32
    %227 = vector.broadcast %cst_47 : f32 to vector<8x32xf32>
    %228 = arith.subf %227, %221 : vector<8x32xf32>
    %229 = arith.mulf %228, %226 : vector<8x32xf32>
    %230 = arith.mulf %221, %199 : vector<8x32xf32>
    %231 = arith.addf %229, %230 : vector<8x32xf32>
    %232 = vector.broadcast %c4_i32 : i32 to vector<8x1xi32>
    %233 = arith.cmpi sgt, %2, %232 : vector<8x1xi32>
    %234 = arith.extui %233 : vector<8x1xi1> to vector<8x1xi32>
    %235 = arith.sitofp %234 : vector<8x1xi32> to vector<8x1xf32>
    %236 = vector.broadcast %235 : vector<8x1xf32> to vector<8x32xf32>
    %237 = arith.mulf %231, %236 : vector<8x32xf32>
    %238 = arith.index_cast %c4_i32 : i32 to index
    %c0_48 = arith.constant 0 : index
    %c0_49 = arith.constant 0 : index
    %239 = vector.load %arg5[%238, %c0_48, %c0_49] : memref<8x8x32xf32, #tpu.memory_space<vmem>>, vector<1x8x32xf32>
    %240 = vector.shape_cast %239 : vector<1x8x32xf32> to vector<8x32xf32>
    %241 = vector.shape_cast %237 : vector<8x32xf32> to vector<1x8x32xf32>
    tpu.vector_store %arg5[%238, %c0_48, %c0_49], %241 {strides = array<i32>} : memref<8x8x32xf32, #tpu.memory_space<vmem>>, vector<1x8x32xf32>,
    %242 = vector.broadcast %235 : vector<8x1xf32> to vector<8x32xf32>
    %243 = arith.mulf %242, %231 : vector<8x32xf32>
    %cst_50 = arith.constant 1.000000e+00 : f32
    %244 = vector.broadcast %cst_50 : f32 to vector<8x1xf32>
    %245 = arith.subf %244, %235 : vector<8x1xf32>
    %246 = vector.broadcast %245 : vector<8x1xf32> to vector<8x32xf32>
    %247 = arith.mulf %246, %199 : vector<8x32xf32>
    %248 = arith.addf %243, %247 : vector<8x32xf32>
    %c5_i32 = arith.constant 5 : i32
    %249 = arith.index_cast %c5_i32 : i32 to index
    %c0_51 = arith.constant 0 : index
    %c0_52 = arith.constant 0 : index
    %250 = vector.load %arg0[%249, %c0_51, %c0_52] : memref<8x8x96xf32, #tpu.memory_space<vmem>>, vector<1x8x96xf32>
    %251 = vector.shape_cast %250 : vector<1x8x96xf32> to vector<8x96xf32>
    %cst_53 = arith.constant dense<0.000000e+00> : vector<8x96xf32>
    %252 = tpu.matmul %248, %0, %cst_53 {dimension_numbers = #tpu.dot_dimension_numbers<[1], [0], [0], [1], [0, 0, 1, 1], [], []>} : vector<8x32xf32>, vector<32x96xf32>, vector<8x96xf32> -> vector<8x96xf32>
    %253 = vector.broadcast %1 : vector<1x96xf32> to vector<8x96xf32>
    %254 = arith.addf %252, %253 : vector<8x96xf32>
    %255 = vector.extract_strided_slice %251 {offsets = [0, 0], sizes = [8, 32], strides = [1, 1]} : vector<8x96xf32> to vector<8x32xf32>
    %256 = vector.extract_strided_slice %254 {offsets = [0, 0], sizes = [8, 32], strides = [1, 1]} : vector<8x96xf32> to vector<8x32xf32>
    %257 = arith.addf %255, %256 : vector<8x32xf32>
    %258 = arith.negf %257 : vector<8x32xf32>
    %259 = math.exp %258 : vector<8x32xf32>
    %cst_54 = arith.constant 1.000000e+00 : f32
    %260 = vector.broadcast %cst_54 : f32 to vector<8x32xf32>
    %261 = arith.addf %260, %259 : vector<8x32xf32>
    %262 = arith.divf %260, %261 : vector<8x32xf32>
    %263 = vector.extract_strided_slice %251 {offsets = [0, 32], sizes = [8, 32], strides = [1, 1]} : vector<8x96xf32> to vector<8x32xf32>
    %264 = vector.extract_strided_slice %254 {offsets = [0, 32], sizes = [8, 32], strides = [1, 1]} : vector<8x96xf32> to vector<8x32xf32>
    %265 = arith.addf %263, %264 : vector<8x32xf32>
    %266 = arith.negf %265 : vector<8x32xf32>
    %267 = math.exp %266 : vector<8x32xf32>
    %cst_55 = arith.constant 1.000000e+00 : f32
    %268 = vector.broadcast %cst_55 : f32 to vector<8x32xf32>
    %269 = arith.addf %268, %267 : vector<8x32xf32>
    %270 = arith.divf %268, %269 : vector<8x32xf32>
    %271 = vector.extract_strided_slice %251 {offsets = [0, 64], sizes = [8, 32], strides = [1, 1]} : vector<8x96xf32> to vector<8x32xf32>
    %272 = vector.extract_strided_slice %254 {offsets = [0, 64], sizes = [8, 32], strides = [1, 1]} : vector<8x96xf32> to vector<8x32xf32>
    %273 = arith.mulf %262, %272 : vector<8x32xf32>
    %274 = arith.addf %271, %273 : vector<8x32xf32>
    %275 = math.tanh %274 : vector<8x32xf32>
    %cst_56 = arith.constant 1.000000e+00 : f32
    %276 = vector.broadcast %cst_56 : f32 to vector<8x32xf32>
    %277 = arith.subf %276, %270 : vector<8x32xf32>
    %278 = arith.mulf %277, %275 : vector<8x32xf32>
    %279 = arith.mulf %270, %248 : vector<8x32xf32>
    %280 = arith.addf %278, %279 : vector<8x32xf32>
    %281 = vector.broadcast %c5_i32 : i32 to vector<8x1xi32>
    %282 = arith.cmpi sgt, %2, %281 : vector<8x1xi32>
    %283 = arith.extui %282 : vector<8x1xi1> to vector<8x1xi32>
    %284 = arith.sitofp %283 : vector<8x1xi32> to vector<8x1xf32>
    %285 = vector.broadcast %284 : vector<8x1xf32> to vector<8x32xf32>
    %286 = arith.mulf %280, %285 : vector<8x32xf32>
    %287 = arith.index_cast %c5_i32 : i32 to index
    %c0_57 = arith.constant 0 : index
    %c0_58 = arith.constant 0 : index
    %288 = vector.load %arg5[%287, %c0_57, %c0_58] : memref<8x8x32xf32, #tpu.memory_space<vmem>>, vector<1x8x32xf32>
    %289 = vector.shape_cast %288 : vector<1x8x32xf32> to vector<8x32xf32>
    %290 = vector.shape_cast %286 : vector<8x32xf32> to vector<1x8x32xf32>
    tpu.vector_store %arg5[%287, %c0_57, %c0_58], %290 {strides = array<i32>} : memref<8x8x32xf32, #tpu.memory_space<vmem>>, vector<1x8x32xf32>,
    %291 = vector.broadcast %284 : vector<8x1xf32> to vector<8x32xf32>
    %292 = arith.mulf %291, %280 : vector<8x32xf32>
    %cst_59 = arith.constant 1.000000e+00 : f32
    %293 = vector.broadcast %cst_59 : f32 to vector<8x1xf32>
    %294 = arith.subf %293, %284 : vector<8x1xf32>
    %295 = vector.broadcast %294 : vector<8x1xf32> to vector<8x32xf32>
    %296 = arith.mulf %295, %248 : vector<8x32xf32>
    %297 = arith.addf %292, %296 : vector<8x32xf32>
    %c6_i32 = arith.constant 6 : i32
    %298 = arith.index_cast %c6_i32 : i32 to index
    %c0_60 = arith.constant 0 : index
    %c0_61 = arith.constant 0 : index
    %299 = vector.load %arg0[%298, %c0_60, %c0_61] : memref<8x8x96xf32, #tpu.memory_space<vmem>>, vector<1x8x96xf32>
    %300 = vector.shape_cast %299 : vector<1x8x96xf32> to vector<8x96xf32>
    %cst_62 = arith.constant dense<0.000000e+00> : vector<8x96xf32>
    %301 = tpu.matmul %297, %0, %cst_62 {dimension_numbers = #tpu.dot_dimension_numbers<[1], [0], [0], [1], [0, 0, 1, 1], [], []>} : vector<8x32xf32>, vector<32x96xf32>, vector<8x96xf32> -> vector<8x96xf32>
    %302 = vector.broadcast %1 : vector<1x96xf32> to vector<8x96xf32>
    %303 = arith.addf %301, %302 : vector<8x96xf32>
    %304 = vector.extract_strided_slice %300 {offsets = [0, 0], sizes = [8, 32], strides = [1, 1]} : vector<8x96xf32> to vector<8x32xf32>
    %305 = vector.extract_strided_slice %303 {offsets = [0, 0], sizes = [8, 32], strides = [1, 1]} : vector<8x96xf32> to vector<8x32xf32>
    %306 = arith.addf %304, %305 : vector<8x32xf32>
    %307 = arith.negf %306 : vector<8x32xf32>
    %308 = math.exp %307 : vector<8x32xf32>
    %cst_63 = arith.constant 1.000000e+00 : f32
    %309 = vector.broadcast %cst_63 : f32 to vector<8x32xf32>
    %310 = arith.addf %309, %308 : vector<8x32xf32>
    %311 = arith.divf %309, %310 : vector<8x32xf32>
    %312 = vector.extract_strided_slice %300 {offsets = [0, 32], sizes = [8, 32], strides = [1, 1]} : vector<8x96xf32> to vector<8x32xf32>
    %313 = vector.extract_strided_slice %303 {offsets = [0, 32], sizes = [8, 32], strides = [1, 1]} : vector<8x96xf32> to vector<8x32xf32>
    %314 = arith.addf %312, %313 : vector<8x32xf32>
    %315 = arith.negf %314 : vector<8x32xf32>
    %316 = math.exp %315 : vector<8x32xf32>
    %cst_64 = arith.constant 1.000000e+00 : f32
    %317 = vector.broadcast %cst_64 : f32 to vector<8x32xf32>
    %318 = arith.addf %317, %316 : vector<8x32xf32>
    %319 = arith.divf %317, %318 : vector<8x32xf32>
    %320 = vector.extract_strided_slice %300 {offsets = [0, 64], sizes = [8, 32], strides = [1, 1]} : vector<8x96xf32> to vector<8x32xf32>
    %321 = vector.extract_strided_slice %303 {offsets = [0, 64], sizes = [8, 32], strides = [1, 1]} : vector<8x96xf32> to vector<8x32xf32>
    %322 = arith.mulf %311, %321 : vector<8x32xf32>
    %323 = arith.addf %320, %322 : vector<8x32xf32>
    %324 = math.tanh %323 : vector<8x32xf32>
    %cst_65 = arith.constant 1.000000e+00 : f32
    %325 = vector.broadcast %cst_65 : f32 to vector<8x32xf32>
    %326 = arith.subf %325, %319 : vector<8x32xf32>
    %327 = arith.mulf %326, %324 : vector<8x32xf32>
    %328 = arith.mulf %319, %297 : vector<8x32xf32>
    %329 = arith.addf %327, %328 : vector<8x32xf32>
    %330 = vector.broadcast %c6_i32 : i32 to vector<8x1xi32>
    %331 = arith.cmpi sgt, %2, %330 : vector<8x1xi32>
    %332 = arith.extui %331 : vector<8x1xi1> to vector<8x1xi32>
    %333 = arith.sitofp %332 : vector<8x1xi32> to vector<8x1xf32>
    %334 = vector.broadcast %333 : vector<8x1xf32> to vector<8x32xf32>
    %335 = arith.mulf %329, %334 : vector<8x32xf32>
    %336 = arith.index_cast %c6_i32 : i32 to index
    %c0_66 = arith.constant 0 : index
    %c0_67 = arith.constant 0 : index
    %337 = vector.load %arg5[%336, %c0_66, %c0_67] : memref<8x8x32xf32, #tpu.memory_space<vmem>>, vector<1x8x32xf32>
    %338 = vector.shape_cast %337 : vector<1x8x32xf32> to vector<8x32xf32>
    %339 = vector.shape_cast %335 : vector<8x32xf32> to vector<1x8x32xf32>
    tpu.vector_store %arg5[%336, %c0_66, %c0_67], %339 {strides = array<i32>} : memref<8x8x32xf32, #tpu.memory_space<vmem>>, vector<1x8x32xf32>,
    %340 = vector.broadcast %333 : vector<8x1xf32> to vector<8x32xf32>
    %341 = arith.mulf %340, %329 : vector<8x32xf32>
    %cst_68 = arith.constant 1.000000e+00 : f32
    %342 = vector.broadcast %cst_68 : f32 to vector<8x1xf32>
    %343 = arith.subf %342, %333 : vector<8x1xf32>
    %344 = vector.broadcast %343 : vector<8x1xf32> to vector<8x32xf32>
    %345 = arith.mulf %344, %297 : vector<8x32xf32>
    %346 = arith.addf %341, %345 : vector<8x32xf32>
    %c7_i32 = arith.constant 7 : i32
    %347 = arith.index_cast %c7_i32 : i32 to index
    %c0_69 = arith.constant 0 : index
    %c0_70 = arith.constant 0 : index
    %348 = vector.load %arg0[%347, %c0_69, %c0_70] : memref<8x8x96xf32, #tpu.memory_space<vmem>>, vector<1x8x96xf32>
    %349 = vector.shape_cast %348 : vector<1x8x96xf32> to vector<8x96xf32>
    %cst_71 = arith.constant dense<0.000000e+00> : vector<8x96xf32>
    %350 = tpu.matmul %346, %0, %cst_71 {dimension_numbers = #tpu.dot_dimension_numbers<[1], [0], [0], [1], [0, 0, 1, 1], [], []>} : vector<8x32xf32>, vector<32x96xf32>, vector<8x96xf32> -> vector<8x96xf32>
    %351 = vector.broadcast %1 : vector<1x96xf32> to vector<8x96xf32>
    %352 = arith.addf %350, %351 : vector<8x96xf32>
    %353 = vector.extract_strided_slice %349 {offsets = [0, 0], sizes = [8, 32], strides = [1, 1]} : vector<8x96xf32> to vector<8x32xf32>
    %354 = vector.extract_strided_slice %352 {offsets = [0, 0], sizes = [8, 32], strides = [1, 1]} : vector<8x96xf32> to vector<8x32xf32>
    %355 = arith.addf %353, %354 : vector<8x32xf32>
    %356 = arith.negf %355 : vector<8x32xf32>
    %357 = math.exp %356 : vector<8x32xf32>
    %cst_72 = arith.constant 1.000000e+00 : f32
    %358 = vector.broadcast %cst_72 : f32 to vector<8x32xf32>
    %359 = arith.addf %358, %357 : vector<8x32xf32>
    %360 = arith.divf %358, %359 : vector<8x32xf32>
    %361 = vector.extract_strided_slice %349 {offsets = [0, 32], sizes = [8, 32], strides = [1, 1]} : vector<8x96xf32> to vector<8x32xf32>
    %362 = vector.extract_strided_slice %352 {offsets = [0, 32], sizes = [8, 32], strides = [1, 1]} : vector<8x96xf32> to vector<8x32xf32>
    %363 = arith.addf %361, %362 : vector<8x32xf32>
    %364 = arith.negf %363 : vector<8x32xf32>
    %365 = math.exp %364 : vector<8x32xf32>
    %cst_73 = arith.constant 1.000000e+00 : f32
    %366 = vector.broadcast %cst_73 : f32 to vector<8x32xf32>
    %367 = arith.addf %366, %365 : vector<8x32xf32>
    %368 = arith.divf %366, %367 : vector<8x32xf32>
    %369 = vector.extract_strided_slice %349 {offsets = [0, 64], sizes = [8, 32], strides = [1, 1]} : vector<8x96xf32> to vector<8x32xf32>
    %370 = vector.extract_strided_slice %352 {offsets = [0, 64], sizes = [8, 32], strides = [1, 1]} : vector<8x96xf32> to vector<8x32xf32>
    %371 = arith.mulf %360, %370 : vector<8x32xf32>
    %372 = arith.addf %369, %371 : vector<8x32xf32>
    %373 = math.tanh %372 : vector<8x32xf32>
    %cst_74 = arith.constant 1.000000e+00 : f32
    %374 = vector.broadcast %cst_74 : f32 to vector<8x32xf32>
    %375 = arith.subf %374, %368 : vector<8x32xf32>
    %376 = arith.mulf %375, %373 : vector<8x32xf32>
    %377 = arith.mulf %368, %346 : vector<8x32xf32>
    %378 = arith.addf %376, %377 : vector<8x32xf32>
    %379 = vector.broadcast %c7_i32 : i32 to vector<8x1xi32>
    %380 = arith.cmpi sgt, %2, %379 : vector<8x1xi32>
    %381 = arith.extui %380 : vector<8x1xi1> to vector<8x1xi32>
    %382 = arith.sitofp %381 : vector<8x1xi32> to vector<8x1xf32>
    %383 = vector.broadcast %382 : vector<8x1xf32> to vector<8x32xf32>
    %384 = arith.mulf %378, %383 : vector<8x32xf32>
    %385 = arith.index_cast %c7_i32 : i32 to index
    %c0_75 = arith.constant 0 : index
    %c0_76 = arith.constant 0 : index
    %386 = vector.load %arg5[%385, %c0_75, %c0_76] : memref<8x8x32xf32, #tpu.memory_space<vmem>>, vector<1x8x32xf32>
    %387 = vector.shape_cast %386 : vector<1x8x32xf32> to vector<8x32xf32>
    %388 = vector.shape_cast %384 : vector<8x32xf32> to vector<1x8x32xf32>
    tpu.vector_store %arg5[%385, %c0_75, %c0_76], %388 {strides = array<i32>} : memref<8x8x32xf32, #tpu.memory_space<vmem>>, vector<1x8x32xf32>,
    %389 = vector.broadcast %382 : vector<8x1xf32> to vector<8x32xf32>
    %390 = arith.mulf %389, %378 : vector<8x32xf32>
    %cst_77 = arith.constant 1.000000e+00 : f32
    %391 = vector.broadcast %cst_77 : f32 to vector<8x1xf32>
    %392 = arith.subf %391, %382 : vector<8x1xf32>
    %393 = vector.broadcast %392 : vector<8x1xf32> to vector<8x32xf32>
    %394 = arith.mulf %393, %346 : vector<8x32xf32>
    %395 = arith.addf %390, %394 : vector<8x32xf32>
    %c8_i32 = arith.constant 8 : i32
    %c0_78 = arith.constant 0 : index
    %c0_79 = arith.constant 0 : index
    %396 = vector.load %arg6[%c0_78, %c0_79] : memref<8x32xf32, #tpu.memory_space<vmem>>, vector<8x32xf32>
    tpu.vector_store %arg6[%c0_78, %c0_79], %395 {strides = array<i32>} : memref<8x32xf32, #tpu.memory_space<vmem>>, vector<8x32xf32>,
    return
  }
}

module attributes {stable_mosaic.version = 11 : i64} {
  func.func @_gru_recurrence_kernel(%arg0: memref<7x8x96xf32, #tpu.memory_space<vmem>>, %arg1: memref<8x1xi32, #tpu.memory_space<vmem>>, %arg2: memref<8x32xf32, #tpu.memory_space<vmem>>, %arg3: memref<32x96xf32, #tpu.memory_space<vmem>>, %arg4: memref<1x96xf32, #tpu.memory_space<vmem>>, %arg5: memref<7x8x32xf32, #tpu.memory_space<vmem>>, %arg6: memref<8x32xf32, #tpu.memory_space<vmem>>) attributes {dimension_semantics = [], scalar_prefetch = 0 : i64, scratch_operands = 0 : i64, tpu.core_type = #tpu.core_type<tc>} {
    %c0 = arith.constant 0 : index
    %c0_0 = arith.constant 0 : index
    %0 = vector.load %arg3[%c0, %c0_0] : memref<32x96xf32, #tpu.memory_space<vmem>>, vector<32x96xf32>
    %c0_1 = arith.constant 0 : index
    %c0_2 = arith.constant 0 : index
    %1 = vector.load %arg4[%c0_1, %c0_2] : memref<1x96xf32, #tpu.memory_space<vmem>>, vector<1x96xf32>
    %c0_3 = arith.constant 0 : index
    %c0_4 = arith.constant 0 : index
    %2 = vector.load %arg1[%c0_3, %c0_4] : memref<8x1xi32, #tpu.memory_space<vmem>>, vector<8x1xi32>
    %c0_5 = arith.constant 0 : index
    %c0_6 = arith.constant 0 : index
    %3 = vector.load %arg2[%c0_5, %c0_6] : memref<8x32xf32, #tpu.memory_space<vmem>>, vector<8x32xf32>
    %c0_i32 = arith.constant 0 : i32
    %4 = arith.index_cast %c0_i32 : i32 to index
    %c0_7 = arith.constant 0 : index
    %c0_8 = arith.constant 0 : index
    %5 = vector.load %arg0[%4, %c0_7, %c0_8] : memref<7x8x96xf32, #tpu.memory_space<vmem>>, vector<1x8x96xf32>
    %6 = vector.shape_cast %5 : vector<1x8x96xf32> to vector<8x96xf32>
    %cst = arith.constant dense<0.000000e+00> : vector<8x96xf32>
    %7 = tpu.matmul %3, %0, %cst {dimension_numbers = #tpu.dot_dimension_numbers<[1], [0], [0], [1], [0, 0, 1, 1], [], []>} : vector<8x32xf32>, vector<32x96xf32>, vector<8x96xf32> -> vector<8x96xf32>
    %8 = vector.broadcast %1 : vector<1x96xf32> to vector<8x96xf32>
    %9 = arith.addf %7, %8 : vector<8x96xf32>
    %10 = vector.extract_strided_slice %6 {offsets = [0, 0], sizes = [8, 32], strides = [1, 1]} : vector<8x96xf32> to vector<8x32xf32>
    %11 = vector.extract_strided_slice %9 {offsets = [0, 0], sizes = [8, 32], strides = [1, 1]} : vector<8x96xf32> to vector<8x32xf32>
    %12 = arith.addf %10, %11 : vector<8x32xf32>
    %13 = arith.negf %12 : vector<8x32xf32>
    %14 = math.exp %13 : vector<8x32xf32>
    %cst_9 = arith.constant 1.000000e+00 : f32
    %15 = vector.broadcast %cst_9 : f32 to vector<8x32xf32>
    %16 = arith.addf %15, %14 : vector<8x32xf32>
    %17 = arith.divf %15, %16 : vector<8x32xf32>
    %18 = vector.extract_strided_slice %6 {offsets = [0, 32], sizes = [8, 32], strides = [1, 1]} : vector<8x96xf32> to vector<8x32xf32>
    %19 = vector.extract_strided_slice %9 {offsets = [0, 32], sizes = [8, 32], strides = [1, 1]} : vector<8x96xf32> to vector<8x32xf32>
    %20 = arith.addf %18, %19 : vector<8x32xf32>
    %21 = arith.negf %20 : vector<8x32xf32>
    %22 = math.exp %21 : vector<8x32xf32>
    %cst_10 = arith.constant 1.000000e+00 : f32
    %23 = vector.broadcast %cst_10 : f32 to vector<8x32xf32>
    %24 = arith.addf %23, %22 : vector<8x32xf32>
    %25 = arith.divf %23, %24 : vector<8x32xf32>
    %26 = vector.extract_strided_slice %6 {offsets = [0, 64], sizes = [8, 32], strides = [1, 1]} : vector<8x96xf32> to vector<8x32xf32>
    %27 = vector.extract_strided_slice %9 {offsets = [0, 64], sizes = [8, 32], strides = [1, 1]} : vector<8x96xf32> to vector<8x32xf32>
    %28 = arith.mulf %17, %27 : vector<8x32xf32>
    %29 = arith.addf %26, %28 : vector<8x32xf32>
    %30 = math.tanh %29 : vector<8x32xf32>
    %cst_11 = arith.constant 1.000000e+00 : f32
    %31 = vector.broadcast %cst_11 : f32 to vector<8x32xf32>
    %32 = arith.subf %31, %25 : vector<8x32xf32>
    %33 = arith.mulf %32, %30 : vector<8x32xf32>
    %34 = arith.mulf %25, %3 : vector<8x32xf32>
    %35 = arith.addf %33, %34 : vector<8x32xf32>
    %36 = vector.broadcast %c0_i32 : i32 to vector<8x1xi32>
    %37 = arith.cmpi sgt, %2, %36 : vector<8x1xi32>
    %38 = arith.extui %37 : vector<8x1xi1> to vector<8x1xi32>
    %39 = arith.sitofp %38 : vector<8x1xi32> to vector<8x1xf32>
    %40 = vector.broadcast %39 : vector<8x1xf32> to vector<8x32xf32>
    %41 = arith.mulf %35, %40 : vector<8x32xf32>
    %42 = arith.index_cast %c0_i32 : i32 to index
    %c0_12 = arith.constant 0 : index
    %c0_13 = arith.constant 0 : index
    %43 = vector.load %arg5[%42, %c0_12, %c0_13] : memref<7x8x32xf32, #tpu.memory_space<vmem>>, vector<1x8x32xf32>
    %44 = vector.shape_cast %43 : vector<1x8x32xf32> to vector<8x32xf32>
    %45 = vector.shape_cast %41 : vector<8x32xf32> to vector<1x8x32xf32>
    tpu.vector_store %arg5[%42, %c0_12, %c0_13], %45 {strides = array<i32>} : memref<7x8x32xf32, #tpu.memory_space<vmem>>, vector<1x8x32xf32>,
    %46 = vector.broadcast %39 : vector<8x1xf32> to vector<8x32xf32>
    %47 = arith.mulf %46, %35 : vector<8x32xf32>
    %cst_14 = arith.constant 1.000000e+00 : f32
    %48 = vector.broadcast %cst_14 : f32 to vector<8x1xf32>
    %49 = arith.subf %48, %39 : vector<8x1xf32>
    %50 = vector.broadcast %49 : vector<8x1xf32> to vector<8x32xf32>
    %51 = arith.mulf %50, %3 : vector<8x32xf32>
    %52 = arith.addf %47, %51 : vector<8x32xf32>
    %c1_i32 = arith.constant 1 : i32
    %53 = arith.index_cast %c1_i32 : i32 to index
    %c0_15 = arith.constant 0 : index
    %c0_16 = arith.constant 0 : index
    %54 = vector.load %arg0[%53, %c0_15, %c0_16] : memref<7x8x96xf32, #tpu.memory_space<vmem>>, vector<1x8x96xf32>
    %55 = vector.shape_cast %54 : vector<1x8x96xf32> to vector<8x96xf32>
    %cst_17 = arith.constant dense<0.000000e+00> : vector<8x96xf32>
    %56 = tpu.matmul %52, %0, %cst_17 {dimension_numbers = #tpu.dot_dimension_numbers<[1], [0], [0], [1], [0, 0, 1, 1], [], []>} : vector<8x32xf32>, vector<32x96xf32>, vector<8x96xf32> -> vector<8x96xf32>
    %57 = vector.broadcast %1 : vector<1x96xf32> to vector<8x96xf32>
    %58 = arith.addf %56, %57 : vector<8x96xf32>
    %59 = vector.extract_strided_slice %55 {offsets = [0, 0], sizes = [8, 32], strides = [1, 1]} : vector<8x96xf32> to vector<8x32xf32>
    %60 = vector.extract_strided_slice %58 {offsets = [0, 0], sizes = [8, 32], strides = [1, 1]} : vector<8x96xf32> to vector<8x32xf32>
    %61 = arith.addf %59, %60 : vector<8x32xf32>
    %62 = arith.negf %61 : vector<8x32xf32>
    %63 = math.exp %62 : vector<8x32xf32>
    %cst_18 = arith.constant 1.000000e+00 : f32
    %64 = vector.broadcast %cst_18 : f32 to vector<8x32xf32>
    %65 = arith.addf %64, %63 : vector<8x32xf32>
    %66 = arith.divf %64, %65 : vector<8x32xf32>
    %67 = vector.extract_strided_slice %55 {offsets = [0, 32], sizes = [8, 32], strides = [1, 1]} : vector<8x96xf32> to vector<8x32xf32>
    %68 = vector.extract_strided_slice %58 {offsets = [0, 32], sizes = [8, 32], strides = [1, 1]} : vector<8x96xf32> to vector<8x32xf32>
    %69 = arith.addf %67, %68 : vector<8x32xf32>
    %70 = arith.negf %69 : vector<8x32xf32>
    %71 = math.exp %70 : vector<8x32xf32>
    %cst_19 = arith.constant 1.000000e+00 : f32
    %72 = vector.broadcast %cst_19 : f32 to vector<8x32xf32>
    %73 = arith.addf %72, %71 : vector<8x32xf32>
    %74 = arith.divf %72, %73 : vector<8x32xf32>
    %75 = vector.extract_strided_slice %55 {offsets = [0, 64], sizes = [8, 32], strides = [1, 1]} : vector<8x96xf32> to vector<8x32xf32>
    %76 = vector.extract_strided_slice %58 {offsets = [0, 64], sizes = [8, 32], strides = [1, 1]} : vector<8x96xf32> to vector<8x32xf32>
    %77 = arith.mulf %66, %76 : vector<8x32xf32>
    %78 = arith.addf %75, %77 : vector<8x32xf32>
    %79 = math.tanh %78 : vector<8x32xf32>
    %cst_20 = arith.constant 1.000000e+00 : f32
    %80 = vector.broadcast %cst_20 : f32 to vector<8x32xf32>
    %81 = arith.subf %80, %74 : vector<8x32xf32>
    %82 = arith.mulf %81, %79 : vector<8x32xf32>
    %83 = arith.mulf %74, %52 : vector<8x32xf32>
    %84 = arith.addf %82, %83 : vector<8x32xf32>
    %85 = vector.broadcast %c1_i32 : i32 to vector<8x1xi32>
    %86 = arith.cmpi sgt, %2, %85 : vector<8x1xi32>
    %87 = arith.extui %86 : vector<8x1xi1> to vector<8x1xi32>
    %88 = arith.sitofp %87 : vector<8x1xi32> to vector<8x1xf32>
    %89 = vector.broadcast %88 : vector<8x1xf32> to vector<8x32xf32>
    %90 = arith.mulf %84, %89 : vector<8x32xf32>
    %91 = arith.index_cast %c1_i32 : i32 to index
    %c0_21 = arith.constant 0 : index
    %c0_22 = arith.constant 0 : index
    %92 = vector.load %arg5[%91, %c0_21, %c0_22] : memref<7x8x32xf32, #tpu.memory_space<vmem>>, vector<1x8x32xf32>
    %93 = vector.shape_cast %92 : vector<1x8x32xf32> to vector<8x32xf32>
    %94 = vector.shape_cast %90 : vector<8x32xf32> to vector<1x8x32xf32>
    tpu.vector_store %arg5[%91, %c0_21, %c0_22], %94 {strides = array<i32>} : memref<7x8x32xf32, #tpu.memory_space<vmem>>, vector<1x8x32xf32>,
    %95 = vector.broadcast %88 : vector<8x1xf32> to vector<8x32xf32>
    %96 = arith.mulf %95, %84 : vector<8x32xf32>
    %cst_23 = arith.constant 1.000000e+00 : f32
    %97 = vector.broadcast %cst_23 : f32 to vector<8x1xf32>
    %98 = arith.subf %97, %88 : vector<8x1xf32>
    %99 = vector.broadcast %98 : vector<8x1xf32> to vector<8x32xf32>
    %100 = arith.mulf %99, %52 : vector<8x32xf32>
    %101 = arith.addf %96, %100 : vector<8x32xf32>
    %c2_i32 = arith.constant 2 : i32
    %102 = arith.index_cast %c2_i32 : i32 to index
    %c0_24 = arith.constant 0 : index
    %c0_25 = arith.constant 0 : index
    %103 = vector.load %arg0[%102, %c0_24, %c0_25] : memref<7x8x96xf32, #tpu.memory_space<vmem>>, vector<1x8x96xf32>
    %104 = vector.shape_cast %103 : vector<1x8x96xf32> to vector<8x96xf32>
    %cst_26 = arith.constant dense<0.000000e+00> : vector<8x96xf32>
    %105 = tpu.matmul %101, %0, %cst_26 {dimension_numbers = #tpu.dot_dimension_numbers<[1], [0], [0], [1], [0, 0, 1, 1], [], []>} : vector<8x32xf32>, vector<32x96xf32>, vector<8x96xf32> -> vector<8x96xf32>
    %106 = vector.broadcast %1 : vector<1x96xf32> to vector<8x96xf32>
    %107 = arith.addf %105, %106 : vector<8x96xf32>
    %108 = vector.extract_strided_slice %104 {offsets = [0, 0], sizes = [8, 32], strides = [1, 1]} : vector<8x96xf32> to vector<8x32xf32>
    %109 = vector.extract_strided_slice %107 {offsets = [0, 0], sizes = [8, 32], strides = [1, 1]} : vector<8x96xf32> to vector<8x32xf32>
    %110 = arith.addf %108, %109 : vector<8x32xf32>
    %111 = arith.negf %110 : vector<8x32xf32>
    %112 = math.exp %111 : vector<8x32xf32>
    %cst_27 = arith.constant 1.000000e+00 : f32
    %113 = vector.broadcast %cst_27 : f32 to vector<8x32xf32>
    %114 = arith.addf %113, %112 : vector<8x32xf32>
    %115 = arith.divf %113, %114 : vector<8x32xf32>
    %116 = vector.extract_strided_slice %104 {offsets = [0, 32], sizes = [8, 32], strides = [1, 1]} : vector<8x96xf32> to vector<8x32xf32>
    %117 = vector.extract_strided_slice %107 {offsets = [0, 32], sizes = [8, 32], strides = [1, 1]} : vector<8x96xf32> to vector<8x32xf32>
    %118 = arith.addf %116, %117 : vector<8x32xf32>
    %119 = arith.negf %118 : vector<8x32xf32>
    %120 = math.exp %119 : vector<8x32xf32>
    %cst_28 = arith.constant 1.000000e+00 : f32
    %121 = vector.broadcast %cst_28 : f32 to vector<8x32xf32>
    %122 = arith.addf %121, %120 : vector<8x32xf32>
    %123 = arith.divf %121, %122 : vector<8x32xf32>
    %124 = vector.extract_strided_slice %104 {offsets = [0, 64], sizes = [8, 32], strides = [1, 1]} : vector<8x96xf32> to vector<8x32xf32>
    %125 = vector.extract_strided_slice %107 {offsets = [0, 64], sizes = [8, 32], strides = [1, 1]} : vector<8x96xf32> to vector<8x32xf32>
    %126 = arith.mulf %115, %125 : vector<8x32xf32>
    %127 = arith.addf %124, %126 : vector<8x32xf32>
    %128 = math.tanh %127 : vector<8x32xf32>
    %cst_29 = arith.constant 1.000000e+00 : f32
    %129 = vector.broadcast %cst_29 : f32 to vector<8x32xf32>
    %130 = arith.subf %129, %123 : vector<8x32xf32>
    %131 = arith.mulf %130, %128 : vector<8x32xf32>
    %132 = arith.mulf %123, %101 : vector<8x32xf32>
    %133 = arith.addf %131, %132 : vector<8x32xf32>
    %134 = vector.broadcast %c2_i32 : i32 to vector<8x1xi32>
    %135 = arith.cmpi sgt, %2, %134 : vector<8x1xi32>
    %136 = arith.extui %135 : vector<8x1xi1> to vector<8x1xi32>
    %137 = arith.sitofp %136 : vector<8x1xi32> to vector<8x1xf32>
    %138 = vector.broadcast %137 : vector<8x1xf32> to vector<8x32xf32>
    %139 = arith.mulf %133, %138 : vector<8x32xf32>
    %140 = arith.index_cast %c2_i32 : i32 to index
    %c0_30 = arith.constant 0 : index
    %c0_31 = arith.constant 0 : index
    %141 = vector.load %arg5[%140, %c0_30, %c0_31] : memref<7x8x32xf32, #tpu.memory_space<vmem>>, vector<1x8x32xf32>
    %142 = vector.shape_cast %141 : vector<1x8x32xf32> to vector<8x32xf32>
    %143 = vector.shape_cast %139 : vector<8x32xf32> to vector<1x8x32xf32>
    tpu.vector_store %arg5[%140, %c0_30, %c0_31], %143 {strides = array<i32>} : memref<7x8x32xf32, #tpu.memory_space<vmem>>, vector<1x8x32xf32>,
    %144 = vector.broadcast %137 : vector<8x1xf32> to vector<8x32xf32>
    %145 = arith.mulf %144, %133 : vector<8x32xf32>
    %cst_32 = arith.constant 1.000000e+00 : f32
    %146 = vector.broadcast %cst_32 : f32 to vector<8x1xf32>
    %147 = arith.subf %146, %137 : vector<8x1xf32>
    %148 = vector.broadcast %147 : vector<8x1xf32> to vector<8x32xf32>
    %149 = arith.mulf %148, %101 : vector<8x32xf32>
    %150 = arith.addf %145, %149 : vector<8x32xf32>
    %c3_i32 = arith.constant 3 : i32
    %151 = arith.index_cast %c3_i32 : i32 to index
    %c0_33 = arith.constant 0 : index
    %c0_34 = arith.constant 0 : index
    %152 = vector.load %arg0[%151, %c0_33, %c0_34] : memref<7x8x96xf32, #tpu.memory_space<vmem>>, vector<1x8x96xf32>
    %153 = vector.shape_cast %152 : vector<1x8x96xf32> to vector<8x96xf32>
    %cst_35 = arith.constant dense<0.000000e+00> : vector<8x96xf32>
    %154 = tpu.matmul %150, %0, %cst_35 {dimension_numbers = #tpu.dot_dimension_numbers<[1], [0], [0], [1], [0, 0, 1, 1], [], []>} : vector<8x32xf32>, vector<32x96xf32>, vector<8x96xf32> -> vector<8x96xf32>
    %155 = vector.broadcast %1 : vector<1x96xf32> to vector<8x96xf32>
    %156 = arith.addf %154, %155 : vector<8x96xf32>
    %157 = vector.extract_strided_slice %153 {offsets = [0, 0], sizes = [8, 32], strides = [1, 1]} : vector<8x96xf32> to vector<8x32xf32>
    %158 = vector.extract_strided_slice %156 {offsets = [0, 0], sizes = [8, 32], strides = [1, 1]} : vector<8x96xf32> to vector<8x32xf32>
    %159 = arith.addf %157, %158 : vector<8x32xf32>
    %160 = arith.negf %159 : vector<8x32xf32>
    %161 = math.exp %160 : vector<8x32xf32>
    %cst_36 = arith.constant 1.000000e+00 : f32
    %162 = vector.broadcast %cst_36 : f32 to vector<8x32xf32>
    %163 = arith.addf %162, %161 : vector<8x32xf32>
    %164 = arith.divf %162, %163 : vector<8x32xf32>
    %165 = vector.extract_strided_slice %153 {offsets = [0, 32], sizes = [8, 32], strides = [1, 1]} : vector<8x96xf32> to vector<8x32xf32>
    %166 = vector.extract_strided_slice %156 {offsets = [0, 32], sizes = [8, 32], strides = [1, 1]} : vector<8x96xf32> to vector<8x32xf32>
    %167 = arith.addf %165, %166 : vector<8x32xf32>
    %168 = arith.negf %167 : vector<8x32xf32>
    %169 = math.exp %168 : vector<8x32xf32>
    %cst_37 = arith.constant 1.000000e+00 : f32
    %170 = vector.broadcast %cst_37 : f32 to vector<8x32xf32>
    %171 = arith.addf %170, %169 : vector<8x32xf32>
    %172 = arith.divf %170, %171 : vector<8x32xf32>
    %173 = vector.extract_strided_slice %153 {offsets = [0, 64], sizes = [8, 32], strides = [1, 1]} : vector<8x96xf32> to vector<8x32xf32>
    %174 = vector.extract_strided_slice %156 {offsets = [0, 64], sizes = [8, 32], strides = [1, 1]} : vector<8x96xf32> to vector<8x32xf32>
    %175 = arith.mulf %164, %174 : vector<8x32xf32>
    %176 = arith.addf %173, %175 : vector<8x32xf32>
    %177 = math.tanh %176 : vector<8x32xf32>
    %cst_38 = arith.constant 1.000000e+00 : f32
    %178 = vector.broadcast %cst_38 : f32 to vector<8x32xf32>
    %179 = arith.subf %178, %172 : vector<8x32xf32>
    %180 = arith.mulf %179, %177 : vector<8x32xf32>
    %181 = arith.mulf %172, %150 : vector<8x32xf32>
    %182 = arith.addf %180, %181 : vector<8x32xf32>
    %183 = vector.broadcast %c3_i32 : i32 to vector<8x1xi32>
    %184 = arith.cmpi sgt, %2, %183 : vector<8x1xi32>
    %185 = arith.extui %184 : vector<8x1xi1> to vector<8x1xi32>
    %186 = arith.sitofp %185 : vector<8x1xi32> to vector<8x1xf32>
    %187 = vector.broadcast %186 : vector<8x1xf32> to vector<8x32xf32>
    %188 = arith.mulf %182, %187 : vector<8x32xf32>
    %189 = arith.index_cast %c3_i32 : i32 to index
    %c0_39 = arith.constant 0 : index
    %c0_40 = arith.constant 0 : index
    %190 = vector.load %arg5[%189, %c0_39, %c0_40] : memref<7x8x32xf32, #tpu.memory_space<vmem>>, vector<1x8x32xf32>
    %191 = vector.shape_cast %190 : vector<1x8x32xf32> to vector<8x32xf32>
    %192 = vector.shape_cast %188 : vector<8x32xf32> to vector<1x8x32xf32>
    tpu.vector_store %arg5[%189, %c0_39, %c0_40], %192 {strides = array<i32>} : memref<7x8x32xf32, #tpu.memory_space<vmem>>, vector<1x8x32xf32>,
    %193 = vector.broadcast %186 : vector<8x1xf32> to vector<8x32xf32>
    %194 = arith.mulf %193, %182 : vector<8x32xf32>
    %cst_41 = arith.constant 1.000000e+00 : f32
    %195 = vector.broadcast %cst_41 : f32 to vector<8x1xf32>
    %196 = arith.subf %195, %186 : vector<8x1xf32>
    %197 = vector.broadcast %196 : vector<8x1xf32> to vector<8x32xf32>
    %198 = arith.mulf %197, %150 : vector<8x32xf32>
    %199 = arith.addf %194, %198 : vector<8x32xf32>
    %c4_i32 = arith.constant 4 : i32
    %200 = arith.index_cast %c4_i32 : i32 to index
    %c0_42 = arith.constant 0 : index
    %c0_43 = arith.constant 0 : index
    %201 = vector.load %arg0[%200, %c0_42, %c0_43] : memref<7x8x96xf32, #tpu.memory_space<vmem>>, vector<1x8x96xf32>
    %202 = vector.shape_cast %201 : vector<1x8x96xf32> to vector<8x96xf32>
    %cst_44 = arith.constant dense<0.000000e+00> : vector<8x96xf32>
    %203 = tpu.matmul %199, %0, %cst_44 {dimension_numbers = #tpu.dot_dimension_numbers<[1], [0], [0], [1], [0, 0, 1, 1], [], []>} : vector<8x32xf32>, vector<32x96xf32>, vector<8x96xf32> -> vector<8x96xf32>
    %204 = vector.broadcast %1 : vector<1x96xf32> to vector<8x96xf32>
    %205 = arith.addf %203, %204 : vector<8x96xf32>
    %206 = vector.extract_strided_slice %202 {offsets = [0, 0], sizes = [8, 32], strides = [1, 1]} : vector<8x96xf32> to vector<8x32xf32>
    %207 = vector.extract_strided_slice %205 {offsets = [0, 0], sizes = [8, 32], strides = [1, 1]} : vector<8x96xf32> to vector<8x32xf32>
    %208 = arith.addf %206, %207 : vector<8x32xf32>
    %209 = arith.negf %208 : vector<8x32xf32>
    %210 = math.exp %209 : vector<8x32xf32>
    %cst_45 = arith.constant 1.000000e+00 : f32
    %211 = vector.broadcast %cst_45 : f32 to vector<8x32xf32>
    %212 = arith.addf %211, %210 : vector<8x32xf32>
    %213 = arith.divf %211, %212 : vector<8x32xf32>
    %214 = vector.extract_strided_slice %202 {offsets = [0, 32], sizes = [8, 32], strides = [1, 1]} : vector<8x96xf32> to vector<8x32xf32>
    %215 = vector.extract_strided_slice %205 {offsets = [0, 32], sizes = [8, 32], strides = [1, 1]} : vector<8x96xf32> to vector<8x32xf32>
    %216 = arith.addf %214, %215 : vector<8x32xf32>
    %217 = arith.negf %216 : vector<8x32xf32>
    %218 = math.exp %217 : vector<8x32xf32>
    %cst_46 = arith.constant 1.000000e+00 : f32
    %219 = vector.broadcast %cst_46 : f32 to vector<8x32xf32>
    %220 = arith.addf %219, %218 : vector<8x32xf32>
    %221 = arith.divf %219, %220 : vector<8x32xf32>
    %222 = vector.extract_strided_slice %202 {offsets = [0, 64], sizes = [8, 32], strides = [1, 1]} : vector<8x96xf32> to vector<8x32xf32>
    %223 = vector.extract_strided_slice %205 {offsets = [0, 64], sizes = [8, 32], strides = [1, 1]} : vector<8x96xf32> to vector<8x32xf32>
    %224 = arith.mulf %213, %223 : vector<8x32xf32>
    %225 = arith.addf %222, %224 : vector<8x32xf32>
    %226 = math.tanh %225 : vector<8x32xf32>
    %cst_47 = arith.constant 1.000000e+00 : f32
    %227 = vector.broadcast %cst_47 : f32 to vector<8x32xf32>
    %228 = arith.subf %227, %221 : vector<8x32xf32>
    %229 = arith.mulf %228, %226 : vector<8x32xf32>
    %230 = arith.mulf %221, %199 : vector<8x32xf32>
    %231 = arith.addf %229, %230 : vector<8x32xf32>
    %232 = vector.broadcast %c4_i32 : i32 to vector<8x1xi32>
    %233 = arith.cmpi sgt, %2, %232 : vector<8x1xi32>
    %234 = arith.extui %233 : vector<8x1xi1> to vector<8x1xi32>
    %235 = arith.sitofp %234 : vector<8x1xi32> to vector<8x1xf32>
    %236 = vector.broadcast %235 : vector<8x1xf32> to vector<8x32xf32>
    %237 = arith.mulf %231, %236 : vector<8x32xf32>
    %238 = arith.index_cast %c4_i32 : i32 to index
    %c0_48 = arith.constant 0 : index
    %c0_49 = arith.constant 0 : index
    %239 = vector.load %arg5[%238, %c0_48, %c0_49] : memref<7x8x32xf32, #tpu.memory_space<vmem>>, vector<1x8x32xf32>
    %240 = vector.shape_cast %239 : vector<1x8x32xf32> to vector<8x32xf32>
    %241 = vector.shape_cast %237 : vector<8x32xf32> to vector<1x8x32xf32>
    tpu.vector_store %arg5[%238, %c0_48, %c0_49], %241 {strides = array<i32>} : memref<7x8x32xf32, #tpu.memory_space<vmem>>, vector<1x8x32xf32>,
    %242 = vector.broadcast %235 : vector<8x1xf32> to vector<8x32xf32>
    %243 = arith.mulf %242, %231 : vector<8x32xf32>
    %cst_50 = arith.constant 1.000000e+00 : f32
    %244 = vector.broadcast %cst_50 : f32 to vector<8x1xf32>
    %245 = arith.subf %244, %235 : vector<8x1xf32>
    %246 = vector.broadcast %245 : vector<8x1xf32> to vector<8x32xf32>
    %247 = arith.mulf %246, %199 : vector<8x32xf32>
    %248 = arith.addf %243, %247 : vector<8x32xf32>
    %c5_i32 = arith.constant 5 : i32
    %249 = arith.index_cast %c5_i32 : i32 to index
    %c0_51 = arith.constant 0 : index
    %c0_52 = arith.constant 0 : index
    %250 = vector.load %arg0[%249, %c0_51, %c0_52] : memref<7x8x96xf32, #tpu.memory_space<vmem>>, vector<1x8x96xf32>
    %251 = vector.shape_cast %250 : vector<1x8x96xf32> to vector<8x96xf32>
    %cst_53 = arith.constant dense<0.000000e+00> : vector<8x96xf32>
    %252 = tpu.matmul %248, %0, %cst_53 {dimension_numbers = #tpu.dot_dimension_numbers<[1], [0], [0], [1], [0, 0, 1, 1], [], []>} : vector<8x32xf32>, vector<32x96xf32>, vector<8x96xf32> -> vector<8x96xf32>
    %253 = vector.broadcast %1 : vector<1x96xf32> to vector<8x96xf32>
    %254 = arith.addf %252, %253 : vector<8x96xf32>
    %255 = vector.extract_strided_slice %251 {offsets = [0, 0], sizes = [8, 32], strides = [1, 1]} : vector<8x96xf32> to vector<8x32xf32>
    %256 = vector.extract_strided_slice %254 {offsets = [0, 0], sizes = [8, 32], strides = [1, 1]} : vector<8x96xf32> to vector<8x32xf32>
    %257 = arith.addf %255, %256 : vector<8x32xf32>
    %258 = arith.negf %257 : vector<8x32xf32>
    %259 = math.exp %258 : vector<8x32xf32>
    %cst_54 = arith.constant 1.000000e+00 : f32
    %260 = vector.broadcast %cst_54 : f32 to vector<8x32xf32>
    %261 = arith.addf %260, %259 : vector<8x32xf32>
    %262 = arith.divf %260, %261 : vector<8x32xf32>
    %263 = vector.extract_strided_slice %251 {offsets = [0, 32], sizes = [8, 32], strides = [1, 1]} : vector<8x96xf32> to vector<8x32xf32>
    %264 = vector.extract_strided_slice %254 {offsets = [0, 32], sizes = [8, 32], strides = [1, 1]} : vector<8x96xf32> to vector<8x32xf32>
    %265 = arith.addf %263, %264 : vector<8x32xf32>
    %266 = arith.negf %265 : vector<8x32xf32>
    %267 = math.exp %266 : vector<8x32xf32>
    %cst_55 = arith.constant 1.000000e+00 : f32
    %268 = vector.broadcast %cst_55 : f32 to vector<8x32xf32>
    %269 = arith.addf %268, %267 : vector<8x32xf32>
    %270 = arith.divf %268, %269 : vector<8x32xf32>
    %271 = vector.extract_strided_slice %251 {offsets = [0, 64], sizes = [8, 32], strides = [1, 1]} : vector<8x96xf32> to vector<8x32xf32>
    %272 = vector.extract_strided_slice %254 {offsets = [0, 64], sizes = [8, 32], strides = [1, 1]} : vector<8x96xf32> to vector<8x32xf32>
    %273 = arith.mulf %262, %272 : vector<8x32xf32>
    %274 = arith.addf %271, %273 : vector<8x32xf32>
    %275 = math.tanh %274 : vector<8x32xf32>
    %cst_56 = arith.constant 1.000000e+00 : f32
    %276 = vector.broadcast %cst_56 : f32 to vector<8x32xf32>
    %277 = arith.subf %276, %270 : vector<8x32xf32>
    %278 = arith.mulf %277, %275 : vector<8x32xf32>
    %279 = arith.mulf %270, %248 : vector<8x32xf32>
    %280 = arith.addf %278, %279 : vector<8x32xf32>
    %281 = vector.broadcast %c5_i32 : i32 to vector<8x1xi32>
    %282 = arith.cmpi sgt, %2, %281 : vector<8x1xi32>
    %283 = arith.extui %282 : vector<8x1xi1> to vector<8x1xi32>
    %284 = arith.sitofp %283 : vector<8x1xi32> to vector<8x1xf32>
    %285 = vector.broadcast %284 : vector<8x1xf32> to vector<8x32xf32>
    %286 = arith.mulf %280, %285 : vector<8x32xf32>
    %287 = arith.index_cast %c5_i32 : i32 to index
    %c0_57 = arith.constant 0 : index
    %c0_58 = arith.constant 0 : index
    %288 = vector.load %arg5[%287, %c0_57, %c0_58] : memref<7x8x32xf32, #tpu.memory_space<vmem>>, vector<1x8x32xf32>
    %289 = vector.shape_cast %288 : vector<1x8x32xf32> to vector<8x32xf32>
    %290 = vector.shape_cast %286 : vector<8x32xf32> to vector<1x8x32xf32>
    tpu.vector_store %arg5[%287, %c0_57, %c0_58], %290 {strides = array<i32>} : memref<7x8x32xf32, #tpu.memory_space<vmem>>, vector<1x8x32xf32>,
    %291 = vector.broadcast %284 : vector<8x1xf32> to vector<8x32xf32>
    %292 = arith.mulf %291, %280 : vector<8x32xf32>
    %cst_59 = arith.constant 1.000000e+00 : f32
    %293 = vector.broadcast %cst_59 : f32 to vector<8x1xf32>
    %294 = arith.subf %293, %284 : vector<8x1xf32>
    %295 = vector.broadcast %294 : vector<8x1xf32> to vector<8x32xf32>
    %296 = arith.mulf %295, %248 : vector<8x32xf32>
    %297 = arith.addf %292, %296 : vector<8x32xf32>
    %c6_i32 = arith.constant 6 : i32
    %298 = arith.index_cast %c6_i32 : i32 to index
    %c0_60 = arith.constant 0 : index
    %c0_61 = arith.constant 0 : index
    %299 = vector.load %arg0[%298, %c0_60, %c0_61] : memref<7x8x96xf32, #tpu.memory_space<vmem>>, vector<1x8x96xf32>
    %300 = vector.shape_cast %299 : vector<1x8x96xf32> to vector<8x96xf32>
    %cst_62 = arith.constant dense<0.000000e+00> : vector<8x96xf32>
    %301 = tpu.matmul %297, %0, %cst_62 {dimension_numbers = #tpu.dot_dimension_numbers<[1], [0], [0], [1], [0, 0, 1, 1], [], []>} : vector<8x32xf32>, vector<32x96xf32>, vector<8x96xf32> -> vector<8x96xf32>
    %302 = vector.broadcast %1 : vector<1x96xf32> to vector<8x96xf32>
    %303 = arith.addf %301, %302 : vector<8x96xf32>
    %304 = vector.extract_strided_slice %300 {offsets = [0, 0], sizes = [8, 32], strides = [1, 1]} : vector<8x96xf32> to vector<8x32xf32>
    %305 = vector.extract_strided_slice %303 {offsets = [0, 0], sizes = [8, 32], strides = [1, 1]} : vector<8x96xf32> to vector<8x32xf32>
    %306 = arith.addf %304, %305 : vector<8x32xf32>
    %307 = arith.negf %306 : vector<8x32xf32>
    %308 = math.exp %307 : vector<8x32xf32>
    %cst_63 = arith.constant 1.000000e+00 : f32
    %309 = vector.broadcast %cst_63 : f32 to vector<8x32xf32>
    %310 = arith.addf %309, %308 : vector<8x32xf32>
    %311 = arith.divf %309, %310 : vector<8x32xf32>
    %312 = vector.extract_strided_slice %300 {offsets = [0, 32], sizes = [8, 32], strides = [1, 1]} : vector<8x96xf32> to vector<8x32xf32>
    %313 = vector.extract_strided_slice %303 {offsets = [0, 32], sizes = [8, 32], strides = [1, 1]} : vector<8x96xf32> to vector<8x32xf32>
    %314 = arith.addf %312, %313 : vector<8x32xf32>
    %315 = arith.negf %314 : vector<8x32xf32>
    %316 = math.exp %315 : vector<8x32xf32>
    %cst_64 = arith.constant 1.000000e+00 : f32
    %317 = vector.broadcast %cst_64 : f32 to vector<8x32xf32>
    %318 = arith.addf %317, %316 : vector<8x32xf32>
    %319 = arith.divf %317, %318 : vector<8x32xf32>
    %320 = vector.extract_strided_slice %300 {offsets = [0, 64], sizes = [8, 32], strides = [1, 1]} : vector<8x96xf32> to vector<8x32xf32>
    %321 = vector.extract_strided_slice %303 {offsets = [0, 64], sizes = [8, 32], strides = [1, 1]} : vector<8x96xf32> to vector<8x32xf32>
    %322 = arith.mulf %311, %321 : vector<8x32xf32>
    %323 = arith.addf %320, %322 : vector<8x32xf32>
    %324 = math.tanh %323 : vector<8x32xf32>
    %cst_65 = arith.constant 1.000000e+00 : f32
    %325 = vector.broadcast %cst_65 : f32 to vector<8x32xf32>
    %326 = arith.subf %325, %319 : vector<8x32xf32>
    %327 = arith.mulf %326, %324 : vector<8x32xf32>
    %328 = arith.mulf %319, %297 : vector<8x32xf32>
    %329 = arith.addf %327, %328 : vector<8x32xf32>
    %330 = vector.broadcast %c6_i32 : i32 to vector<8x1xi32>
    %331 = arith.cmpi sgt, %2, %330 : vector<8x1xi32>
    %332 = arith.extui %331 : vector<8x1xi1> to vector<8x1xi32>
    %333 = arith.sitofp %332 : vector<8x1xi32> to vector<8x1xf32>
    %334 = vector.broadcast %333 : vector<8x1xf32> to vector<8x32xf32>
    %335 = arith.mulf %329, %334 : vector<8x32xf32>
    %336 = arith.index_cast %c6_i32 : i32 to index
    %c0_66 = arith.constant 0 : index
    %c0_67 = arith.constant 0 : index
    %337 = vector.load %arg5[%336, %c0_66, %c0_67] : memref<7x8x32xf32, #tpu.memory_space<vmem>>, vector<1x8x32xf32>
    %338 = vector.shape_cast %337 : vector<1x8x32xf32> to vector<8x32xf32>
    %339 = vector.shape_cast %335 : vector<8x32xf32> to vector<1x8x32xf32>
    tpu.vector_store %arg5[%336, %c0_66, %c0_67], %339 {strides = array<i32>} : memref<7x8x32xf32, #tpu.memory_space<vmem>>, vector<1x8x32xf32>,
    %340 = vector.broadcast %333 : vector<8x1xf32> to vector<8x32xf32>
    %341 = arith.mulf %340, %329 : vector<8x32xf32>
    %cst_68 = arith.constant 1.000000e+00 : f32
    %342 = vector.broadcast %cst_68 : f32 to vector<8x1xf32>
    %343 = arith.subf %342, %333 : vector<8x1xf32>
    %344 = vector.broadcast %343 : vector<8x1xf32> to vector<8x32xf32>
    %345 = arith.mulf %344, %297 : vector<8x32xf32>
    %346 = arith.addf %341, %345 : vector<8x32xf32>
    %c7_i32 = arith.constant 7 : i32
    %c0_69 = arith.constant 0 : index
    %c0_70 = arith.constant 0 : index
    %347 = vector.load %arg6[%c0_69, %c0_70] : memref<8x32xf32, #tpu.memory_space<vmem>>, vector<8x32xf32>
    tpu.vector_store %arg6[%c0_69, %c0_70], %346 {strides = array<i32>} : memref<8x32xf32, #tpu.memory_space<vmem>>, vector<8x32xf32>,
    return
  }
}

module attributes {stable_mosaic.version = 11 : i64} {
  func.func @_fc_logsoftmax_kernel(%arg0: i32, %arg1: memref<56x32xf32, #tpu.memory_space<vmem>>, %arg2: memref<32x60xf32, #tpu.memory_space<vmem>>, %arg3: memref<1x60xf32, #tpu.memory_space<vmem>>, %arg4: memref<56x60xf32, #tpu.memory_space<vmem>>) attributes {dimension_semantics = [#tpu.dimension_semantics<parallel>], iteration_bounds = array<i64: 1>, scalar_prefetch = 0 : i64, scratch_operands = 0 : i64, tpu.core_type = #tpu.core_type<tc>, window_params = [{transform_indices = @transform_0, window_bounds = array<i64: 56, 32>}, {pipeline_mode = #tpu.pipeline_mode<synchronous>, transform_indices = @transform_1, window_bounds = array<i64: 32, 60>}, {pipeline_mode = #tpu.pipeline_mode<synchronous>, transform_indices = @transform_2, window_bounds = array<i64: 1, 60>}, {transform_indices = @transform_3, window_bounds = array<i64: 56, 60>}]} {
    %c0 = arith.constant 0 : index
    %c0_0 = arith.constant 0 : index
    %0 = vector.load %arg1[%c0, %c0_0] : memref<56x32xf32, #tpu.memory_space<vmem>>, vector<56x32xf32>
    %c0_1 = arith.constant 0 : index
    %c0_2 = arith.constant 0 : index
    %1 = vector.load %arg2[%c0_1, %c0_2] : memref<32x60xf32, #tpu.memory_space<vmem>>, vector<32x60xf32>
    %cst = arith.constant dense<0.000000e+00> : vector<56x60xf32>
    %2 = tpu.matmul %0, %1, %cst {dimension_numbers = #tpu.dot_dimension_numbers<[1], [0], [0], [1], [0, 0, 1, 1], [], []>} : vector<56x32xf32>, vector<32x60xf32>, vector<56x60xf32> -> vector<56x60xf32>
    %c0_3 = arith.constant 0 : index
    %c0_4 = arith.constant 0 : index
    %3 = vector.load %arg3[%c0_3, %c0_4] : memref<1x60xf32, #tpu.memory_space<vmem>>, vector<1x60xf32>
    %4 = vector.broadcast %3 : vector<1x60xf32> to vector<56x60xf32>
    %5 = arith.addf %2, %4 : vector<56x60xf32>
    %cst_5 = arith.constant dense<0xFF800000> : vector<56xf32>
    %6 = vector.multi_reduction <maximumf>, %5, %cst_5 [1] : vector<56x60xf32> to vector<56xf32>
    %7 = vector.shape_cast %6 : vector<56xf32> to vector<56x1xf32>
    %8 = vector.broadcast %7 : vector<56x1xf32> to vector<56x60xf32>
    %9 = arith.subf %5, %8 : vector<56x60xf32>
    %10 = math.exp %9 : vector<56x60xf32>
    %cst_6 = arith.constant dense<0.000000e+00> : vector<56xf32>
    %11 = vector.multi_reduction <add>, %10, %cst_6 [1] : vector<56x60xf32> to vector<56xf32>
    %12 = vector.shape_cast %11 : vector<56xf32> to vector<56x1xf32>
    %13 = math.log %12 : vector<56x1xf32>
    %14 = arith.addf %7, %13 : vector<56x1xf32>
    %15 = vector.broadcast %14 : vector<56x1xf32> to vector<56x60xf32>
    %16 = arith.subf %5, %15 : vector<56x60xf32>
    %c0_7 = arith.constant 0 : index
    %c0_8 = arith.constant 0 : index
    %17 = vector.load %arg4[%c0_7, %c0_8] : memref<56x60xf32, #tpu.memory_space<vmem>>, vector<56x60xf32>
    tpu.vector_store %arg4[%c0_7, %c0_8], %16 {strides = array<i32>} : memref<56x60xf32, #tpu.memory_space<vmem>>, vector<56x60xf32>,
    return
  }
  func.func @transform_0(%arg0: i32) -> (i32, i32) {
    %c0_i32 = arith.constant 0 : i32
    %c0_i32_0 = arith.constant 0 : i32
    return %arg0, %c0_i32 : i32, i32
  }
  func.func @transform_1(%arg0: i32) -> (i32, i32) {
    %c0_i32 = arith.constant 0 : i32
    %c0_i32_0 = arith.constant 0 : i32
    %c0_i32_1 = arith.constant 0 : i32
    return %c0_i32, %c0_i32_0 : i32, i32
  }
  func.func @transform_2(%arg0: i32) -> (i32, i32) {
    %c0_i32 = arith.constant 0 : i32
    %c0_i32_0 = arith.constant 0 : i32
    %c0_i32_1 = arith.constant 0 : i32
    return %c0_i32, %c0_i32_0 : i32, i32
  }
  func.func @transform_3(%arg0: i32) -> (i32, i32) {
    %c0_i32 = arith.constant 0 : i32
    %c0_i32_0 = arith.constant 0 : i32
    return %arg0, %c0_i32 : i32, i32
  }
}

</mosaic_0001>

<llo_original>
// kernel: plain_seq2seq_forward.7
$region0: #{plain_seq2seq_forward.7}
  #allocation0 [shape = 'u32[]', space=smem, size = 0x4, offset = 0x4, fixed_abs, tag = 'smem constant byte address 0x4 - core index']
  #allocation1 [shape = 'u32[144,128]{1,0:T(1,128)}', space=vmem, size = 0x12000, scoped, tag = 'internal scratch']
  %s0 = inlined_call_operand.vmem [shape: f32[56,32], index: 0, kind: input, shape index: {}]
  %s1 = inlined_call_operand.vmem [shape: f32[32,96], index: 1, kind: input, shape index: {}]
  %s2 = inlined_call_operand.vmem [shape: f32[1,96], index: 2, kind: input, shape index: {}]
  %s3 = inlined_call_operand.vmem [shape: f32[56,96], index: 3, kind: output, shape index: {}]
  %s4 = sld [smem:[#allocation0]]
  $region22: #{plain_seq2seq_forward.7} parent=0
    _
  %s6 = ssub.s32 1, %s4
  %s7 = scalar_select 0, %s6, %s4
  // Predicated region
  $region2: #{plain_seq2seq_forward.7} parent=0 // pred_check
    _
  $region3: #{plain_seq2seq_forward.7} parent=0 // pred_check_branch
    %9 = sbr.rel (0) target = $region5
  $region4: #{plain_seq2seq_forward.7} parent=0 // pred_region
    _
  $region5: #{plain_seq2seq_forward.7} parent=0 // pred_fallthru
    _
  // Predicated region
  $region6: #{plain_seq2seq_forward.7} parent=0 // pred_check
    _
  $region7: #{plain_seq2seq_forward.7} parent=0 // pred_check_branch
    %11 = sbr.rel (0) target = $region9
  $region8: #{plain_seq2seq_forward.7} parent=0 // pred_region
    _
  $region9: #{plain_seq2seq_forward.7} parent=0 // pred_fallthru
    _
  // Predicated region
  $region10: #{plain_seq2seq_forward.7} parent=0 // pred_check
    _
  $region11: #{plain_seq2seq_forward.7} parent=0 // pred_check_branch
    %13 = sbr.rel (0) target = $region13
  $region12: #{plain_seq2seq_forward.7} parent=0 // pred_region
    _
  $region13: #{plain_seq2seq_forward.7} parent=0 // pred_fallthru
    _
  %v14 = vld [vmem:[%s0] sm:$0xff]
  %v15 = vld [vmem:[%s0 + $0x8] sm:$0xff]
  %v16 = vld [vmem:[%s0 + $0x10] sm:$0xff]
  %v17 = vld [vmem:[%s0 + $0x18] sm:$0xff]
  %v18 = vld [vmem:[%s0 + $0x20] sm:$0xff]
  %v19 = vld [vmem:[%s0 + $0x28] sm:$0xff]
  %v20 = vld [vmem:[%s0 + $0x30] sm:$0xff]
  %v21 = vld [vmem:[%s1] sm:$0xff]
  %v22 = vld [vmem:[%s1 + $0x8] sm:$0xff]
  %v23 = vld [vmem:[%s1 + $0x10] sm:$0xff]
  %v24 = vld [vmem:[%s1 + $0x18] sm:$0xff]
  %v25 = vld [vmem:[%s2] sm:$0x1]
  %v27 = vlaneseq
  %v28 = vshrl.u32 %v27, 7
  %v29 = vsub.s32 0, %v28
  %v30 = vrot.slane %v25, %v29
  %vm32 = vcmask 261120
  %v34 = vsel %vm32, %v14, 0
  %v37 = vsel %vm32, %v15, 0
  %v40 = vsel %vm32, %v16, 0
  %v43 = vsel %vm32, %v17, 0
  %v46 = vsel %vm32, %v18, 0
  %v49 = vsel %vm32, %v19, 0
  %v52 = vsel %vm32, %v20, 0
  %54 = vmatprep.subr.mxu0 0.0
  %55 = vmatpush1.msra.mxu0 0.0
  %56 = vmatprep.subr.mxu0 0.0
  %57 = vmatpush1.msra.mxu0 0.0
  %58 = vmatprep.subr.mxu0 0.0
  %59 = vmatpush1.msra.mxu0 0.0
  %60 = vmatprep.subr.mxu0 0.0
  %61 = vmatpush1.msra.mxu0 0.0
  %62 = vmatprep.subr.mxu0 0.0
  %63 = vmatpush1.msra.mxu0 0.0
  %64 = vmatprep.subr.mxu0 0.0
  %65 = vmatpush1.msra.mxu0 0.0
  %66 = vmatprep.subr.mxu0 0.0
  %67 = vmatpush1.msra.mxu0 0.0
  %68 = vmatprep.subr.mxu0 0.0
  %69 = vmatpush1.msra.mxu0 0.0
  %70 = vmatprep.subr.mxu0 0.0
  %71 = vmatpush1.msra.mxu0 0.0
  %72 = vmatprep.subr.mxu0 0.0
  %73 = vmatpush1.msra.mxu0 0.0
  %74 = vmatprep.subr.mxu0 0.0
  %75 = vmatpush1.msra.mxu0 0.0
  %76 = vmatprep.subr.mxu0 0.0
  %77 = vmatpush1.msra.mxu0 0.0
  %78 = vmatprep.subr.mxu0 0.0
  %79 = vmatpush1.msra.mxu0 %v24
  %80 = vmatprep.subr.mxu0 0.0
  %81 = vmatpush1.msra.mxu0 %v23
  %82 = vmatprep.subr.mxu0 0.0
  %83 = vmatpush1.msra.mxu0 %v22
  %84 = vmatprep.subr.mxu0 0.0
  %85 = vmatpush1.msra.mxu0 %v21
  %86 = vmatprep.subr.mxu0 0.0
  %87 = vmatpush2.msra.mxu0 0.0
  %88 = vmatprep.subr.mxu0 0.0
  %89 = vmatpush2.msra.mxu0 0.0
  %90 = vmatprep.subr.mxu0 0.0
  %91 = vmatpush2.msra.mxu0 0.0
  %92 = vmatprep.subr.mxu0 0.0
  %93 = vmatpush2.msra.mxu0 0.0
  %94 = vmatprep.subr.mxu0 0.0
  %95 = vmatpush2.msra.mxu0 0.0
  %96 = vmatprep.subr.mxu0 0.0
  %97 = vmatpush2.msra.mxu0 0.0
  %98 = vmatprep.subr.mxu0 0.0
  %99 = vmatpush2.msra.mxu0 0.0
  %100 = vmatprep.subr.mxu0 0.0
  %101 = vmatpush2.msra.mxu0 0.0
  %102 = vmatprep.subr.mxu0 0.0
  %103 = vmatpush2.msra.mxu0 0.0
  %104 = vmatprep.subr.mxu0 0.0
  %105 = vmatpush2.msra.mxu0 0.0
  %106 = vmatprep.subr.mxu0 0.0
  %107 = vmatpush2.msra.mxu0 0.0
  %108 = vmatprep.subr.mxu0 0.0
  %109 = vmatpush2.msra.mxu0 0.0
  %110 = vmatprep.subr.mxu0 0.0
  %111 = vmatpush2.msra.mxu0 0.0
  %112 = vmatprep.subr.mxu0 0.0
  %113 = vmatpush2.msra.mxu0 0.0
  %114 = vmatprep.subr.mxu0 0.0
  %115 = vmatpush2.msra.mxu0 0.0
  %116 = vmatprep.subr.mxu0 0.0
  %117 = vmatpush2.msra.mxu0 0.0
  %118 = vmatprep.mubr.f32.mxu0 0.0
  %119 = vmatmul.mubr.f32.gmra.mxu0 %v34
  %v120 = vpop.f32.mrf.mxu0
  %v121 = vadd.f32 %v30, %v120
  %v122 = vpop.f32.mrf.mxu0
  %123 = vmatprep.mubr.f32.mxu0 0.0
  %124 = vmatmul.mubr.f32.gmra.mxu0 %v37
  %v125 = vpop.f32.mrf.mxu0
  %v126 = vadd.f32 %v30, %v125
  %v127 = vpop.f32.mrf.mxu0
  %128 = vmatprep.mubr.f32.mxu0 0.0
  %129 = vmatmul.mubr.f32.gmra.mxu0 %v40
  %v130 = vpop.f32.mrf.mxu0
  %v131 = vadd.f32 %v30, %v130
  %v132 = vpop.f32.mrf.mxu0
  %133 = vmatprep.mubr.f32.mxu0 0.0
  %134 = vmatmul.mubr.f32.gmra.mxu0 %v43
  %v135 = vpop.f32.mrf.mxu0
  %v136 = vadd.f32 %v30, %v135
  %v137 = vpop.f32.mrf.mxu0
  %138 = vmatprep.mubr.f32.mxu0 0.0
  %139 = vmatmul.mubr.f32.gmra.mxu0 %v46
  %v140 = vpop.f32.mrf.mxu0
  %v141 = vadd.f32 %v30, %v140
  %v142 = vpop.f32.mrf.mxu0
  %143 = vmatprep.mubr.f32.mxu0 0.0
  %144 = vmatmul.mubr.f32.gmra.mxu0 %v49
  %v145 = vpop.f32.mrf.mxu0
  %v146 = vadd.f32 %v30, %v145
  %v147 = vpop.f32.mrf.mxu0
  %148 = vmatprep.mubr.f32.mxu0 0.0
  %149 = vmatmul.mubr.f32.gmra.mxu0 %v52
  %v150 = vpop.f32.mrf.mxu0
  %v151 = vadd.f32 %v30, %v150
  %v152 = vpop.f32.mrf.mxu0
  %153 = vdwg.mxu0
  %vm154 = vcmask 785408
  %155 = vst.msk [vmem:[%s3] sm:$0xff] %vm154, %v121
  %156 = vst.msk [vmem:[%s3 + $0x8] sm:$0xff] %vm154, %v126
  %157 = vst.msk [vmem:[%s3 + $0x10] sm:$0xff] %vm154, %v131
  %158 = vst.msk [vmem:[%s3 + $0x18] sm:$0xff] %vm154, %v136
  %159 = vst.msk [vmem:[%s3 + $0x20] sm:$0xff] %vm154, %v141
  %160 = vst.msk [vmem:[%s3 + $0x28] sm:$0xff] %vm154, %v146
  %161 = vst.msk [vmem:[%s3 + $0x30] sm:$0xff] %vm154, %v151
  // Predicated region
  $region14: #{plain_seq2seq_forward.7} parent=0 // pred_check
    _
  $region15: #{plain_seq2seq_forward.7} parent=0 // pred_check_branch
    %163 = sbr.rel (0) target = $region17
  $region16: #{plain_seq2seq_forward.7} parent=0 // pred_region
    _
  $region17: #{plain_seq2seq_forward.7} parent=0 // pred_fallthru
    _
  // Predicated region
  $region18: #{plain_seq2seq_forward.7} parent=0 // pred_check
    _
  $region19: #{plain_seq2seq_forward.7} parent=0 // pred_check_branch
    %165 = sbr.rel (0) target = $region21
  $region20: #{plain_seq2seq_forward.7} parent=0 // pred_region
    _
  $region21: #{plain_seq2seq_forward.7} parent=0 // pred_fallthru
    _

// kernel: plain_seq2seq_forward.5
$region0: #{plain_seq2seq_forward.5}
  #allocation0 [shape = 'u32[]', space=smem, size = 0x4, offset = 0x4, fixed_abs, tag = 'smem constant byte address 0x4 - core index']
  #allocation1 [shape = 'u32[144,128]{1,0:T(1,128)}', space=vmem, size = 0x12000, scoped, tag = 'internal scratch']
  %s0 = inlined_call_operand.vmem [shape: f32[64,32], index: 0, kind: input, shape index: {}]
  %s1 = inlined_call_operand.vmem [shape: f32[32,96], index: 1, kind: input, shape index: {}]
  %s2 = inlined_call_operand.vmem [shape: f32[1,96], index: 2, kind: input, shape index: {}]
  %s3 = inlined_call_operand.vmem [shape: f32[64,96], index: 3, kind: output, shape index: {}]
  %s4 = sld [smem:[#allocation0]]
  $region22: #{plain_seq2seq_forward.5} parent=0
    _
  %s6 = ssub.s32 1, %s4
  %s7 = scalar_select 0, %s6, %s4
  // Predicated region
  $region2: #{plain_seq2seq_forward.5} parent=0 // pred_check
    _
  $region3: #{plain_seq2seq_forward.5} parent=0 // pred_check_branch
    %9 = sbr.rel (0) target = $region5
  $region4: #{plain_seq2seq_forward.5} parent=0 // pred_region
    _
  $region5: #{plain_seq2seq_forward.5} parent=0 // pred_fallthru
    _
  // Predicated region
  $region6: #{plain_seq2seq_forward.5} parent=0 // pred_check
    _
  $region7: #{plain_seq2seq_forward.5} parent=0 // pred_check_branch
    %11 = sbr.rel (0) target = $region9
  $region8: #{plain_seq2seq_forward.5} parent=0 // pred_region
    _
  $region9: #{plain_seq2seq_forward.5} parent=0 // pred_fallthru
    _
  // Predicated region
  $region10: #{plain_seq2seq_forward.5} parent=0 // pred_check
    _
  $region11: #{plain_seq2seq_forward.5} parent=0 // pred_check_branch
    %13 = sbr.rel (0) target = $region13
  $region12: #{plain_seq2seq_forward.5} parent=0 // pred_region
    _
  $region13: #{plain_seq2seq_forward.5} parent=0 // pred_fallthru
    _
  %v14 = vld [vmem:[%s0] sm:$0xff]
  %v15 = vld [vmem:[%s0 + $0x8] sm:$0xff]
  %v16 = vld [vmem:[%s0 + $0x10] sm:$0xff]
  %v17 = vld [vmem:[%s0 + $0x18] sm:$0xff]
  %v18 = vld [vmem:[%s0 + $0x20] sm:$0xff]
  %v19 = vld [vmem:[%s0 + $0x28] sm:$0xff]
  %v20 = vld [vmem:[%s0 + $0x30] sm:$0xff]
  %v21 = vld [vmem:[%s0 + $0x38] sm:$0xff]
  %v22 = vld [vmem:[%s1] sm:$0xff]
  %v23 = vld [vmem:[%s1 + $0x8] sm:$0xff]
  %v24 = vld [vmem:[%s1 + $0x10] sm:$0xff]
  %v25 = vld [vmem:[%s1 + $0x18] sm:$0xff]
  %v26 = vld [vmem:[%s2] sm:$0x1]
  %v28 = vlaneseq
  %v29 = vshrl.u32 %v28, 7
  %v30 = vsub.s32 0, %v29
  %v31 = vrot.slane %v26, %v30
  %vm33 = vcmask 261120
  %v35 = vsel %vm33, %v14, 0
  %v38 = vsel %vm33, %v15, 0
  %v41 = vsel %vm33, %v16, 0
  %v44 = vsel %vm33, %v17, 0
  %v47 = vsel %vm33, %v18, 0
  %v50 = vsel %vm33, %v19, 0
  %v53 = vsel %vm33, %v20, 0
  %v56 = vsel %vm33, %v21, 0
  %58 = vmatprep.subr.mxu0 0.0
  %59 = vmatpush1.msra.mxu0 0.0
  %60 = vmatprep.subr.mxu0 0.0
  %61 = vmatpush1.msra.mxu0 0.0
  %62 = vmatprep.subr.mxu0 0.0
  %63 = vmatpush1.msra.mxu0 0.0
  %64 = vmatprep.subr.mxu0 0.0
  %65 = vmatpush1.msra.mxu0 0.0
  %66 = vmatprep.subr.mxu0 0.0
  %67 = vmatpush1.msra.mxu0 0.0
  %68 = vmatprep.subr.mxu0 0.0
  %69 = vmatpush1.msra.mxu0 0.0
  %70 = vmatprep.subr.mxu0 0.0
  %71 = vmatpush1.msra.mxu0 0.0
  %72 = vmatprep.subr.mxu0 0.0
  %73 = vmatpush1.msra.mxu0 0.0
  %74 = vmatprep.subr.mxu0 0.0
  %75 = vmatpush1.msra.mxu0 0.0
  %76 = vmatprep.subr.mxu0 0.0
  %77 = vmatpush1.msra.mxu0 0.0
  %78 = vmatprep.subr.mxu0 0.0
  %79 = vmatpush1.msra.mxu0 0.0
  %80 = vmatprep.subr.mxu0 0.0
  %81 = vmatpush1.msra.mxu0 0.0
  %82 = vmatprep.subr.mxu0 0.0
  %83 = vmatpush1.msra.mxu0 %v25
  %84 = vmatprep.subr.mxu0 0.0
  %85 = vmatpush1.msra.mxu0 %v24
  %86 = vmatprep.subr.mxu0 0.0
  %87 = vmatpush1.msra.mxu0 %v23
  %88 = vmatprep.subr.mxu0 0.0
  %89 = vmatpush1.msra.mxu0 %v22
  %90 = vmatprep.subr.mxu0 0.0
  %91 = vmatpush2.msra.mxu0 0.0
  %92 = vmatprep.subr.mxu0 0.0
  %93 = vmatpush2.msra.mxu0 0.0
  %94 = vmatprep.subr.mxu0 0.0
  %95 = vmatpush2.msra.mxu0 0.0
  %96 = vmatprep.subr.mxu0 0.0
  %97 = vmatpush2.msra.mxu0 0.0
  %98 = vmatprep.subr.mxu0 0.0
  %99 = vmatpush2.msra.mxu0 0.0
  %100 = vmatprep.subr.mxu0 0.0
  %101 = vmatpush2.msra.mxu0 0.0
  %102 = vmatprep.subr.mxu0 0.0
  %103 = vmatpush2.msra.mxu0 0.0
  %104 = vmatprep.subr.mxu0 0.0
  %105 = vmatpush2.msra.mxu0 0.0
  %106 = vmatprep.subr.mxu0 0.0
  %107 = vmatpush2.msra.mxu0 0.0
  %108 = vmatprep.subr.mxu0 0.0
  %109 = vmatpush2.msra.mxu0 0.0
  %110 = vmatprep.subr.mxu0 0.0
  %111 = vmatpush2.msra.mxu0 0.0
  %112 = vmatprep.subr.mxu0 0.0
  %113 = vmatpush2.msra.mxu0 0.0
  %114 = vmatprep.subr.mxu0 0.0
  %115 = vmatpush2.msra.mxu0 0.0
  %116 = vmatprep.subr.mxu0 0.0
  %117 = vmatpush2.msra.mxu0 0.0
  %118 = vmatprep.subr.mxu0 0.0
  %119 = vmatpush2.msra.mxu0 0.0
  %120 = vmatprep.subr.mxu0 0.0
  %121 = vmatpush2.msra.mxu0 0.0
  %122 = vmatprep.mubr.f32.mxu0 0.0
  %123 = vmatmul.mubr.f32.gmra.mxu0 %v35
  %v124 = vpop.f32.mrf.mxu0
  %v125 = vadd.f32 %v31, %v124
  %v126 = vpop.f32.mrf.mxu0
  %127 = vmatprep.mubr.f32.mxu0 0.0
  %128 = vmatmul.mubr.f32.gmra.mxu0 %v38
  %v129 = vpop.f32.mrf.mxu0
  %v130 = vadd.f32 %v31, %v129
  %v131 = vpop.f32.mrf.mxu0
  %132 = vmatprep.mubr.f32.mxu0 0.0
  %133 = vmatmul.mubr.f32.gmra.mxu0 %v41
  %v134 = vpop.f32.mrf.mxu0
  %v135 = vadd.f32 %v31, %v134
  %v136 = vpop.f32.mrf.mxu0
  %137 = vmatprep.mubr.f32.mxu0 0.0
  %138 = vmatmul.mubr.f32.gmra.mxu0 %v44
  %v139 = vpop.f32.mrf.mxu0
  %v140 = vadd.f32 %v31, %v139
  %v141 = vpop.f32.mrf.mxu0
  %142 = vmatprep.mubr.f32.mxu0 0.0
  %143 = vmatmul.mubr.f32.gmra.mxu0 %v47
  %v144 = vpop.f32.mrf.mxu0
  %v145 = vadd.f32 %v31, %v144
  %v146 = vpop.f32.mrf.mxu0
  %147 = vmatprep.mubr.f32.mxu0 0.0
  %148 = vmatmul.mubr.f32.gmra.mxu0 %v50
  %v149 = vpop.f32.mrf.mxu0
  %v150 = vadd.f32 %v31, %v149
  %v151 = vpop.f32.mrf.mxu0
  %152 = vmatprep.mubr.f32.mxu0 0.0
  %153 = vmatmul.mubr.f32.gmra.mxu0 %v53
  %v154 = vpop.f32.mrf.mxu0
  %v155 = vadd.f32 %v31, %v154
  %v156 = vpop.f32.mrf.mxu0
  %157 = vmatprep.mubr.f32.mxu0 0.0
  %158 = vmatmul.mubr.f32.gmra.mxu0 %v56
  %v159 = vpop.f32.mrf.mxu0
  %v160 = vadd.f32 %v31, %v159
  %v161 = vpop.f32.mrf.mxu0
  %162 = vdwg.mxu0
  %vm163 = vcmask 785408
  %164 = vst.msk [vmem:[%s3] sm:$0xff] %vm163, %v125
  %165 = vst.msk [vmem:[%s3 + $0x8] sm:$0xff] %vm163, %v130
  %166 = vst.msk [vmem:[%s3 + $0x10] sm:$0xff] %vm163, %v135
  %167 = vst.msk [vmem:[%s3 + $0x18] sm:$0xff] %vm163, %v140
  %168 = vst.msk [vmem:[%s3 + $0x20] sm:$0xff] %vm163, %v145
  %169 = vst.msk [vmem:[%s3 + $0x28] sm:$0xff] %vm163, %v150
  %170 = vst.msk [vmem:[%s3 + $0x30] sm:$0xff] %vm163, %v155
  %171 = vst.msk [vmem:[%s3 + $0x38] sm:$0xff] %vm163, %v160
  // Predicated region
  $region14: #{plain_seq2seq_forward.5} parent=0 // pred_check
    _
  $region15: #{plain_seq2seq_forward.5} parent=0 // pred_check_branch
    %173 = sbr.rel (0) target = $region17
  $region16: #{plain_seq2seq_forward.5} parent=0 // pred_region
    _
  $region17: #{plain_seq2seq_forward.5} parent=0 // pred_fallthru
    _
  // Predicated region
  $region18: #{plain_seq2seq_forward.5} parent=0 // pred_check
    _
  $region19: #{plain_seq2seq_forward.5} parent=0 // pred_check_branch
    %175 = sbr.rel (0) target = $region21
  $region20: #{plain_seq2seq_forward.5} parent=0 // pred_region
    _
  $region21: #{plain_seq2seq_forward.5} parent=0 // pred_fallthru
    _

// kernel: plain_seq2seq_forward.8
$region0: #{plain_seq2seq_forward.8}
  #allocation0 [shape = 'u32[]', space=smem, size = 0x4, offset = 0x4, fixed_abs, tag = 'smem constant byte address 0x4 - core index']
  #allocation1 [shape = 'u32[144,128]{1,0:T(1,128)}', space=vmem, size = 0x12000, scoped, tag = 'internal scratch']
  %s0 = inlined_call_operand.vmem [shape: f32[7,8,96], index: 0, kind: input, shape index: {}]
  %s1 = inlined_call_operand.vmem [shape: s32[8,1], index: 1, kind: input, shape index: {}]
  %s2 = inlined_call_operand.vmem [shape: f32[8,32], index: 2, kind: input, shape index: {}]
  %s3 = inlined_call_operand.vmem [shape: f32[32,96], index: 3, kind: input, shape index: {}]
  %s4 = inlined_call_operand.vmem [shape: f32[1,96], index: 4, kind: input, shape index: {}]
  %s5 = inlined_call_operand.vmem [shape: f32[7,8,32], index: 5, kind: output, shape index: {0}]
  %s6 = inlined_call_operand.hbm [shape: f32[8,32], index: 6, kind: output, shape index: {1}]
  %7 = xla_tuple %s5, %s6
  %s8 = sld [smem:[#allocation0]]
  $region38: #{plain_seq2seq_forward.8} parent=0
    _
  %s10 = ssub.s32 1, %s8
  %s11 = scalar_select 0, %s10, %s8
  $region1: #{plain_seq2seq_forward.8} parent=0
    #allocation2 [shape = 'u8[4096]{0}', space=vmem, size = 0x1000, scoped, tag = 'output window, operand 1, single buffered']
    #allocation3 [shape = 's32[1]{0}', space=sflag, size = 0x4, scoped, tag = 'scoped memory for plain_seq2seq_forward.8']
    %12 = vsyncpa [#allocation3], 0
    // Predicated region
    $region2: #{plain_seq2seq_forward.8} parent=1 // pred_check
      _
    $region3: #{plain_seq2seq_forward.8} parent=1 // pred_check_branch
      %14 = sbr.rel (0) target = $region5
    $region4: #{plain_seq2seq_forward.8} parent=1 // pred_region
      _
    $region5: #{plain_seq2seq_forward.8} parent=1 // pred_fallthru
      _
    // Predicated region
    $region6: #{plain_seq2seq_forward.8} parent=1 // pred_check
      _
    $region7: #{plain_seq2seq_forward.8} parent=1 // pred_check_branch
      %16 = sbr.rel (0) target = $region9
    $region8: #{plain_seq2seq_forward.8} parent=1 // pred_region
      _
    $region9: #{plain_seq2seq_forward.8} parent=1 // pred_fallthru
      _
    // Predicated region
    $region10: #{plain_seq2seq_forward.8} parent=1 // pred_check
      _
    $region11: #{plain_seq2seq_forward.8} parent=1 // pred_check_branch
      %18 = sbr.rel (0) target = $region13
    $region12: #{plain_seq2seq_forward.8} parent=1 // pred_region
      _
    $region13: #{plain_seq2seq_forward.8} parent=1 // pred_fallthru
      _
    // Predicated region
    $region14: #{plain_seq2seq_forward.8} parent=1 // pred_check
      _
    $region15: #{plain_seq2seq_forward.8} parent=1 // pred_check_branch
      %20 = sbr.rel (0) target = $region17
    $region16: #{plain_seq2seq_forward.8} parent=1 // pred_region
      _
    $region17: #{plain_seq2seq_forward.8} parent=1 // pred_fallthru
      _
    // Predicated region
    $region18: #{plain_seq2seq_forward.8} parent=1 // pred_check
      _
    $region19: #{plain_seq2seq_forward.8} parent=1 // pred_check_branch
      %22 = sbr.rel (0) target = $region21
    $region20: #{plain_seq2seq_forward.8} parent=1 // pred_region
      _
    $region21: #{plain_seq2seq_forward.8} parent=1 // pred_fallthru
      _
    %v23 = vld [vmem:[%s3] sm:$0xff]
    %v24 = vld [vmem:[%s3 + $0x8] sm:$0xff]
    %v25 = vld [vmem:[%s3 + $0x10] sm:$0xff]
    %v26 = vld [vmem:[%s3 + $0x18] sm:$0xff]
    %v27 = vld [vmem:[%s4] sm:$0x1]
    %v28 = vld [vmem:[%s1] sm:$0xff]
    %v29 = vld [vmem:[%s2] sm:$0xff]
    %v30 = vld [vmem:[%s0] sm:$0xff]
    %v32 = vlaneseq
    %v33 = vshrl.u32 %v32, 7
    %v34 = vsub.s32 0, %v33
    %v35 = vrot.slane %v27, %v34
    %vm37 = vcmask 261120
    %v39 = vsel %vm37, %v29, 0
    %41 = vmatprep.subr.mxu0 0.0
    %42 = vmatpush1.msra.mxu0 0.0
    %43 = vmatprep.subr.mxu0 0.0
    %44 = vmatpush1.msra.mxu0 0.0
    %45 = vmatprep.subr.mxu0 0.0
    %46 = vmatpush1.msra.mxu0 0.0
    %47 = vmatprep.subr.mxu0 0.0
    %48 = vmatpush1.msra.mxu0 0.0
    %49 = vmatprep.subr.mxu0 0.0
    %50 = vmatpush1.msra.mxu0 0.0
    %51 = vmatprep.subr.mxu0 0.0
    %52 = vmatpush1.msra.mxu0 0.0
    %53 = vmatprep.subr.mxu0 0.0
    %54 = vmatpush1.msra.mxu0 0.0
    %55 = vmatprep.subr.mxu0 0.0
    %56 = vmatpush1.msra.mxu0 0.0
    %57 = vmatprep.subr.mxu0 0.0
    %58 = vmatpush1.msra.mxu0 0.0
    %59 = vmatprep.subr.mxu0 0.0
    %60 = vmatpush1.msra.mxu0 0.0
    %61 = vmatprep.subr.mxu0 0.0
    %62 = vmatpush1.msra.mxu0 0.0
    %63 = vmatprep.subr.mxu0 0.0
    %64 = vmatpush1.msra.mxu0 0.0
    %65 = vmatprep.subr.mxu0 0.0
    %66 = vmatpush1.msra.mxu0 %v26
    %67 = vmatprep.subr.mxu0 0.0
    %68 = vmatpush1.msra.mxu0 %v25
    %69 = vmatprep.subr.mxu0 0.0
    %70 = vmatpush1.msra.mxu0 %v24
    %71 = vmatprep.subr.mxu0 0.0
    %72 = vmatpush1.msra.mxu0 %v23
    %73 = vmatprep.subr.mxu0 0.0
    %74 = vmatpush2.msra.mxu0 0.0
    %75 = vmatprep.subr.mxu0 0.0
    %76 = vmatpush2.msra.mxu0 0.0
    %77 = vmatprep.subr.mxu0 0.0
    %78 = vmatpush2.msra.mxu0 0.0
    %79 = vmatprep.subr.mxu0 0.0
    %80 = vmatpush2.msra.mxu0 0.0
    %81 = vmatprep.subr.mxu0 0.0
    %82 = vmatpush2.msra.mxu0 0.0
    %83 = vmatprep.subr.mxu0 0.0
    %84 = vmatpush2.msra.mxu0 0.0
    %85 = vmatprep.subr.mxu0 0.0
    %86 = vmatpush2.msra.mxu0 0.0
    %87 = vmatprep.subr.mxu0 0.0
    %88 = vmatpush2.msra.mxu0 0.0
    %89 = vmatprep.subr.mxu0 0.0
    %90 = vmatpush2.msra.mxu0 0.0
    %91 = vmatprep.subr.mxu0 0.0
    %92 = vmatpush2.msra.mxu0 0.0
    %93 = vmatprep.subr.mxu0 0.0
    %94 = vmatpush2.msra.mxu0 0.0
    %95 = vmatprep.subr.mxu0 0.0
    %96 = vmatpush2.msra.mxu0 0.0
    %97 = vmatprep.subr.mxu0 0.0
    %98 = vmatpush2.msra.mxu0 0.0
    %99 = vmatprep.subr.mxu0 0.0
    %100 = vmatpush2.msra.mxu0 0.0
    %101 = vmatprep.subr.mxu0 0.0
    %102 = vmatpush2.msra.mxu0 0.0
    %103 = vmatprep.subr.mxu0 0.0
    %104 = vmatpush2.msra.mxu0 0.0
    %105 = vmatprep.mubr.f32.mxu0 0.0
    %106 = vmatmul.mubr.f32.gmra.mxu0 %v39
    %v107 = vpop.f32.mrf.mxu0
    %v108 = vadd.f32 %v35, %v107
    %v109 = vpop.f32.mrf.mxu0
    %110 = vdwg.mxu0
    %v111 = vadd.f32 %v30, %v108
    %v112 = vxor.u32 %v111, 2147483648
    %v113 = vmul.f32 %v112, 1.442695
    %v114 = vpow.pop %v113
    %v115 = vadd.f32 %v114, 1.0
    %v116 = vrcp.pop %v115
    %v117 = vmul.f32 1.0, %v116
    %119 = vrot.lane.b32.xlu0 %v108, 64
    %v120 = vpop.permute.xlu0 %119
    %v122 = vmul.f32 %v117, %v120
    %124 = vrot.lane.b32.xlu0 %v122, 64
    %v125 = vpop.permute.xlu0 %124
    %v127 = vadd.f32 %v30, %v125
    %v128 = vtanh.pop %v127
    %v129 = vsub.f32 1.0, %v117
    %131 = vrot.lane.b32.xlu0 %v128, 96
    %v132 = vpop.permute.xlu0 %131
    %v134 = vmul.f32 %v129, %v132
    %135 = vrot.lane.b32.xlu0 %v29, 32
    %v136 = vpop.permute.xlu0 %135
    %v138 = vmul.f32 %v117, %v136
    %v139 = vadd.f32 %v134, %v138
    %vm140 = vcmp.gt.s32.totalorder %v28, 0
    %v141 = vsel %vm140, 1, 0
    %v142 = vcvt.s32.f32 %v141
    %144 = vset.pattern.permute.xlu0 0
    %145 = vperm.xlu0 %144, %v142
    %v146 = vpop.permute.xlu0 %145
    %v148 = vmul.f32 %v139, %v146
    %150 = vrot.lane.b32.xlu0 %v148, 96
    %v151 = vpop.permute.xlu0 %150
    %153 = vst.msk [vmem:[%s5] sm:$0xff] %vm37, %v151
    %v154 = vsub.f32 1.0, %v142
    %156 = vset.pattern.permute.xlu0 0
    %157 = vperm.xlu0 %156, %v154
    %v158 = vpop.permute.xlu0 %157
    %v160 = vmul.f32 %v158, %v29
    %162 = vrot.lane.b32.xlu0 %v160, 32
    %v163 = vpop.permute.xlu0 %162
    %v165 = vadd.f32 %v148, %v163
    %s166 = scalar_lea.vmem %s0, 8
    %v167 = vld [vmem:[%s166] sm:$0xff]
    %169 = vrot.lane.b32.xlu0 %v165, 96
    %v170 = vpop.permute.xlu0 %169
    %v171 = vsel %vm37, %v170, 0
    %173 = vmatprep.subr.mxu0 0.0
    %174 = vmatpush1.msra.mxu0 0.0
    %175 = vmatprep.subr.mxu0 0.0
    %176 = vmatpush1.msra.mxu0 0.0
    %177 = vmatprep.subr.mxu0 0.0
    %178 = vmatpush1.msra.mxu0 0.0
    %179 = vmatprep.subr.mxu0 0.0
    %180 = vmatpush1.msra.mxu0 0.0
    %181 = vmatprep.subr.mxu0 0.0
    %182 = vmatpush1.msra.mxu0 0.0
    %183 = vmatprep.subr.mxu0 0.0
    %184 = vmatpush1.msra.mxu0 0.0
    %185 = vmatprep.subr.mxu0 0.0
    %186 = vmatpush1.msra.mxu0 0.0
    %187 = vmatprep.subr.mxu0 0.0
    %188 = vmatpush1.msra.mxu0 0.0
    %189 = vmatprep.subr.mxu0 0.0
    %190 = vmatpush1.msra.mxu0 0.0
    %191 = vmatprep.subr.mxu0 0.0
    %192 = vmatpush1.msra.mxu0 0.0
    %193 = vmatprep.subr.mxu0 0.0
    %194 = vmatpush1.msra.mxu0 0.0
    %195 = vmatprep.subr.mxu0 0.0
    %196 = vmatpush1.msra.mxu0 0.0
    %197 = vmatprep.subr.mxu0 0.0
    %198 = vmatpush1.msra.mxu0 %v26
    %199 = vmatprep.subr.mxu0 0.0
    %200 = vmatpush1.msra.mxu0 %v25
    %201 = vmatprep.subr.mxu0 0.0
    %202 = vmatpush1.msra.mxu0 %v24
    %203 = vmatprep.subr.mxu0 0.0
    %204 = vmatpush1.msra.mxu0 %v23
    %205 = vmatprep.subr.mxu0 0.0
    %206 = vmatpush2.msra.mxu0 0.0
    %207 = vmatprep.subr.mxu0 0.0
    %208 = vmatpush2.msra.mxu0 0.0
    %209 = vmatprep.subr.mxu0 0.0
    %210 = vmatpush2.msra.mxu0 0.0
    %211 = vmatprep.subr.mxu0 0.0
    %212 = vmatpush2.msra.mxu0 0.0
    %213 = vmatprep.subr.mxu0 0.0
    %214 = vmatpush2.msra.mxu0 0.0
    %215 = vmatprep.subr.mxu0 0.0
    %216 = vmatpush2.msra.mxu0 0.0
    %217 = vmatprep.subr.mxu0 0.0
    %218 = vmatpush2.msra.mxu0 0.0
    %219 = vmatprep.subr.mxu0 0.0
    %220 = vmatpush2.msra.mxu0 0.0
    %221 = vmatprep.subr.mxu0 0.0
    %222 = vmatpush2.msra.mxu0 0.0
    %223 = vmatprep.subr.mxu0 0.0
    %224 = vmatpush2.msra.mxu0 0.0
    %225 = vmatprep.subr.mxu0 0.0
    %226 = vmatpush2.msra.mxu0 0.0
    %227 = vmatprep.subr.mxu0 0.0
    %228 = vmatpush2.msra.mxu0 0.0
    %229 = vmatprep.subr.mxu0 0.0
    %230 = vmatpush2.msra.mxu0 0.0
    %231 = vmatprep.subr.mxu0 0.0
    %232 = vmatpush2.msra.mxu0 0.0
    %233 = vmatprep.subr.mxu0 0.0
    %234 = vmatpush2.msra.mxu0 0.0
    %235 = vmatprep.subr.mxu0 0.0
    %236 = vmatpush2.msra.mxu0 0.0
    %237 = vmatprep.mubr.f32.mxu0 0.0
    %238 = vmatmul.mubr.f32.gmra.mxu0 %v171
    %v239 = vpop.f32.mrf.mxu0
    %v240 = vadd.f32 %v35, %v239
    %v241 = vpop.f32.mrf.mxu0
    %242 = vdwg.mxu0
    %v243 = vadd.f32 %v167, %v240
    %v244 = vxor.u32 %v243, 2147483648
    %v245 = vmul.f32 %v244, 1.442695
    %v246 = vpow.pop %v245
    %v247 = vadd.f32 %v246, 1.0
    %v248 = vrcp.pop %v247
    %v249 = vmul.f32 1.0, %v248
    %251 = vrot.lane.b32.xlu0 %v240, 64
    %v252 = vpop.permute.xlu0 %251
    %v254 = vmul.f32 %v249, %v252
    %256 = vrot.lane.b32.xlu0 %v254, 64
    %v257 = vpop.permute.xlu0 %256
    %v259 = vadd.f32 %v167, %v257
    %v260 = vtanh.pop %v259
    %v261 = vsub.f32 1.0, %v249
    %263 = vrot.lane.b32.xlu0 %v260, 96
    %v264 = vpop.permute.xlu0 %263
    %v266 = vmul.f32 %v261, %v264
    %v267 = vmul.f32 %v249, %v165
    %v268 = vadd.f32 %v266, %v267
    %vm269 = vcmp.gt.s32.totalorder %v28, 1
    %v270 = vsel %vm269, 1, 0
    %v271 = vcvt.s32.f32 %v270
    %273 = vset.pattern.permute.xlu0 0
    %274 = vperm.xlu0 %273, %v271
    %v275 = vpop.permute.xlu0 %274
    %v277 = vmul.f32 %v268, %v275
    %279 = vrot.lane.b32.xlu0 %v277, 96
    %v280 = vpop.permute.xlu0 %279
    %s282 = scalar_lea.vmem %s5, 8
    %283 = vst.msk [vmem:[%s282] sm:$0xff] %vm37, %v280
    %v284 = vsub.f32 1.0, %v271
    %286 = vset.pattern.permute.xlu0 0
    %287 = vperm.xlu0 %286, %v284
    %v288 = vpop.permute.xlu0 %287
    %v290 = vmul.f32 %v288, %v165
    %v291 = vadd.f32 %v277, %v290
    %s292 = scalar_lea.vmem %s0, 16
    %v293 = vld [vmem:[%s292] sm:$0xff]
    %295 = vrot.lane.b32.xlu0 %v291, 96
    %v296 = vpop.permute.xlu0 %295
    %v297 = vsel %vm37, %v296, 0
    %299 = vmatprep.subr.mxu0 0.0
    %300 = vmatpush1.msra.mxu0 0.0
    %301 = vmatprep.subr.mxu0 0.0
    %302 = vmatpush1.msra.mxu0 0.0
    %303 = vmatprep.subr.mxu0 0.0
    %304 = vmatpush1.msra.mxu0 0.0
    %305 = vmatprep.subr.mxu0 0.0
    %306 = vmatpush1.msra.mxu0 0.0
    %307 = vmatprep.subr.mxu0 0.0
    %308 = vmatpush1.msra.mxu0 0.0
    %309 = vmatprep.subr.mxu0 0.0
    %310 = vmatpush1.msra.mxu0 0.0
    %311 = vmatprep.subr.mxu0 0.0
    %312 = vmatpush1.msra.mxu0 0.0
    %313 = vmatprep.subr.mxu0 0.0
    %314 = vmatpush1.msra.mxu0 0.0
    %315 = vmatprep.subr.mxu0 0.0
    %316 = vmatpush1.msra.mxu0 0.0
    %317 = vmatprep.subr.mxu0 0.0
    %318 = vmatpush1.msra.mxu0 0.0
    %319 = vmatprep.subr.mxu0 0.0
    %320 = vmatpush1.msra.mxu0 0.0
    %321 = vmatprep.subr.mxu0 0.0
    %322 = vmatpush1.msra.mxu0 0.0
    %323 = vmatprep.subr.mxu0 0.0
    %324 = vmatpush1.msra.mxu0 %v26
    %325 = vmatprep.subr.mxu0 0.0
    %326 = vmatpush1.msra.mxu0 %v25
    %327 = vmatprep.subr.mxu0 0.0
    %328 = vmatpush1.msra.mxu0 %v24
    %329 = vmatprep.subr.mxu0 0.0
    %330 = vmatpush1.msra.mxu0 %v23
    %331 = vmatprep.subr.mxu0 0.0
    %332 = vmatpush2.msra.mxu0 0.0
    %333 = vmatprep.subr.mxu0 0.0
    %334 = vmatpush2.msra.mxu0 0.0
    %335 = vmatprep.subr.mxu0 0.0
    %336 = vmatpush2.msra.mxu0 0.0
    %337 = vmatprep.subr.mxu0 0.0
    %338 = vmatpush2.msra.mxu0 0.0
    %339 = vmatprep.subr.mxu0 0.0
    %340 = vmatpush2.msra.mxu0 0.0
    %341 = vmatprep.subr.mxu0 0.0
    %342 = vmatpush2.msra.mxu0 0.0
    %343 = vmatprep.subr.mxu0 0.0
    %344 = vmatpush2.msra.mxu0 0.0
    %345 = vmatprep.subr.mxu0 0.0
    %346 = vmatpush2.msra.mxu0 0.0
    %347 = vmatprep.subr.mxu0 0.0
    %348 = vmatpush2.msra.mxu0 0.0
    %349 = vmatprep.subr.mxu0 0.0
    %350 = vmatpush2.msra.mxu0 0.0
    %351 = vmatprep.subr.mxu0 0.0
    %352 = vmatpush2.msra.mxu0 0.0
    %353 = vmatprep.subr.mxu0 0.0
    %354 = vmatpush2.msra.mxu0 0.0
    %355 = vmatprep.subr.mxu0 0.0
    %356 = vmatpush2.msra.mxu0 0.0
    %357 = vmatprep.subr.mxu0 0.0
    %358 = vmatpush2.msra.mxu0 0.0
    %359 = vmatprep.subr.mxu0 0.0
    %360 = vmatpush2.msra.mxu0 0.0
    %361 = vmatprep.subr.mxu0 0.0
    %362 = vmatpush2.msra.mxu0 0.0
    %363 = vmatprep.mubr.f32.mxu0 0.0
    %364 = vmatmul.mubr.f32.gmra.mxu0 %v297
    %v365 = vpop.f32.mrf.mxu0
    %v366 = vadd.f32 %v35, %v365
    %v367 = vpop.f32.mrf.mxu0
    %368 = vdwg.mxu0
    %v369 = vadd.f32 %v293, %v366
    %v370 = vxor.u32 %v369, 2147483648
    %v371 = vmul.f32 %v370, 1.442695
    %v372 = vpow.pop %v371
    %v373 = vadd.f32 %v372, 1.0
    %v374 = vrcp.pop %v373
    %v375 = vmul.f32 1.0, %v374
    %377 = vrot.lane.b32.xlu0 %v366, 64
    %v378 = vpop.permute.xlu0 %377
    %v380 = vmul.f32 %v375, %v378
    %382 = vrot.lane.b32.xlu0 %v380, 64
    %v383 = vpop.permute.xlu0 %382
    %v385 = vadd.f32 %v293, %v383
    %v386 = vtanh.pop %v385
    %v387 = vsub.f32 1.0, %v375
    %389 = vrot.lane.b32.xlu0 %v386, 96
    %v390 = vpop.permute.xlu0 %389
    %v392 = vmul.f32 %v387, %v390
    %v393 = vmul.f32 %v375, %v291
    %v394 = vadd.f32 %v392, %v393
    %vm395 = vcmp.gt.s32.totalorder %v28, 2
    %v396 = vsel %vm395, 1, 0
    %v397 = vcvt.s32.f32 %v396
    %399 = vset.pattern.permute.xlu0 0
    %400 = vperm.xlu0 %399, %v397
    %v401 = vpop.permute.xlu0 %400
    %v403 = vmul.f32 %v394, %v401
    %405 = vrot.lane.b32.xlu0 %v403, 96
    %v406 = vpop.permute.xlu0 %405
    %s408 = scalar_lea.vmem %s5, 16
    %409 = vst.msk [vmem:[%s408] sm:$0xff] %vm37, %v406
    %v410 = vsub.f32 1.0, %v397
    %412 = vset.pattern.permute.xlu0 0
    %413 = vperm.xlu0 %412, %v410
    %v414 = vpop.permute.xlu0 %413
    %v416 = vmul.f32 %v414, %v291
    %v417 = vadd.f32 %v403, %v416
    %s418 = scalar_lea.vmem %s0, 24
    %v419 = vld [vmem:[%s418] sm:$0xff]
    %421 = vrot.lane.b32.xlu0 %v417, 96
    %v422 = vpop.permute.xlu0 %421
    %v423 = vsel %vm37, %v422, 0
    %425 = vmatprep.subr.mxu0 0.0
    %426 = vmatpush1.msra.mxu0 0.0
    %427 = vmatprep.subr.mxu0 0.0
    %428 = vmatpush1.msra.mxu0 0.0
    %429 = vmatprep.subr.mxu0 0.0
    %430 = vmatpush1.msra.mxu0 0.0
    %431 = vmatprep.subr.mxu0 0.0
    %432 = vmatpush1.msra.mxu0 0.0
    %433 = vmatprep.subr.mxu0 0.0
    %434 = vmatpush1.msra.mxu0 0.0
    %435 = vmatprep.subr.mxu0 0.0
    %436 = vmatpush1.msra.mxu0 0.0
    %437 = vmatprep.subr.mxu0 0.0
    %438 = vmatpush1.msra.mxu0 0.0
    %439 = vmatprep.subr.mxu0 0.0
    %440 = vmatpush1.msra.mxu0 0.0
    %441 = vmatprep.subr.mxu0 0.0
    %442 = vmatpush1.msra.mxu0 0.0
    %443 = vmatprep.subr.mxu0 0.0
    %444 = vmatpush1.msra.mxu0 0.0
    %445 = vmatprep.subr.mxu0 0.0
    %446 = vmatpush1.msra.mxu0 0.0
    %447 = vmatprep.subr.mxu0 0.0
    %448 = vmatpush1.msra.mxu0 0.0
    %449 = vmatprep.subr.mxu0 0.0
    %450 = vmatpush1.msra.mxu0 %v26
    %451 = vmatprep.subr.mxu0 0.0
    %452 = vmatpush1.msra.mxu0 %v25
    %453 = vmatprep.subr.mxu0 0.0
    %454 = vmatpush1.msra.mxu0 %v24
    %455 = vmatprep.subr.mxu0 0.0
    %456 = vmatpush1.msra.mxu0 %v23
    %457 = vmatprep.subr.mxu0 0.0
    %458 = vmatpush2.msra.mxu0 0.0
    %459 = vmatprep.subr.mxu0 0.0
    %460 = vmatpush2.msra.mxu0 0.0
    %461 = vmatprep.subr.mxu0 0.0
    %462 = vmatpush2.msra.mxu0 0.0
    %463 = vmatprep.subr.mxu0 0.0
    %464 = vmatpush2.msra.mxu0 0.0
    %465 = vmatprep.subr.mxu0 0.0
    %466 = vmatpush2.msra.mxu0 0.0
    %467 = vmatprep.subr.mxu0 0.0
    %468 = vmatpush2.msra.mxu0 0.0
    %469 = vmatprep.subr.mxu0 0.0
    %470 = vmatpush2.msra.mxu0 0.0
    %471 = vmatprep.subr.mxu0 0.0
    %472 = vmatpush2.msra.mxu0 0.0
    %473 = vmatprep.subr.mxu0 0.0
    %474 = vmatpush2.msra.mxu0 0.0
    %475 = vmatprep.subr.mxu0 0.0
    %476 = vmatpush2.msra.mxu0 0.0
    %477 = vmatprep.subr.mxu0 0.0
    %478 = vmatpush2.msra.mxu0 0.0
    %479 = vmatprep.subr.mxu0 0.0
    %480 = vmatpush2.msra.mxu0 0.0
    %481 = vmatprep.subr.mxu0 0.0
    %482 = vmatpush2.msra.mxu0 0.0
    %483 = vmatprep.subr.mxu0 0.0
    %484 = vmatpush2.msra.mxu0 0.0
    %485 = vmatprep.subr.mxu0 0.0
    %486 = vmatpush2.msra.mxu0 0.0
    %487 = vmatprep.subr.mxu0 0.0
    %488 = vmatpush2.msra.mxu0 0.0
    %489 = vmatprep.mubr.f32.mxu0 0.0
    %490 = vmatmul.mubr.f32.gmra.mxu0 %v423
    %v491 = vpop.f32.mrf.mxu0
    %v492 = vadd.f32 %v35, %v491
    %v493 = vpop.f32.mrf.mxu0
    %494 = vdwg.mxu0
    %v495 = vadd.f32 %v419, %v492
    %v496 = vxor.u32 %v495, 2147483648
    %v497 = vmul.f32 %v496, 1.442695
    %v498 = vpow.pop %v497
    %v499 = vadd.f32 %v498, 1.0
    %v500 = vrcp.pop %v499
    %v501 = vmul.f32 1.0, %v500
    %503 = vrot.lane.b32.xlu0 %v492, 64
    %v504 = vpop.permute.xlu0 %503
    %v506 = vmul.f32 %v501, %v504
    %508 = vrot.lane.b32.xlu0 %v506, 64
    %v509 = vpop.permute.xlu0 %508
    %v511 = vadd.f32 %v419, %v509
    %v512 = vtanh.pop %v511
    %v513 = vsub.f32 1.0, %v501
    %515 = vrot.lane.b32.xlu0 %v512, 96
    %v516 = vpop.permute.xlu0 %515
    %v518 = vmul.f32 %v513, %v516
    %v519 = vmul.f32 %v501, %v417
    %v520 = vadd.f32 %v518, %v519
    %vm521 = vcmp.gt.s32.totalorder %v28, 3
    %v522 = vsel %vm521, 1, 0
    %v523 = vcvt.s32.f32 %v522
    %525 = vset.pattern.permute.xlu0 0
    %526 = vperm.xlu0 %525, %v523
    %v527 = vpop.permute.xlu0 %526
    %v529 = vmul.f32 %v520, %v527
    %531 = vrot.lane.b32.xlu0 %v529, 96
    %v532 = vpop.permute.xlu0 %531
    %s534 = scalar_lea.vmem %s5, 24
    %535 = vst.msk [vmem:[%s534] sm:$0xff] %vm37, %v532
    %v536 = vsub.f32 1.0, %v523
    %538 = vset.pattern.permute.xlu0 0
    %539 = vperm.xlu0 %538, %v536
    %v540 = vpop.permute.xlu0 %539
    %v542 = vmul.f32 %v540, %v417
    %v543 = vadd.f32 %v529, %v542
    %s544 = scalar_lea.vmem %s0, 32
    %v545 = vld [vmem:[%s544] sm:$0xff]
    %547 = vrot.lane.b32.xlu0 %v543, 96
    %v548 = vpop.permute.xlu0 %547
    %v549 = vsel %vm37, %v548, 0
    %551 = vmatprep.subr.mxu0 0.0
    %552 = vmatpush1.msra.mxu0 0.0
    %553 = vmatprep.subr.mxu0 0.0
    %554 = vmatpush1.msra.mxu0 0.0
    %555 = vmatprep.subr.mxu0 0.0
    %556 = vmatpush1.msra.mxu0 0.0
    %557 = vmatprep.subr.mxu0 0.0
    %558 = vmatpush1.msra.mxu0 0.0
    %559 = vmatprep.subr.mxu0 0.0
    %560 = vmatpush1.msra.mxu0 0.0
    %561 = vmatprep.subr.mxu0 0.0
    %562 = vmatpush1.msra.mxu0 0.0
    %563 = vmatprep.subr.mxu0 0.0
    %564 = vmatpush1.msra.mxu0 0.0
    %565 = vmatprep.subr.mxu0 0.0
    %566 = vmatpush1.msra.mxu0 0.0
    %567 = vmatprep.subr.mxu0 0.0
    %568 = vmatpush1.msra.mxu0 0.0
    %569 = vmatprep.subr.mxu0 0.0
    %570 = vmatpush1.msra.mxu0 0.0
    %571 = vmatprep.subr.mxu0 0.0
    %572 = vmatpush1.msra.mxu0 0.0
    %573 = vmatprep.subr.mxu0 0.0
    %574 = vmatpush1.msra.mxu0 0.0
    %575 = vmatprep.subr.mxu0 0.0
    %576 = vmatpush1.msra.mxu0 %v26
    %577 = vmatprep.subr.mxu0 0.0
    %578 = vmatpush1.msra.mxu0 %v25
    %579 = vmatprep.subr.mxu0 0.0
    %580 = vmatpush1.msra.mxu0 %v24
    %581 = vmatprep.subr.mxu0 0.0
    %582 = vmatpush1.msra.mxu0 %v23
    %583 = vmatprep.subr.mxu0 0.0
    %584 = vmatpush2.msra.mxu0 0.0
    %585 = vmatprep.subr.mxu0 0.0
    %586 = vmatpush2.msra.mxu0 0.0
    %587 = vmatprep.subr.mxu0 0.0
    %588 = vmatpush2.msra.mxu0 0.0
    %589 = vmatprep.subr.mxu0 0.0
    %590 = vmatpush2.msra.mxu0 0.0
    %591 = vmatprep.subr.mxu0 0.0
    %592 = vmatpush2.msra.mxu0 0.0
    %593 = vmatprep.subr.mxu0 0.0
    %594 = vmatpush2.msra.mxu0 0.0
    %595 = vmatprep.subr.mxu0 0.0
    %596 = vmatpush2.msra.mxu0 0.0
    %597 = vmatprep.subr.mxu0 0.0
    %598 = vmatpush2.msra.mxu0 0.0
    %599 = vmatprep.subr.mxu0 0.0
    %600 = vmatpush2.msra.mxu0 0.0
    %601 = vmatprep.subr.mxu0 0.0
    %602 = vmatpush2.msra.mxu0 0.0
    %603 = vmatprep.subr.mxu0 0.0
    %604 = vmatpush2.msra.mxu0 0.0
    %605 = vmatprep.subr.mxu0 0.0
    %606 = vmatpush2.msra.mxu0 0.0
    %607 = vmatprep.subr.mxu0 0.0
    %608 = vmatpush2.msra.mxu0 0.0
    %609 = vmatprep.subr.mxu0 0.0
    %610 = vmatpush2.msra.mxu0 0.0
    %611 = vmatprep.subr.mxu0 0.0
    %612 = vmatpush2.msra.mxu0 0.0
    %613 = vmatprep.subr.mxu0 0.0
    %614 = vmatpush2.msra.mxu0 0.0
    %615 = vmatprep.mubr.f32.mxu0 0.0
    %616 = vmatmul.mubr.f32.gmra.mxu0 %v549
    %v617 = vpop.f32.mrf.mxu0
    %v618 = vadd.f32 %v35, %v617
    %v619 = vpop.f32.mrf.mxu0
    %620 = vdwg.mxu0
    %v621 = vadd.f32 %v545, %v618
    %v622 = vxor.u32 %v621, 2147483648
    %v623 = vmul.f32 %v622, 1.442695
    %v624 = vpow.pop %v623
    %v625 = vadd.f32 %v624, 1.0
    %v626 = vrcp.pop %v625
    %v627 = vmul.f32 1.0, %v626
    %629 = vrot.lane.b32.xlu0 %v618, 64
    %v630 = vpop.permute.xlu0 %629
    %v632 = vmul.f32 %v627, %v630
    %634 = vrot.lane.b32.xlu0 %v632, 64
    %v635 = vpop.permute.xlu0 %634
    %v637 = vadd.f32 %v545, %v635
    %v638 = vtanh.pop %v637
    %v639 = vsub.f32 1.0, %v627
    %641 = vrot.lane.b32.xlu0 %v638, 96
    %v642 = vpop.permute.xlu0 %641
    %v644 = vmul.f32 %v639, %v642
    %v645 = vmul.f32 %v627, %v543
    %v646 = vadd.f32 %v644, %v645
    %vm647 = vcmp.gt.s32.totalorder %v28, 4
    %v648 = vsel %vm647, 1, 0
    %v649 = vcvt.s32.f32 %v648
    %651 = vset.pattern.permute.xlu0 0
    %652 = vperm.xlu0 %651, %v649
    %v653 = vpop.permute.xlu0 %652
    %v655 = vmul.f32 %v646, %v653
    %657 = vrot.lane.b32.xlu0 %v655, 96
    %v658 = vpop.permute.xlu0 %657
    %s660 = scalar_lea.vmem %s5, 32
    %661 = vst.msk [vmem:[%s660] sm:$0xff] %vm37, %v658
    %v662 = vsub.f32 1.0, %v649
    %664 = vset.pattern.permute.xlu0 0
    %665 = vperm.xlu0 %664, %v662
    %v666 = vpop.permute.xlu0 %665
    %v668 = vmul.f32 %v666, %v543
    %v669 = vadd.f32 %v655, %v668
    %s670 = scalar_lea.vmem %s0, 40
    %v671 = vld [vmem:[%s670] sm:$0xff]
    %673 = vrot.lane.b32.xlu0 %v669, 96
    %v674 = vpop.permute.xlu0 %673
    %v675 = vsel %vm37, %v674, 0
    %677 = vmatprep.subr.mxu0 0.0
    %678 = vmatpush1.msra.mxu0 0.0
    %679 = vmatprep.subr.mxu0 0.0
    %680 = vmatpush1.msra.mxu0 0.0
    %681 = vmatprep.subr.mxu0 0.0
    %682 = vmatpush1.msra.mxu0 0.0
    %683 = vmatprep.subr.mxu0 0.0
    %684 = vmatpush1.msra.mxu0 0.0
    %685 = vmatprep.subr.mxu0 0.0
    %686 = vmatpush1.msra.mxu0 0.0
    %687 = vmatprep.subr.mxu0 0.0
    %688 = vmatpush1.msra.mxu0 0.0
    %689 = vmatprep.subr.mxu0 0.0
    %690 = vmatpush1.msra.mxu0 0.0
    %691 = vmatprep.subr.mxu0 0.0
    %692 = vmatpush1.msra.mxu0 0.0
    %693 = vmatprep.subr.mxu0 0.0
    %694 = vmatpush1.msra.mxu0 0.0
    %695 = vmatprep.subr.mxu0 0.0
    %696 = vmatpush1.msra.mxu0 0.0
    %697 = vmatprep.subr.mxu0 0.0
    %698 = vmatpush1.msra.mxu0 0.0
    %699 = vmatprep.subr.mxu0 0.0
    %700 = vmatpush1.msra.mxu0 0.0
    %701 = vmatprep.subr.mxu0 0.0
    %702 = vmatpush1.msra.mxu0 %v26
    %703 = vmatprep.subr.mxu0 0.0
    %704 = vmatpush1.msra.mxu0 %v25
    %705 = vmatprep.subr.mxu0 0.0
    %706 = vmatpush1.msra.mxu0 %v24
    %707 = vmatprep.subr.mxu0 0.0
    %708 = vmatpush1.msra.mxu0 %v23
    %709 = vmatprep.subr.mxu0 0.0
    %710 = vmatpush2.msra.mxu0 0.0
    %711 = vmatprep.subr.mxu0 0.0
    %712 = vmatpush2.msra.mxu0 0.0
    %713 = vmatprep.subr.mxu0 0.0
    %714 = vmatpush2.msra.mxu0 0.0
    %715 = vmatprep.subr.mxu0 0.0
    %716 = vmatpush2.msra.mxu0 0.0
    %717 = vmatprep.subr.mxu0 0.0
    %718 = vmatpush2.msra.mxu0 0.0
    %719 = vmatprep.subr.mxu0 0.0
    %720 = vmatpush2.msra.mxu0 0.0
    %721 = vmatprep.subr.mxu0 0.0
    %722 = vmatpush2.msra.mxu0 0.0
    %723 = vmatprep.subr.mxu0 0.0
    %724 = vmatpush2.msra.mxu0 0.0
    %725 = vmatprep.subr.mxu0 0.0
    %726 = vmatpush2.msra.mxu0 0.0
    %727 = vmatprep.subr.mxu0 0.0
    %728 = vmatpush2.msra.mxu0 0.0
    %729 = vmatprep.subr.mxu0 0.0
    %730 = vmatpush2.msra.mxu0 0.0
    %731 = vmatprep.subr.mxu0 0.0
    %732 = vmatpush2.msra.mxu0 0.0
    %733 = vmatprep.subr.mxu0 0.0
    %734 = vmatpush2.msra.mxu0 0.0
    %735 = vmatprep.subr.mxu0 0.0
    %736 = vmatpush2.msra.mxu0 0.0
    %737 = vmatprep.subr.mxu0 0.0
    %738 = vmatpush2.msra.mxu0 0.0
    %739 = vmatprep.subr.mxu0 0.0
    %740 = vmatpush2.msra.mxu0 0.0
    %741 = vmatprep.mubr.f32.mxu0 0.0
    %742 = vmatmul.mubr.f32.gmra.mxu0 %v675
    %v743 = vpop.f32.mrf.mxu0
    %v744 = vadd.f32 %v35, %v743
    %v745 = vpop.f32.mrf.mxu0
    %746 = vdwg.mxu0
    %v747 = vadd.f32 %v671, %v744
    %v748 = vxor.u32 %v747, 2147483648
    %v749 = vmul.f32 %v748, 1.442695
    %v750 = vpow.pop %v749
    %v751 = vadd.f32 %v750, 1.0
    %v752 = vrcp.pop %v751
    %v753 = vmul.f32 1.0, %v752
    %755 = vrot.lane.b32.xlu0 %v744, 64
    %v756 = vpop.permute.xlu0 %755
    %v758 = vmul.f32 %v753, %v756
    %760 = vrot.lane.b32.xlu0 %v758, 64
    %v761 = vpop.permute.xlu0 %760
    %v763 = vadd.f32 %v671, %v761
    %v764 = vtanh.pop %v763
    %v765 = vsub.f32 1.0, %v753
    %767 = vrot.lane.b32.xlu0 %v764, 96
    %v768 = vpop.permute.xlu0 %767
    %v770 = vmul.f32 %v765, %v768
    %v771 = vmul.f32 %v753, %v669
    %v772 = vadd.f32 %v770, %v771
    %vm773 = vcmp.gt.s32.totalorder %v28, 5
    %v774 = vsel %vm773, 1, 0
    %v775 = vcvt.s32.f32 %v774
    %777 = vset.pattern.permute.xlu0 0
    %778 = vperm.xlu0 %777, %v775
    %v779 = vpop.permute.xlu0 %778
    %v781 = vmul.f32 %v772, %v779
    %783 = vrot.lane.b32.xlu0 %v781, 96
    %v784 = vpop.permute.xlu0 %783
    %s786 = scalar_lea.vmem %s5, 40
    %787 = vst.msk [vmem:[%s786] sm:$0xff] %vm37, %v784
    %v788 = vsub.f32 1.0, %v775
    %790 = vset.pattern.permute.xlu0 0
    %791 = vperm.xlu0 %790, %v788
    %v792 = vpop.permute.xlu0 %791
    %v794 = vmul.f32 %v792, %v669
    %v795 = vadd.f32 %v781, %v794
    %s796 = scalar_lea.vmem %s0, 48
    %v797 = vld [vmem:[%s796] sm:$0xff]
    %799 = vrot.lane.b32.xlu0 %v795, 96
    %v800 = vpop.permute.xlu0 %799
    %v801 = vsel %vm37, %v800, 0
    %803 = vmatprep.subr.mxu0 0.0
    %804 = vmatpush1.msra.mxu0 0.0
    %805 = vmatprep.subr.mxu0 0.0
    %806 = vmatpush1.msra.mxu0 0.0
    %807 = vmatprep.subr.mxu0 0.0
    %808 = vmatpush1.msra.mxu0 0.0
    %809 = vmatprep.subr.mxu0 0.0
    %810 = vmatpush1.msra.mxu0 0.0
    %811 = vmatprep.subr.mxu0 0.0
    %812 = vmatpush1.msra.mxu0 0.0
    %813 = vmatprep.subr.mxu0 0.0
    %814 = vmatpush1.msra.mxu0 0.0
    %815 = vmatprep.subr.mxu0 0.0
    %816 = vmatpush1.msra.mxu0 0.0
    %817 = vmatprep.subr.mxu0 0.0
    %818 = vmatpush1.msra.mxu0 0.0
    %819 = vmatprep.subr.mxu0 0.0
    %820 = vmatpush1.msra.mxu0 0.0
    %821 = vmatprep.subr.mxu0 0.0
    %822 = vmatpush1.msra.mxu0 0.0
    %823 = vmatprep.subr.mxu0 0.0
    %824 = vmatpush1.msra.mxu0 0.0
    %825 = vmatprep.subr.mxu0 0.0
    %826 = vmatpush1.msra.mxu0 0.0
    %827 = vmatprep.subr.mxu0 0.0
    %828 = vmatpush1.msra.mxu0 %v26
    %829 = vmatprep.subr.mxu0 0.0
    %830 = vmatpush1.msra.mxu0 %v25
    %831 = vmatprep.subr.mxu0 0.0
    %832 = vmatpush1.msra.mxu0 %v24
    %833 = vmatprep.subr.mxu0 0.0
    %834 = vmatpush1.msra.mxu0 %v23
    %835 = vmatprep.subr.mxu0 0.0
    %836 = vmatpush2.msra.mxu0 0.0
    %837 = vmatprep.subr.mxu0 0.0
    %838 = vmatpush2.msra.mxu0 0.0
    %839 = vmatprep.subr.mxu0 0.0
    %840 = vmatpush2.msra.mxu0 0.0
    %841 = vmatprep.subr.mxu0 0.0
    %842 = vmatpush2.msra.mxu0 0.0
    %843 = vmatprep.subr.mxu0 0.0
    %844 = vmatpush2.msra.mxu0 0.0
    %845 = vmatprep.subr.mxu0 0.0
    %846 = vmatpush2.msra.mxu0 0.0
    %847 = vmatprep.subr.mxu0 0.0
    %848 = vmatpush2.msra.mxu0 0.0
    %849 = vmatprep.subr.mxu0 0.0
    %850 = vmatpush2.msra.mxu0 0.0
    %851 = vmatprep.subr.mxu0 0.0
    %852 = vmatpush2.msra.mxu0 0.0
    %853 = vmatprep.subr.mxu0 0.0
    %854 = vmatpush2.msra.mxu0 0.0
    %855 = vmatprep.subr.mxu0 0.0
    %856 = vmatpush2.msra.mxu0 0.0
    %857 = vmatprep.subr.mxu0 0.0
    %858 = vmatpush2.msra.mxu0 0.0
    %859 = vmatprep.subr.mxu0 0.0
    %860 = vmatpush2.msra.mxu0 0.0
    %861 = vmatprep.subr.mxu0 0.0
    %862 = vmatpush2.msra.mxu0 0.0
    %863 = vmatprep.subr.mxu0 0.0
    %864 = vmatpush2.msra.mxu0 0.0
    %865 = vmatprep.subr.mxu0 0.0
    %866 = vmatpush2.msra.mxu0 0.0
    %867 = vmatprep.mubr.f32.mxu0 0.0
    %868 = vmatmul.mubr.f32.gmra.mxu0 %v801
    %v869 = vpop.f32.mrf.mxu0
    %v870 = vadd.f32 %v35, %v869
    %v871 = vpop.f32.mrf.mxu0
    %872 = vdwg.mxu0
    %v873 = vadd.f32 %v797, %v870
    %v874 = vxor.u32 %v873, 2147483648
    %v875 = vmul.f32 %v874, 1.442695
    %v876 = vpow.pop %v875
    %v877 = vadd.f32 %v876, 1.0
    %v878 = vrcp.pop %v877
    %v879 = vmul.f32 1.0, %v878
    %881 = vrot.lane.b32.xlu0 %v870, 64
    %v882 = vpop.permute.xlu0 %881
    %v884 = vmul.f32 %v879, %v882
    %886 = vrot.lane.b32.xlu0 %v884, 64
    %v887 = vpop.permute.xlu0 %886
    %v889 = vadd.f32 %v797, %v887
    %v890 = vtanh.pop %v889
    %v891 = vsub.f32 1.0, %v879
    %893 = vrot.lane.b32.xlu0 %v890, 96
    %v894 = vpop.permute.xlu0 %893
    %v896 = vmul.f32 %v891, %v894
    %v897 = vmul.f32 %v879, %v795
    %v898 = vadd.f32 %v896, %v897
    %vm899 = vcmp.gt.s32.totalorder %v28, 6
    %v900 = vsel %vm899, 1, 0
    %v901 = vcvt.s32.f32 %v900
    %903 = vset.pattern.permute.xlu0 0
    %904 = vperm.xlu0 %903, %v901
    %v905 = vpop.permute.xlu0 %904
    %v907 = vmul.f32 %v898, %v905
    %909 = vrot.lane.b32.xlu0 %v907, 96
    %v910 = vpop.permute.xlu0 %909
    %s912 = scalar_lea.vmem %s5, 48
    %913 = vst.msk [vmem:[%s912] sm:$0xff] %vm37, %v910
    %v914 = vsub.f32 1.0, %v901
    %916 = vset.pattern.permute.xlu0 0
    %917 = vperm.xlu0 %916, %v914
    %v918 = vpop.permute.xlu0 %917
    %v920 = vmul.f32 %v918, %v795
    %v921 = vadd.f32 %v907, %v920
    %923 = vrot.lane.b32.xlu0 %v921, 96
    %v924 = vpop.permute.xlu0 %923
    %926 = vst.msk [vmem:[#allocation2] sm:$0xff] %vm37, %v924
    // Predicated region
    $region22: #{plain_seq2seq_forward.8} parent=1 // pred_check
      _
    $region23: #{plain_seq2seq_forward.8} parent=1 // pred_check_branch
      %928 = sbr.rel (0) target = $region25
    $region24: #{plain_seq2seq_forward.8} parent=1 // pred_region
      _
    $region25: #{plain_seq2seq_forward.8} parent=1 // pred_fallthru
      _
    // Predicated region
    $region26: #{plain_seq2seq_forward.8} parent=1 // pred_check
      _
    $region27: #{plain_seq2seq_forward.8} parent=1 // pred_check_branch
      %930 = sbr.rel (0) target = $region29
    $region28: #{plain_seq2seq_forward.8} parent=1 // pred_region
      %s932 = ssub.s32 128, 128
      %933 = vsyncadd [#allocation3], %s932
      %s935 = sshll.u32 [#allocation2], 4
      %s936 = int_to_ptr.vmem [resolvable:$true] %s935
      %938 = dma.vmem_to_hbm [thread:$0]  %s936, 128, %s6, [#allocation3]
    $region29: #{plain_seq2seq_forward.8} parent=1 // pred_fallthru
      _
    // Predicated region
    $region30: #{plain_seq2seq_forward.8} parent=1 // pred_check
      _
    $region31: #{plain_seq2seq_forward.8} parent=1 // pred_check_branch
      %940 = sbr.rel (0) target = $region33
    $region32: #{plain_seq2seq_forward.8} parent=1 // pred_region
      _
    $region33: #{plain_seq2seq_forward.8} parent=1 // pred_fallthru
      _
    // Predicated region
    $region34: #{plain_seq2seq_forward.8} parent=1 // pred_check
      _
    $region35: #{plain_seq2seq_forward.8} parent=1 // pred_check_branch
      %942 = sbr.rel (0) target = $region37
    $region36: #{plain_seq2seq_forward.8} parent=1 // pred_region
      %943 = dma.done [#allocation3], 128
    $region37: #{plain_seq2seq_forward.8} parent=1 // pred_fallthru
      _
    %944 = vsyncpa [#allocation3], 1

// kernel: plain_seq2seq_forward.6
$region0: #{plain_seq2seq_forward.6}
  #allocation0 [shape = 'u32[]', space=smem, size = 0x4, offset = 0x4, fixed_abs, tag = 'smem constant byte address 0x4 - core index']
  #allocation1 [shape = 'u32[144,128]{1,0:T(1,128)}', space=vmem, size = 0x12000, scoped, tag = 'internal scratch']
  %s0 = inlined_call_operand.vmem [shape: f32[8,8,96], index: 0, kind: input, shape index: {}]
  %s1 = inlined_call_operand.vmem [shape: s32[8,1], index: 1, kind: input, shape index: {}]
  %s2 = inlined_call_operand.vmem [shape: f32[8,32], index: 2, kind: input, shape index: {}]
  %s3 = inlined_call_operand.vmem [shape: f32[32,96], index: 3, kind: input, shape index: {}]
  %s4 = inlined_call_operand.vmem [shape: f32[1,96], index: 4, kind: input, shape index: {}]
  %s5 = inlined_call_operand.hbm [shape: f32[8,8,32], index: 5, kind: output, shape index: {0}]
  %s6 = inlined_call_operand.vmem [shape: f32[8,32], index: 6, kind: output, shape index: {1}]
  %7 = xla_tuple %s5, %s6
  %s8 = sld [smem:[#allocation0]]
  $region38: #{plain_seq2seq_forward.6} parent=0
    _
  %s10 = ssub.s32 1, %s8
  %s11 = scalar_select 0, %s10, %s8
  $region1: #{plain_seq2seq_forward.6} parent=0
    #allocation2 [shape = 'u8[32768]{0}', space=vmem, size = 0x8000, scoped, tag = 'output window, operand 0, single buffered']
    #allocation3 [shape = 's32[1]{0}', space=sflag, size = 0x4, scoped, tag = 'scoped memory for plain_seq2seq_forward.6']
    %12 = vsyncpa [#allocation3], 0
    // Predicated region
    $region2: #{plain_seq2seq_forward.6} parent=1 // pred_check
      _
    $region3: #{plain_seq2seq_forward.6} parent=1 // pred_check_branch
      %14 = sbr.rel (0) target = $region5
    $region4: #{plain_seq2seq_forward.6} parent=1 // pred_region
      _
    $region5: #{plain_seq2seq_forward.6} parent=1 // pred_fallthru
      _
    // Predicated region
    $region6: #{plain_seq2seq_forward.6} parent=1 // pred_check
      _
    $region7: #{plain_seq2seq_forward.6} parent=1 // pred_check_branch
      %16 = sbr.rel (0) target = $region9
    $region8: #{plain_seq2seq_forward.6} parent=1 // pred_region
      _
    $region9: #{plain_seq2seq_forward.6} parent=1 // pred_fallthru
      _
    // Predicated region
    $region10: #{plain_seq2seq_forward.6} parent=1 // pred_check
      _
    $region11: #{plain_seq2seq_forward.6} parent=1 // pred_check_branch
      %18 = sbr.rel (0) target = $region13
    $region12: #{plain_seq2seq_forward.6} parent=1 // pred_region
      _
    $region13: #{plain_seq2seq_forward.6} parent=1 // pred_fallthru
      _
    // Predicated region
    $region14: #{plain_seq2seq_forward.6} parent=1 // pred_check
      _
    $region15: #{plain_seq2seq_forward.6} parent=1 // pred_check_branch
      %20 = sbr.rel (0) target = $region17
    $region16: #{plain_seq2seq_forward.6} parent=1 // pred_region
      _
    $region17: #{plain_seq2seq_forward.6} parent=1 // pred_fallthru
      _
    // Predicated region
    $region18: #{plain_seq2seq_forward.6} parent=1 // pred_check
      _
    $region19: #{plain_seq2seq_forward.6} parent=1 // pred_check_branch
      %22 = sbr.rel (0) target = $region21
    $region20: #{plain_seq2seq_forward.6} parent=1 // pred_region
      _
    $region21: #{plain_seq2seq_forward.6} parent=1 // pred_fallthru
      _
    %v23 = vld [vmem:[%s3] sm:$0xff]
    %v24 = vld [vmem:[%s3 + $0x8] sm:$0xff]
    %v25 = vld [vmem:[%s3 + $0x10] sm:$0xff]
    %v26 = vld [vmem:[%s3 + $0x18] sm:$0xff]
    %v27 = vld [vmem:[%s4] sm:$0x1]
    %v28 = vld [vmem:[%s1] sm:$0xff]
    %v29 = vld [vmem:[%s2] sm:$0xff]
    %v30 = vld [vmem:[%s0] sm:$0xff]
    %v32 = vlaneseq
    %v33 = vshrl.u32 %v32, 7
    %v34 = vsub.s32 0, %v33
    %v35 = vrot.slane %v27, %v34
    %vm37 = vcmask 261120
    %v39 = vsel %vm37, %v29, 0
    %41 = vmatprep.subr.mxu0 0.0
    %42 = vmatpush1.msra.mxu0 0.0
    %43 = vmatprep.subr.mxu0 0.0
    %44 = vmatpush1.msra.mxu0 0.0
    %45 = vmatprep.subr.mxu0 0.0
    %46 = vmatpush1.msra.mxu0 0.0
    %47 = vmatprep.subr.mxu0 0.0
    %48 = vmatpush1.msra.mxu0 0.0
    %49 = vmatprep.subr.mxu0 0.0
    %50 = vmatpush1.msra.mxu0 0.0
    %51 = vmatprep.subr.mxu0 0.0
    %52 = vmatpush1.msra.mxu0 0.0
    %53 = vmatprep.subr.mxu0 0.0
    %54 = vmatpush1.msra.mxu0 0.0
    %55 = vmatprep.subr.mxu0 0.0
    %56 = vmatpush1.msra.mxu0 0.0
    %57 = vmatprep.subr.mxu0 0.0
    %58 = vmatpush1.msra.mxu0 0.0
    %59 = vmatprep.subr.mxu0 0.0
    %60 = vmatpush1.msra.mxu0 0.0
    %61 = vmatprep.subr.mxu0 0.0
    %62 = vmatpush1.msra.mxu0 0.0
    %63 = vmatprep.subr.mxu0 0.0
    %64 = vmatpush1.msra.mxu0 0.0
    %65 = vmatprep.subr.mxu0 0.0
    %66 = vmatpush1.msra.mxu0 %v26
    %67 = vmatprep.subr.mxu0 0.0
    %68 = vmatpush1.msra.mxu0 %v25
    %69 = vmatprep.subr.mxu0 0.0
    %70 = vmatpush1.msra.mxu0 %v24
    %71 = vmatprep.subr.mxu0 0.0
    %72 = vmatpush1.msra.mxu0 %v23
    %73 = vmatprep.subr.mxu0 0.0
    %74 = vmatpush2.msra.mxu0 0.0
    %75 = vmatprep.subr.mxu0 0.0
    %76 = vmatpush2.msra.mxu0 0.0
    %77 = vmatprep.subr.mxu0 0.0
    %78 = vmatpush2.msra.mxu0 0.0
    %79 = vmatprep.subr.mxu0 0.0
    %80 = vmatpush2.msra.mxu0 0.0
    %81 = vmatprep.subr.mxu0 0.0
    %82 = vmatpush2.msra.mxu0 0.0
    %83 = vmatprep.subr.mxu0 0.0
    %84 = vmatpush2.msra.mxu0 0.0
    %85 = vmatprep.subr.mxu0 0.0
    %86 = vmatpush2.msra.mxu0 0.0
    %87 = vmatprep.subr.mxu0 0.0
    %88 = vmatpush2.msra.mxu0 0.0
    %89 = vmatprep.subr.mxu0 0.0
    %90 = vmatpush2.msra.mxu0 0.0
    %91 = vmatprep.subr.mxu0 0.0
    %92 = vmatpush2.msra.mxu0 0.0
    %93 = vmatprep.subr.mxu0 0.0
    %94 = vmatpush2.msra.mxu0 0.0
    %95 = vmatprep.subr.mxu0 0.0
    %96 = vmatpush2.msra.mxu0 0.0
    %97 = vmatprep.subr.mxu0 0.0
    %98 = vmatpush2.msra.mxu0 0.0
    %99 = vmatprep.subr.mxu0 0.0
    %100 = vmatpush2.msra.mxu0 0.0
    %101 = vmatprep.subr.mxu0 0.0
    %102 = vmatpush2.msra.mxu0 0.0
    %103 = vmatprep.subr.mxu0 0.0
    %104 = vmatpush2.msra.mxu0 0.0
    %105 = vmatprep.mubr.f32.mxu0 0.0
    %106 = vmatmul.mubr.f32.gmra.mxu0 %v39
    %v107 = vpop.f32.mrf.mxu0
    %v108 = vadd.f32 %v35, %v107
    %v109 = vpop.f32.mrf.mxu0
    %110 = vdwg.mxu0
    %v111 = vadd.f32 %v30, %v108
    %v112 = vxor.u32 %v111, 2147483648
    %v113 = vmul.f32 %v112, 1.442695
    %v114 = vpow.pop %v113
    %v115 = vadd.f32 %v114, 1.0
    %v116 = vrcp.pop %v115
    %v117 = vmul.f32 1.0, %v116
    %119 = vrot.lane.b32.xlu0 %v108, 64
    %v120 = vpop.permute.xlu0 %119
    %v122 = vmul.f32 %v117, %v120
    %124 = vrot.lane.b32.xlu0 %v122, 64
    %v125 = vpop.permute.xlu0 %124
    %v127 = vadd.f32 %v30, %v125
    %v128 = vtanh.pop %v127
    %v129 = vsub.f32 1.0, %v117
    %131 = vrot.lane.b32.xlu0 %v128, 96
    %v132 = vpop.permute.xlu0 %131
    %v134 = vmul.f32 %v129, %v132
    %135 = vrot.lane.b32.xlu0 %v29, 32
    %v136 = vpop.permute.xlu0 %135
    %v138 = vmul.f32 %v117, %v136
    %v139 = vadd.f32 %v134, %v138
    %vm140 = vcmp.gt.s32.totalorder %v28, 0
    %v141 = vsel %vm140, 1, 0
    %v142 = vcvt.s32.f32 %v141
    %144 = vset.pattern.permute.xlu0 0
    %145 = vperm.xlu0 %144, %v142
    %v146 = vpop.permute.xlu0 %145
    %v148 = vmul.f32 %v139, %v146
    %150 = vrot.lane.b32.xlu0 %v148, 96
    %v151 = vpop.permute.xlu0 %150
    %153 = vst.msk [vmem:[#allocation2] sm:$0xff] %vm37, %v151
    %v154 = vsub.f32 1.0, %v142
    %156 = vset.pattern.permute.xlu0 0
    %157 = vperm.xlu0 %156, %v154
    %v158 = vpop.permute.xlu0 %157
    %v160 = vmul.f32 %v158, %v29
    %162 = vrot.lane.b32.xlu0 %v160, 32
    %v163 = vpop.permute.xlu0 %162
    %v165 = vadd.f32 %v148, %v163
    %s166 = scalar_lea.vmem %s0, 8
    %v167 = vld [vmem:[%s166] sm:$0xff]
    %169 = vrot.lane.b32.xlu0 %v165, 96
    %v170 = vpop.permute.xlu0 %169
    %v171 = vsel %vm37, %v170, 0
    %173 = vmatprep.subr.mxu0 0.0
    %174 = vmatpush1.msra.mxu0 0.0
    %175 = vmatprep.subr.mxu0 0.0
    %176 = vmatpush1.msra.mxu0 0.0
    %177 = vmatprep.subr.mxu0 0.0
    %178 = vmatpush1.msra.mxu0 0.0
    %179 = vmatprep.subr.mxu0 0.0
    %180 = vmatpush1.msra.mxu0 0.0
    %181 = vmatprep.subr.mxu0 0.0
    %182 = vmatpush1.msra.mxu0 0.0
    %183 = vmatprep.subr.mxu0 0.0
    %184 = vmatpush1.msra.mxu0 0.0
    %185 = vmatprep.subr.mxu0 0.0
    %186 = vmatpush1.msra.mxu0 0.0
    %187 = vmatprep.subr.mxu0 0.0
    %188 = vmatpush1.msra.mxu0 0.0
    %189 = vmatprep.subr.mxu0 0.0
    %190 = vmatpush1.msra.mxu0 0.0
    %191 = vmatprep.subr.mxu0 0.0
    %192 = vmatpush1.msra.mxu0 0.0
    %193 = vmatprep.subr.mxu0 0.0
    %194 = vmatpush1.msra.mxu0 0.0
    %195 = vmatprep.subr.mxu0 0.0
    %196 = vmatpush1.msra.mxu0 0.0
    %197 = vmatprep.subr.mxu0 0.0
    %198 = vmatpush1.msra.mxu0 %v26
    %199 = vmatprep.subr.mxu0 0.0
    %200 = vmatpush1.msra.mxu0 %v25
    %201 = vmatprep.subr.mxu0 0.0
    %202 = vmatpush1.msra.mxu0 %v24
    %203 = vmatprep.subr.mxu0 0.0
    %204 = vmatpush1.msra.mxu0 %v23
    %205 = vmatprep.subr.mxu0 0.0
    %206 = vmatpush2.msra.mxu0 0.0
    %207 = vmatprep.subr.mxu0 0.0
    %208 = vmatpush2.msra.mxu0 0.0
    %209 = vmatprep.subr.mxu0 0.0
    %210 = vmatpush2.msra.mxu0 0.0
    %211 = vmatprep.subr.mxu0 0.0
    %212 = vmatpush2.msra.mxu0 0.0
    %213 = vmatprep.subr.mxu0 0.0
    %214 = vmatpush2.msra.mxu0 0.0
    %215 = vmatprep.subr.mxu0 0.0
    %216 = vmatpush2.msra.mxu0 0.0
    %217 = vmatprep.subr.mxu0 0.0
    %218 = vmatpush2.msra.mxu0 0.0
    %219 = vmatprep.subr.mxu0 0.0
    %220 = vmatpush2.msra.mxu0 0.0
    %221 = vmatprep.subr.mxu0 0.0
    %222 = vmatpush2.msra.mxu0 0.0
    %223 = vmatprep.subr.mxu0 0.0
    %224 = vmatpush2.msra.mxu0 0.0
    %225 = vmatprep.subr.mxu0 0.0
    %226 = vmatpush2.msra.mxu0 0.0
    %227 = vmatprep.subr.mxu0 0.0
    %228 = vmatpush2.msra.mxu0 0.0
    %229 = vmatprep.subr.mxu0 0.0
    %230 = vmatpush2.msra.mxu0 0.0
    %231 = vmatprep.subr.mxu0 0.0
    %232 = vmatpush2.msra.mxu0 0.0
    %233 = vmatprep.subr.mxu0 0.0
    %234 = vmatpush2.msra.mxu0 0.0
    %235 = vmatprep.subr.mxu0 0.0
    %236 = vmatpush2.msra.mxu0 0.0
    %237 = vmatprep.mubr.f32.mxu0 0.0
    %238 = vmatmul.mubr.f32.gmra.mxu0 %v171
    %v239 = vpop.f32.mrf.mxu0
    %v240 = vadd.f32 %v35, %v239
    %v241 = vpop.f32.mrf.mxu0
    %242 = vdwg.mxu0
    %v243 = vadd.f32 %v167, %v240
    %v244 = vxor.u32 %v243, 2147483648
    %v245 = vmul.f32 %v244, 1.442695
    %v246 = vpow.pop %v245
    %v247 = vadd.f32 %v246, 1.0
    %v248 = vrcp.pop %v247
    %v249 = vmul.f32 1.0, %v248
    %251 = vrot.lane.b32.xlu0 %v240, 64
    %v252 = vpop.permute.xlu0 %251
    %v254 = vmul.f32 %v249, %v252
    %256 = vrot.lane.b32.xlu0 %v254, 64
    %v257 = vpop.permute.xlu0 %256
    %v259 = vadd.f32 %v167, %v257
    %v260 = vtanh.pop %v259
    %v261 = vsub.f32 1.0, %v249
    %263 = vrot.lane.b32.xlu0 %v260, 96
    %v264 = vpop.permute.xlu0 %263
    %v266 = vmul.f32 %v261, %v264
    %v267 = vmul.f32 %v249, %v165
    %v268 = vadd.f32 %v266, %v267
    %vm269 = vcmp.gt.s32.totalorder %v28, 1
    %v270 = vsel %vm269, 1, 0
    %v271 = vcvt.s32.f32 %v270
    %273 = vset.pattern.permute.xlu0 0
    %274 = vperm.xlu0 %273, %v271
    %v275 = vpop.permute.xlu0 %274
    %v277 = vmul.f32 %v268, %v275
    %279 = vrot.lane.b32.xlu0 %v277, 96
    %v280 = vpop.permute.xlu0 %279
    %s282 = scalar_lea.vmem [#allocation2], 8
    %283 = vst.msk [vmem:[%s282] sm:$0xff] %vm37, %v280
    %v284 = vsub.f32 1.0, %v271
    %286 = vset.pattern.permute.xlu0 0
    %287 = vperm.xlu0 %286, %v284
    %v288 = vpop.permute.xlu0 %287
    %v290 = vmul.f32 %v288, %v165
    %v291 = vadd.f32 %v277, %v290
    %s292 = scalar_lea.vmem %s0, 16
    %v293 = vld [vmem:[%s292] sm:$0xff]
    %295 = vrot.lane.b32.xlu0 %v291, 96
    %v296 = vpop.permute.xlu0 %295
    %v297 = vsel %vm37, %v296, 0
    %299 = vmatprep.subr.mxu0 0.0
    %300 = vmatpush1.msra.mxu0 0.0
    %301 = vmatprep.subr.mxu0 0.0
    %302 = vmatpush1.msra.mxu0 0.0
    %303 = vmatprep.subr.mxu0 0.0
    %304 = vmatpush1.msra.mxu0 0.0
    %305 = vmatprep.subr.mxu0 0.0
    %306 = vmatpush1.msra.mxu0 0.0
    %307 = vmatprep.subr.mxu0 0.0
    %308 = vmatpush1.msra.mxu0 0.0
    %309 = vmatprep.subr.mxu0 0.0
    %310 = vmatpush1.msra.mxu0 0.0
    %311 = vmatprep.subr.mxu0 0.0
    %312 = vmatpush1.msra.mxu0 0.0
    %313 = vmatprep.subr.mxu0 0.0
    %314 = vmatpush1.msra.mxu0 0.0
    %315 = vmatprep.subr.mxu0 0.0
    %316 = vmatpush1.msra.mxu0 0.0
    %317 = vmatprep.subr.mxu0 0.0
    %318 = vmatpush1.msra.mxu0 0.0
    %319 = vmatprep.subr.mxu0 0.0
    %320 = vmatpush1.msra.mxu0 0.0
    %321 = vmatprep.subr.mxu0 0.0
    %322 = vmatpush1.msra.mxu0 0.0
    %323 = vmatprep.subr.mxu0 0.0
    %324 = vmatpush1.msra.mxu0 %v26
    %325 = vmatprep.subr.mxu0 0.0
    %326 = vmatpush1.msra.mxu0 %v25
    %327 = vmatprep.subr.mxu0 0.0
    %328 = vmatpush1.msra.mxu0 %v24
    %329 = vmatprep.subr.mxu0 0.0
    %330 = vmatpush1.msra.mxu0 %v23
    %331 = vmatprep.subr.mxu0 0.0
    %332 = vmatpush2.msra.mxu0 0.0
    %333 = vmatprep.subr.mxu0 0.0
    %334 = vmatpush2.msra.mxu0 0.0
    %335 = vmatprep.subr.mxu0 0.0
    %336 = vmatpush2.msra.mxu0 0.0
    %337 = vmatprep.subr.mxu0 0.0
    %338 = vmatpush2.msra.mxu0 0.0
    %339 = vmatprep.subr.mxu0 0.0
    %340 = vmatpush2.msra.mxu0 0.0
    %341 = vmatprep.subr.mxu0 0.0
    %342 = vmatpush2.msra.mxu0 0.0
    %343 = vmatprep.subr.mxu0 0.0
    %344 = vmatpush2.msra.mxu0 0.0
    %345 = vmatprep.subr.mxu0 0.0
    %346 = vmatpush2.msra.mxu0 0.0
    %347 = vmatprep.subr.mxu0 0.0
    %348 = vmatpush2.msra.mxu0 0.0
    %349 = vmatprep.subr.mxu0 0.0
    %350 = vmatpush2.msra.mxu0 0.0
    %351 = vmatprep.subr.mxu0 0.0
    %352 = vmatpush2.msra.mxu0 0.0
    %353 = vmatprep.subr.mxu0 0.0
    %354 = vmatpush2.msra.mxu0 0.0
    %355 = vmatprep.subr.mxu0 0.0
    %356 = vmatpush2.msra.mxu0 0.0
    %357 = vmatprep.subr.mxu0 0.0
    %358 = vmatpush2.msra.mxu0 0.0
    %359 = vmatprep.subr.mxu0 0.0
    %360 = vmatpush2.msra.mxu0 0.0
    %361 = vmatprep.subr.mxu0 0.0
    %362 = vmatpush2.msra.mxu0 0.0
    %363 = vmatprep.mubr.f32.mxu0 0.0
    %364 = vmatmul.mubr.f32.gmra.mxu0 %v297
    %v365 = vpop.f32.mrf.mxu0
    %v366 = vadd.f32 %v35, %v365
    %v367 = vpop.f32.mrf.mxu0
    %368 = vdwg.mxu0
    %v369 = vadd.f32 %v293, %v366
    %v370 = vxor.u32 %v369, 2147483648
    %v371 = vmul.f32 %v370, 1.442695
    %v372 = vpow.pop %v371
    %v373 = vadd.f32 %v372, 1.0
    %v374 = vrcp.pop %v373
    %v375 = vmul.f32 1.0, %v374
    %377 = vrot.lane.b32.xlu0 %v366, 64
    %v378 = vpop.permute.xlu0 %377
    %v380 = vmul.f32 %v375, %v378
    %382 = vrot.lane.b32.xlu0 %v380, 64
    %v383 = vpop.permute.xlu0 %382
    %v385 = vadd.f32 %v293, %v383
    %v386 = vtanh.pop %v385
    %v387 = vsub.f32 1.0, %v375
    %389 = vrot.lane.b32.xlu0 %v386, 96
    %v390 = vpop.permute.xlu0 %389
    %v392 = vmul.f32 %v387, %v390
    %v393 = vmul.f32 %v375, %v291
    %v394 = vadd.f32 %v392, %v393
    %vm395 = vcmp.gt.s32.totalorder %v28, 2
    %v396 = vsel %vm395, 1, 0
    %v397 = vcvt.s32.f32 %v396
    %399 = vset.pattern.permute.xlu0 0
    %400 = vperm.xlu0 %399, %v397
    %v401 = vpop.permute.xlu0 %400
    %v403 = vmul.f32 %v394, %v401
    %405 = vrot.lane.b32.xlu0 %v403, 96
    %v406 = vpop.permute.xlu0 %405
    %s408 = scalar_lea.vmem [#allocation2], 16
    %409 = vst.msk [vmem:[%s408] sm:$0xff] %vm37, %v406
    %v410 = vsub.f32 1.0, %v397
    %412 = vset.pattern.permute.xlu0 0
    %413 = vperm.xlu0 %412, %v410
    %v414 = vpop.permute.xlu0 %413
    %v416 = vmul.f32 %v414, %v291
    %v417 = vadd.f32 %v403, %v416
    %s418 = scalar_lea.vmem %s0, 24
    %v419 = vld [vmem:[%s418] sm:$0xff]
    %421 = vrot.lane.b32.xlu0 %v417, 96
    %v422 = vpop.permute.xlu0 %421
    %v423 = vsel %vm37, %v422, 0
    %425 = vmatprep.subr.mxu0 0.0
    %426 = vmatpush1.msra.mxu0 0.0
    %427 = vmatprep.subr.mxu0 0.0
    %428 = vmatpush1.msra.mxu0 0.0
    %429 = vmatprep.subr.mxu0 0.0
    %430 = vmatpush1.msra.mxu0 0.0
    %431 = vmatprep.subr.mxu0 0.0
    %432 = vmatpush1.msra.mxu0 0.0
    %433 = vmatprep.subr.mxu0 0.0
    %434 = vmatpush1.msra.mxu0 0.0
    %435 = vmatprep.subr.mxu0 0.0
    %436 = vmatpush1.msra.mxu0 0.0
    %437 = vmatprep.subr.mxu0 0.0
    %438 = vmatpush1.msra.mxu0 0.0
    %439 = vmatprep.subr.mxu0 0.0
    %440 = vmatpush1.msra.mxu0 0.0
    %441 = vmatprep.subr.mxu0 0.0
    %442 = vmatpush1.msra.mxu0 0.0
    %443 = vmatprep.subr.mxu0 0.0
    %444 = vmatpush1.msra.mxu0 0.0
    %445 = vmatprep.subr.mxu0 0.0
    %446 = vmatpush1.msra.mxu0 0.0
    %447 = vmatprep.subr.mxu0 0.0
    %448 = vmatpush1.msra.mxu0 0.0
    %449 = vmatprep.subr.mxu0 0.0
    %450 = vmatpush1.msra.mxu0 %v26
    %451 = vmatprep.subr.mxu0 0.0
    %452 = vmatpush1.msra.mxu0 %v25
    %453 = vmatprep.subr.mxu0 0.0
    %454 = vmatpush1.msra.mxu0 %v24
    %455 = vmatprep.subr.mxu0 0.0
    %456 = vmatpush1.msra.mxu0 %v23
    %457 = vmatprep.subr.mxu0 0.0
    %458 = vmatpush2.msra.mxu0 0.0
    %459 = vmatprep.subr.mxu0 0.0
    %460 = vmatpush2.msra.mxu0 0.0
    %461 = vmatprep.subr.mxu0 0.0
    %462 = vmatpush2.msra.mxu0 0.0
    %463 = vmatprep.subr.mxu0 0.0
    %464 = vmatpush2.msra.mxu0 0.0
    %465 = vmatprep.subr.mxu0 0.0
    %466 = vmatpush2.msra.mxu0 0.0
    %467 = vmatprep.subr.mxu0 0.0
    %468 = vmatpush2.msra.mxu0 0.0
    %469 = vmatprep.subr.mxu0 0.0
    %470 = vmatpush2.msra.mxu0 0.0
    %471 = vmatprep.subr.mxu0 0.0
    %472 = vmatpush2.msra.mxu0 0.0
    %473 = vmatprep.subr.mxu0 0.0
    %474 = vmatpush2.msra.mxu0 0.0
    %475 = vmatprep.subr.mxu0 0.0
    %476 = vmatpush2.msra.mxu0 0.0
    %477 = vmatprep.subr.mxu0 0.0
    %478 = vmatpush2.msra.mxu0 0.0
    %479 = vmatprep.subr.mxu0 0.0
    %480 = vmatpush2.msra.mxu0 0.0
    %481 = vmatprep.subr.mxu0 0.0
    %482 = vmatpush2.msra.mxu0 0.0
    %483 = vmatprep.subr.mxu0 0.0
    %484 = vmatpush2.msra.mxu0 0.0
    %485 = vmatprep.subr.mxu0 0.0
    %486 = vmatpush2.msra.mxu0 0.0
    %487 = vmatprep.subr.mxu0 0.0
    %488 = vmatpush2.msra.mxu0 0.0
    %489 = vmatprep.mubr.f32.mxu0 0.0
    %490 = vmatmul.mubr.f32.gmra.mxu0 %v423
    %v491 = vpop.f32.mrf.mxu0
    %v492 = vadd.f32 %v35, %v491
    %v493 = vpop.f32.mrf.mxu0
    %494 = vdwg.mxu0
    %v495 = vadd.f32 %v419, %v492
    %v496 = vxor.u32 %v495, 2147483648
    %v497 = vmul.f32 %v496, 1.442695
    %v498 = vpow.pop %v497
    %v499 = vadd.f32 %v498, 1.0
    %v500 = vrcp.pop %v499
    %v501 = vmul.f32 1.0, %v500
    %503 = vrot.lane.b32.xlu0 %v492, 64
    %v504 = vpop.permute.xlu0 %503
    %v506 = vmul.f32 %v501, %v504
    %508 = vrot.lane.b32.xlu0 %v506, 64
    %v509 = vpop.permute.xlu0 %508
    %v511 = vadd.f32 %v419, %v509
    %v512 = vtanh.pop %v511
    %v513 = vsub.f32 1.0, %v501
    %515 = vrot.lane.b32.xlu0 %v512, 96
    %v516 = vpop.permute.xlu0 %515
    %v518 = vmul.f32 %v513, %v516
    %v519 = vmul.f32 %v501, %v417
    %v520 = vadd.f32 %v518, %v519
    %vm521 = vcmp.gt.s32.totalorder %v28, 3
    %v522 = vsel %vm521, 1, 0
    %v523 = vcvt.s32.f32 %v522
    %525 = vset.pattern.permute.xlu0 0
    %526 = vperm.xlu0 %525, %v523
    %v527 = vpop.permute.xlu0 %526
    %v529 = vmul.f32 %v520, %v527
    %531 = vrot.lane.b32.xlu0 %v529, 96
    %v532 = vpop.permute.xlu0 %531
    %s534 = scalar_lea.vmem [#allocation2], 24
    %535 = vst.msk [vmem:[%s534] sm:$0xff] %vm37, %v532
    %v536 = vsub.f32 1.0, %v523
    %538 = vset.pattern.permute.xlu0 0
    %539 = vperm.xlu0 %538, %v536
    %v540 = vpop.permute.xlu0 %539
    %v542 = vmul.f32 %v540, %v417
    %v543 = vadd.f32 %v529, %v542
    %s544 = scalar_lea.vmem %s0, 32
    %v545 = vld [vmem:[%s544] sm:$0xff]
    %547 = vrot.lane.b32.xlu0 %v543, 96
    %v548 = vpop.permute.xlu0 %547
    %v549 = vsel %vm37, %v548, 0
    %551 = vmatprep.subr.mxu0 0.0
    %552 = vmatpush1.msra.mxu0 0.0
    %553 = vmatprep.subr.mxu0 0.0
    %554 = vmatpush1.msra.mxu0 0.0
    %555 = vmatprep.subr.mxu0 0.0
    %556 = vmatpush1.msra.mxu0 0.0
    %557 = vmatprep.subr.mxu0 0.0
    %558 = vmatpush1.msra.mxu0 0.0
    %559 = vmatprep.subr.mxu0 0.0
    %560 = vmatpush1.msra.mxu0 0.0
    %561 = vmatprep.subr.mxu0 0.0
    %562 = vmatpush1.msra.mxu0 0.0
    %563 = vmatprep.subr.mxu0 0.0
    %564 = vmatpush1.msra.mxu0 0.0
    %565 = vmatprep.subr.mxu0 0.0
    %566 = vmatpush1.msra.mxu0 0.0
    %567 = vmatprep.subr.mxu0 0.0
    %568 = vmatpush1.msra.mxu0 0.0
    %569 = vmatprep.subr.mxu0 0.0
    %570 = vmatpush1.msra.mxu0 0.0
    %571 = vmatprep.subr.mxu0 0.0
    %572 = vmatpush1.msra.mxu0 0.0
    %573 = vmatprep.subr.mxu0 0.0
    %574 = vmatpush1.msra.mxu0 0.0
    %575 = vmatprep.subr.mxu0 0.0
    %576 = vmatpush1.msra.mxu0 %v26
    %577 = vmatprep.subr.mxu0 0.0
    %578 = vmatpush1.msra.mxu0 %v25
    %579 = vmatprep.subr.mxu0 0.0
    %580 = vmatpush1.msra.mxu0 %v24
    %581 = vmatprep.subr.mxu0 0.0
    %582 = vmatpush1.msra.mxu0 %v23
    %583 = vmatprep.subr.mxu0 0.0
    %584 = vmatpush2.msra.mxu0 0.0
    %585 = vmatprep.subr.mxu0 0.0
    %586 = vmatpush2.msra.mxu0 0.0
    %587 = vmatprep.subr.mxu0 0.0
    %588 = vmatpush2.msra.mxu0 0.0
    %589 = vmatprep.subr.mxu0 0.0
    %590 = vmatpush2.msra.mxu0 0.0
    %591 = vmatprep.subr.mxu0 0.0
    %592 = vmatpush2.msra.mxu0 0.0
    %593 = vmatprep.subr.mxu0 0.0
    %594 = vmatpush2.msra.mxu0 0.0
    %595 = vmatprep.subr.mxu0 0.0
    %596 = vmatpush2.msra.mxu0 0.0
    %597 = vmatprep.subr.mxu0 0.0
    %598 = vmatpush2.msra.mxu0 0.0
    %599 = vmatprep.subr.mxu0 0.0
    %600 = vmatpush2.msra.mxu0 0.0
    %601 = vmatprep.subr.mxu0 0.0
    %602 = vmatpush2.msra.mxu0 0.0
    %603 = vmatprep.subr.mxu0 0.0
    %604 = vmatpush2.msra.mxu0 0.0
    %605 = vmatprep.subr.mxu0 0.0
    %606 = vmatpush2.msra.mxu0 0.0
    %607 = vmatprep.subr.mxu0 0.0
    %608 = vmatpush2.msra.mxu0 0.0
    %609 = vmatprep.subr.mxu0 0.0
    %610 = vmatpush2.msra.mxu0 0.0
    %611 = vmatprep.subr.mxu0 0.0
    %612 = vmatpush2.msra.mxu0 0.0
    %613 = vmatprep.subr.mxu0 0.0
    %614 = vmatpush2.msra.mxu0 0.0
    %615 = vmatprep.mubr.f32.mxu0 0.0
    %616 = vmatmul.mubr.f32.gmra.mxu0 %v549
    %v617 = vpop.f32.mrf.mxu0
    %v618 = vadd.f32 %v35, %v617
    %v619 = vpop.f32.mrf.mxu0
    %620 = vdwg.mxu0
    %v621 = vadd.f32 %v545, %v618
    %v622 = vxor.u32 %v621, 2147483648
    %v623 = vmul.f32 %v622, 1.442695
    %v624 = vpow.pop %v623
    %v625 = vadd.f32 %v624, 1.0
    %v626 = vrcp.pop %v625
    %v627 = vmul.f32 1.0, %v626
    %629 = vrot.lane.b32.xlu0 %v618, 64
    %v630 = vpop.permute.xlu0 %629
    %v632 = vmul.f32 %v627, %v630
    %634 = vrot.lane.b32.xlu0 %v632, 64
    %v635 = vpop.permute.xlu0 %634
    %v637 = vadd.f32 %v545, %v635
    %v638 = vtanh.pop %v637
    %v639 = vsub.f32 1.0, %v627
    %641 = vrot.lane.b32.xlu0 %v638, 96
    %v642 = vpop.permute.xlu0 %641
    %v644 = vmul.f32 %v639, %v642
    %v645 = vmul.f32 %v627, %v543
    %v646 = vadd.f32 %v644, %v645
    %vm647 = vcmp.gt.s32.totalorder %v28, 4
    %v648 = vsel %vm647, 1, 0
    %v649 = vcvt.s32.f32 %v648
    %651 = vset.pattern.permute.xlu0 0
    %652 = vperm.xlu0 %651, %v649
    %v653 = vpop.permute.xlu0 %652
    %v655 = vmul.f32 %v646, %v653
    %657 = vrot.lane.b32.xlu0 %v655, 96
    %v658 = vpop.permute.xlu0 %657
    %s660 = scalar_lea.vmem [#allocation2], 32
    %661 = vst.msk [vmem:[%s660] sm:$0xff] %vm37, %v658
    %v662 = vsub.f32 1.0, %v649
    %664 = vset.pattern.permute.xlu0 0
    %665 = vperm.xlu0 %664, %v662
    %v666 = vpop.permute.xlu0 %665
    %v668 = vmul.f32 %v666, %v543
    %v669 = vadd.f32 %v655, %v668
    %s670 = scalar_lea.vmem %s0, 40
    %v671 = vld [vmem:[%s670] sm:$0xff]
    %673 = vrot.lane.b32.xlu0 %v669, 96
    %v674 = vpop.permute.xlu0 %673
    %v675 = vsel %vm37, %v674, 0
    %677 = vmatprep.subr.mxu0 0.0
    %678 = vmatpush1.msra.mxu0 0.0
    %679 = vmatprep.subr.mxu0 0.0
    %680 = vmatpush1.msra.mxu0 0.0
    %681 = vmatprep.subr.mxu0 0.0
    %682 = vmatpush1.msra.mxu0 0.0
    %683 = vmatprep.subr.mxu0 0.0
    %684 = vmatpush1.msra.mxu0 0.0
    %685 = vmatprep.subr.mxu0 0.0
    %686 = vmatpush1.msra.mxu0 0.0
    %687 = vmatprep.subr.mxu0 0.0
    %688 = vmatpush1.msra.mxu0 0.0
    %689 = vmatprep.subr.mxu0 0.0
    %690 = vmatpush1.msra.mxu0 0.0
    %691 = vmatprep.subr.mxu0 0.0
    %692 = vmatpush1.msra.mxu0 0.0
    %693 = vmatprep.subr.mxu0 0.0
    %694 = vmatpush1.msra.mxu0 0.0
    %695 = vmatprep.subr.mxu0 0.0
    %696 = vmatpush1.msra.mxu0 0.0
    %697 = vmatprep.subr.mxu0 0.0
    %698 = vmatpush1.msra.mxu0 0.0
    %699 = vmatprep.subr.mxu0 0.0
    %700 = vmatpush1.msra.mxu0 0.0
    %701 = vmatprep.subr.mxu0 0.0
    %702 = vmatpush1.msra.mxu0 %v26
    %703 = vmatprep.subr.mxu0 0.0
    %704 = vmatpush1.msra.mxu0 %v25
    %705 = vmatprep.subr.mxu0 0.0
    %706 = vmatpush1.msra.mxu0 %v24
    %707 = vmatprep.subr.mxu0 0.0
    %708 = vmatpush1.msra.mxu0 %v23
    %709 = vmatprep.subr.mxu0 0.0
    %710 = vmatpush2.msra.mxu0 0.0
    %711 = vmatprep.subr.mxu0 0.0
    %712 = vmatpush2.msra.mxu0 0.0
    %713 = vmatprep.subr.mxu0 0.0
    %714 = vmatpush2.msra.mxu0 0.0
    %715 = vmatprep.subr.mxu0 0.0
    %716 = vmatpush2.msra.mxu0 0.0
    %717 = vmatprep.subr.mxu0 0.0
    %718 = vmatpush2.msra.mxu0 0.0
    %719 = vmatprep.subr.mxu0 0.0
    %720 = vmatpush2.msra.mxu0 0.0
    %721 = vmatprep.subr.mxu0 0.0
    %722 = vmatpush2.msra.mxu0 0.0
    %723 = vmatprep.subr.mxu0 0.0
    %724 = vmatpush2.msra.mxu0 0.0
    %725 = vmatprep.subr.mxu0 0.0
    %726 = vmatpush2.msra.mxu0 0.0
    %727 = vmatprep.subr.mxu0 0.0
    %728 = vmatpush2.msra.mxu0 0.0
    %729 = vmatprep.subr.mxu0 0.0
    %730 = vmatpush2.msra.mxu0 0.0
    %731 = vmatprep.subr.mxu0 0.0
    %732 = vmatpush2.msra.mxu0 0.0
    %733 = vmatprep.subr.mxu0 0.0
    %734 = vmatpush2.msra.mxu0 0.0
    %735 = vmatprep.subr.mxu0 0.0
    %736 = vmatpush2.msra.mxu0 0.0
    %737 = vmatprep.subr.mxu0 0.0
    %738 = vmatpush2.msra.mxu0 0.0
    %739 = vmatprep.subr.mxu0 0.0
    %740 = vmatpush2.msra.mxu0 0.0
    %741 = vmatprep.mubr.f32.mxu0 0.0
    %742 = vmatmul.mubr.f32.gmra.mxu0 %v675
    %v743 = vpop.f32.mrf.mxu0
    %v744 = vadd.f32 %v35, %v743
    %v745 = vpop.f32.mrf.mxu0
    %746 = vdwg.mxu0
    %v747 = vadd.f32 %v671, %v744
    %v748 = vxor.u32 %v747, 2147483648
    %v749 = vmul.f32 %v748, 1.442695
    %v750 = vpow.pop %v749
    %v751 = vadd.f32 %v750, 1.0
    %v752 = vrcp.pop %v751
    %v753 = vmul.f32 1.0, %v752
    %755 = vrot.lane.b32.xlu0 %v744, 64
    %v756 = vpop.permute.xlu0 %755
    %v758 = vmul.f32 %v753, %v756
    %760 = vrot.lane.b32.xlu0 %v758, 64
    %v761 = vpop.permute.xlu0 %760
    %v763 = vadd.f32 %v671, %v761
    %v764 = vtanh.pop %v763
    %v765 = vsub.f32 1.0, %v753
    %767 = vrot.lane.b32.xlu0 %v764, 96
    %v768 = vpop.permute.xlu0 %767
    %v770 = vmul.f32 %v765, %v768
    %v771 = vmul.f32 %v753, %v669
    %v772 = vadd.f32 %v770, %v771
    %vm773 = vcmp.gt.s32.totalorder %v28, 5
    %v774 = vsel %vm773, 1, 0
    %v775 = vcvt.s32.f32 %v774
    %777 = vset.pattern.permute.xlu0 0
    %778 = vperm.xlu0 %777, %v775
    %v779 = vpop.permute.xlu0 %778
    %v781 = vmul.f32 %v772, %v779
    %783 = vrot.lane.b32.xlu0 %v781, 96
    %v784 = vpop.permute.xlu0 %783
    %s786 = scalar_lea.vmem [#allocation2], 40
    %787 = vst.msk [vmem:[%s786] sm:$0xff] %vm37, %v784
    %v788 = vsub.f32 1.0, %v775
    %790 = vset.pattern.permute.xlu0 0
    %791 = vperm.xlu0 %790, %v788
    %v792 = vpop.permute.xlu0 %791
    %v794 = vmul.f32 %v792, %v669
    %v795 = vadd.f32 %v781, %v794
    %s796 = scalar_lea.vmem %s0, 48
    %v797 = vld [vmem:[%s796] sm:$0xff]
    %799 = vrot.lane.b32.xlu0 %v795, 96
    %v800 = vpop.permute.xlu0 %799
    %v801 = vsel %vm37, %v800, 0
    %803 = vmatprep.subr.mxu0 0.0
    %804 = vmatpush1.msra.mxu0 0.0
    %805 = vmatprep.subr.mxu0 0.0
    %806 = vmatpush1.msra.mxu0 0.0
    %807 = vmatprep.subr.mxu0 0.0
    %808 = vmatpush1.msra.mxu0 0.0
    %809 = vmatprep.subr.mxu0 0.0
    %810 = vmatpush1.msra.mxu0 0.0
    %811 = vmatprep.subr.mxu0 0.0
    %812 = vmatpush1.msra.mxu0 0.0
    %813 = vmatprep.subr.mxu0 0.0
    %814 = vmatpush1.msra.mxu0 0.0
    %815 = vmatprep.subr.mxu0 0.0
    %816 = vmatpush1.msra.mxu0 0.0
    %817 = vmatprep.subr.mxu0 0.0
    %818 = vmatpush1.msra.mxu0 0.0
    %819 = vmatprep.subr.mxu0 0.0
    %820 = vmatpush1.msra.mxu0 0.0
    %821 = vmatprep.subr.mxu0 0.0
    %822 = vmatpush1.msra.mxu0 0.0
    %823 = vmatprep.subr.mxu0 0.0
    %824 = vmatpush1.msra.mxu0 0.0
    %825 = vmatprep.subr.mxu0 0.0
    %826 = vmatpush1.msra.mxu0 0.0
    %827 = vmatprep.subr.mxu0 0.0
    %828 = vmatpush1.msra.mxu0 %v26
    %829 = vmatprep.subr.mxu0 0.0
    %830 = vmatpush1.msra.mxu0 %v25
    %831 = vmatprep.subr.mxu0 0.0
    %832 = vmatpush1.msra.mxu0 %v24
    %833 = vmatprep.subr.mxu0 0.0
    %834 = vmatpush1.msra.mxu0 %v23
    %835 = vmatprep.subr.mxu0 0.0
    %836 = vmatpush2.msra.mxu0 0.0
    %837 = vmatprep.subr.mxu0 0.0
    %838 = vmatpush2.msra.mxu0 0.0
    %839 = vmatprep.subr.mxu0 0.0
    %840 = vmatpush2.msra.mxu0 0.0
    %841 = vmatprep.subr.mxu0 0.0
    %842 = vmatpush2.msra.mxu0 0.0
    %843 = vmatprep.subr.mxu0 0.0
    %844 = vmatpush2.msra.mxu0 0.0
    %845 = vmatprep.subr.mxu0 0.0
    %846 = vmatpush2.msra.mxu0 0.0
    %847 = vmatprep.subr.mxu0 0.0
    %848 = vmatpush2.msra.mxu0 0.0
    %849 = vmatprep.subr.mxu0 0.0
    %850 = vmatpush2.msra.mxu0 0.0
    %851 = vmatprep.subr.mxu0 0.0
    %852 = vmatpush2.msra.mxu0 0.0
    %853 = vmatprep.subr.mxu0 0.0
    %854 = vmatpush2.msra.mxu0 0.0
    %855 = vmatprep.subr.mxu0 0.0
    %856 = vmatpush2.msra.mxu0 0.0
    %857 = vmatprep.subr.mxu0 0.0
    %858 = vmatpush2.msra.mxu0 0.0
    %859 = vmatprep.subr.mxu0 0.0
    %860 = vmatpush2.msra.mxu0 0.0
    %861 = vmatprep.subr.mxu0 0.0
    %862 = vmatpush2.msra.mxu0 0.0
    %863 = vmatprep.subr.mxu0 0.0
    %864 = vmatpush2.msra.mxu0 0.0
    %865 = vmatprep.subr.mxu0 0.0
    %866 = vmatpush2.msra.mxu0 0.0
    %867 = vmatprep.mubr.f32.mxu0 0.0
    %868 = vmatmul.mubr.f32.gmra.mxu0 %v801
    %v869 = vpop.f32.mrf.mxu0
    %v870 = vadd.f32 %v35, %v869
    %v871 = vpop.f32.mrf.mxu0
    %872 = vdwg.mxu0
    %v873 = vadd.f32 %v797, %v870
    %v874 = vxor.u32 %v873, 2147483648
    %v875 = vmul.f32 %v874, 1.442695
    %v876 = vpow.pop %v875
    %v877 = vadd.f32 %v876, 1.0
    %v878 = vrcp.pop %v877
    %v879 = vmul.f32 1.0, %v878
    %881 = vrot.lane.b32.xlu0 %v870, 64
    %v882 = vpop.permute.xlu0 %881
    %v884 = vmul.f32 %v879, %v882
    %886 = vrot.lane.b32.xlu0 %v884, 64
    %v887 = vpop.permute.xlu0 %886
    %v889 = vadd.f32 %v797, %v887
    %v890 = vtanh.pop %v889
    %v891 = vsub.f32 1.0, %v879
    %893 = vrot.lane.b32.xlu0 %v890, 96
    %v894 = vpop.permute.xlu0 %893
    %v896 = vmul.f32 %v891, %v894
    %v897 = vmul.f32 %v879, %v795
    %v898 = vadd.f32 %v896, %v897
    %vm899 = vcmp.gt.s32.totalorder %v28, 6
    %v900 = vsel %vm899, 1, 0
    %v901 = vcvt.s32.f32 %v900
    %903 = vset.pattern.permute.xlu0 0
    %904 = vperm.xlu0 %903, %v901
    %v905 = vpop.permute.xlu0 %904
    %v907 = vmul.f32 %v898, %v905
    %909 = vrot.lane.b32.xlu0 %v907, 96
    %v910 = vpop.permute.xlu0 %909
    %s912 = scalar_lea.vmem [#allocation2], 48
    %913 = vst.msk [vmem:[%s912] sm:$0xff] %vm37, %v910
    %v914 = vsub.f32 1.0, %v901
    %916 = vset.pattern.permute.xlu0 0
    %917 = vperm.xlu0 %916, %v914
    %v918 = vpop.permute.xlu0 %917
    %v920 = vmul.f32 %v918, %v795
    %v921 = vadd.f32 %v907, %v920
    %s922 = scalar_lea.vmem %s0, 56
    %v923 = vld [vmem:[%s922] sm:$0xff]
    %925 = vrot.lane.b32.xlu0 %v921, 96
    %v926 = vpop.permute.xlu0 %925
    %v927 = vsel %vm37, %v926, 0
    %929 = vmatprep.subr.mxu0 0.0
    %930 = vmatpush1.msra.mxu0 0.0
    %931 = vmatprep.subr.mxu0 0.0
    %932 = vmatpush1.msra.mxu0 0.0
    %933 = vmatprep.subr.mxu0 0.0
    %934 = vmatpush1.msra.mxu0 0.0
    %935 = vmatprep.subr.mxu0 0.0
    %936 = vmatpush1.msra.mxu0 0.0
    %937 = vmatprep.subr.mxu0 0.0
    %938 = vmatpush1.msra.mxu0 0.0
    %939 = vmatprep.subr.mxu0 0.0
    %940 = vmatpush1.msra.mxu0 0.0
    %941 = vmatprep.subr.mxu0 0.0
    %942 = vmatpush1.msra.mxu0 0.0
    %943 = vmatprep.subr.mxu0 0.0
    %944 = vmatpush1.msra.mxu0 0.0
    %945 = vmatprep.subr.mxu0 0.0
    %946 = vmatpush1.msra.mxu0 0.0
    %947 = vmatprep.subr.mxu0 0.0
    %948 = vmatpush1.msra.mxu0 0.0
    %949 = vmatprep.subr.mxu0 0.0
    %950 = vmatpush1.msra.mxu0 0.0
    %951 = vmatprep.subr.mxu0 0.0
    %952 = vmatpush1.msra.mxu0 0.0
    %953 = vmatprep.subr.mxu0 0.0
    %954 = vmatpush1.msra.mxu0 %v26
    %955 = vmatprep.subr.mxu0 0.0
    %956 = vmatpush1.msra.mxu0 %v25
    %957 = vmatprep.subr.mxu0 0.0
    %958 = vmatpush1.msra.mxu0 %v24
    %959 = vmatprep.subr.mxu0 0.0
    %960 = vmatpush1.msra.mxu0 %v23
    %961 = vmatprep.subr.mxu0 0.0
    %962 = vmatpush2.msra.mxu0 0.0
    %963 = vmatprep.subr.mxu0 0.0
    %964 = vmatpush2.msra.mxu0 0.0
    %965 = vmatprep.subr.mxu0 0.0
    %966 = vmatpush2.msra.mxu0 0.0
    %967 = vmatprep.subr.mxu0 0.0
    %968 = vmatpush2.msra.mxu0 0.0
    %969 = vmatprep.subr.mxu0 0.0
    %970 = vmatpush2.msra.mxu0 0.0
    %971 = vmatprep.subr.mxu0 0.0
    %972 = vmatpush2.msra.mxu0 0.0
    %973 = vmatprep.subr.mxu0 0.0
    %974 = vmatpush2.msra.mxu0 0.0
    %975 = vmatprep.subr.mxu0 0.0
    %976 = vmatpush2.msra.mxu0 0.0
    %977 = vmatprep.subr.mxu0 0.0
    %978 = vmatpush2.msra.mxu0 0.0
    %979 = vmatprep.subr.mxu0 0.0
    %980 = vmatpush2.msra.mxu0 0.0
    %981 = vmatprep.subr.mxu0 0.0
    %982 = vmatpush2.msra.mxu0 0.0
    %983 = vmatprep.subr.mxu0 0.0
    %984 = vmatpush2.msra.mxu0 0.0
    %985 = vmatprep.subr.mxu0 0.0
    %986 = vmatpush2.msra.mxu0 0.0
    %987 = vmatprep.subr.mxu0 0.0
    %988 = vmatpush2.msra.mxu0 0.0
    %989 = vmatprep.subr.mxu0 0.0
    %990 = vmatpush2.msra.mxu0 0.0
    %991 = vmatprep.subr.mxu0 0.0
    %992 = vmatpush2.msra.mxu0 0.0
    %993 = vmatprep.mubr.f32.mxu0 0.0
    %994 = vmatmul.mubr.f32.gmra.mxu0 %v927
    %v995 = vpop.f32.mrf.mxu0
    %v996 = vadd.f32 %v35, %v995
    %v997 = vpop.f32.mrf.mxu0
    %998 = vdwg.mxu0
    %v999 = vadd.f32 %v923, %v996
    %v1000 = vxor.u32 %v999, 2147483648
    %v1001 = vmul.f32 %v1000, 1.442695
    %v1002 = vpow.pop %v1001
    %v1003 = vadd.f32 %v1002, 1.0
    %v1004 = vrcp.pop %v1003
    %v1005 = vmul.f32 1.0, %v1004
    %1007 = vrot.lane.b32.xlu0 %v996, 64
    %v1008 = vpop.permute.xlu0 %1007
    %v1010 = vmul.f32 %v1005, %v1008
    %1012 = vrot.lane.b32.xlu0 %v1010, 64
    %v1013 = vpop.permute.xlu0 %1012
    %v1015 = vadd.f32 %v923, %v1013
    %v1016 = vtanh.pop %v1015
    %v1017 = vsub.f32 1.0, %v1005
    %1019 = vrot.lane.b32.xlu0 %v1016, 96
    %v1020 = vpop.permute.xlu0 %1019
    %v1022 = vmul.f32 %v1017, %v1020
    %v1023 = vmul.f32 %v1005, %v921
    %v1024 = vadd.f32 %v1022, %v1023
    %vm1025 = vcmp.gt.s32.totalorder %v28, 7
    %v1026 = vsel %vm1025, 1, 0
    %v1027 = vcvt.s32.f32 %v1026
    %1029 = vset.pattern.permute.xlu0 0
    %1030 = vperm.xlu0 %1029, %v1027
    %v1031 = vpop.permute.xlu0 %1030
    %v1033 = vmul.f32 %v1024, %v1031
    %1035 = vrot.lane.b32.xlu0 %v1033, 96
    %v1036 = vpop.permute.xlu0 %1035
    %s1038 = scalar_lea.vmem [#allocation2], 56
    %1039 = vst.msk [vmem:[%s1038] sm:$0xff] %vm37, %v1036
    %v1040 = vsub.f32 1.0, %v1027
    %1042 = vset.pattern.permute.xlu0 0
    %1043 = vperm.xlu0 %1042, %v1040
    %v1044 = vpop.permute.xlu0 %1043
    %v1046 = vmul.f32 %v1044, %v921
    %v1047 = vadd.f32 %v1033, %v1046
    %1049 = vrot.lane.b32.xlu0 %v1047, 96
    %v1050 = vpop.permute.xlu0 %1049
    %1052 = vst.msk [vmem:[%s6] sm:$0xff] %vm37, %v1050
    // Predicated region
    $region22: #{plain_seq2seq_forward.6} parent=1 // pred_check
      _
    $region23: #{plain_seq2seq_forward.6} parent=1 // pred_check_branch
      %1054 = sbr.rel (0) target = $region25
    $region24: #{plain_seq2seq_forward.6} parent=1 // pred_region
      %s1056 = ssub.s32 1024, 1024
      %1057 = vsyncadd [#allocation3], %s1056
      %s1058 = sshll.u32 [#allocation2], 4
      %s1059 = int_to_ptr.vmem [resolvable:$true] %s1058
      %1064 = dma.vmem_to_hbm [thread:$0]  %s1059, 1024, %s5, [#allocation3], 128, 128, 8
    $region25: #{plain_seq2seq_forward.6} parent=1 // pred_fallthru
      _
    // Predicated region
    $region26: #{plain_seq2seq_forward.6} parent=1 // pred_check
      _
    $region27: #{plain_seq2seq_forward.6} parent=1 // pred_check_branch
      %1066 = sbr.rel (0) target = $region29
    $region28: #{plain_seq2seq_forward.6} parent=1 // pred_region
      _
    $region29: #{plain_seq2seq_forward.6} parent=1 // pred_fallthru
      _
    // Predicated region
    $region30: #{plain_seq2seq_forward.6} parent=1 // pred_check
      _
    $region31: #{plain_seq2seq_forward.6} parent=1 // pred_check_branch
      %1068 = sbr.rel (0) target = $region33
    $region32: #{plain_seq2seq_forward.6} parent=1 // pred_region
      %1069 = dma.done [#allocation3], 1024
    $region33: #{plain_seq2seq_forward.6} parent=1 // pred_fallthru
      _
    // Predicated region
    $region34: #{plain_seq2seq_forward.6} parent=1 // pred_check
      _
    $region35: #{plain_seq2seq_forward.6} parent=1 // pred_check_branch
      %1071 = sbr.rel (0) target = $region37
    $region36: #{plain_seq2seq_forward.6} parent=1 // pred_region
      _
    $region37: #{plain_seq2seq_forward.6} parent=1 // pred_fallthru
      _
    %1072 = vsyncpa [#allocation3], 1

// kernel: plain_seq2seq_forward.9
$region0: #{plain_seq2seq_forward.9}
  #allocation0 [shape = 'u32[]', space=smem, size = 0x4, offset = 0x4, fixed_abs, tag = 'smem constant byte address 0x4 - core index']
  #allocation1 [shape = 'u32[144,128]{1,0:T(1,128)}', space=vmem, size = 0x12000, scoped, tag = 'internal scratch']
  %s0 = inlined_call_operand.vmem [shape: f32[56,32], index: 0, kind: input, shape index: {}]
  %s1 = inlined_call_operand.vmem [shape: f32[32,60], index: 1, kind: input, shape index: {}]
  %s2 = inlined_call_operand.vmem [shape: f32[1,60], index: 2, kind: input, shape index: {}]
  %s3 = inlined_call_operand.vmem [shape: f32[56,60], index: 3, kind: output, shape index: {}]
  %s4 = sld [smem:[#allocation0]]
  $region22: #{plain_seq2seq_forward.9} parent=0
    _
  %s6 = ssub.s32 1, %s4
  %s7 = scalar_select 0, %s6, %s4
  // Predicated region
  $region2: #{plain_seq2seq_forward.9} parent=0 // pred_check
    _
  $region3: #{plain_seq2seq_forward.9} parent=0 // pred_check_branch
    %9 = sbr.rel (0) target = $region5
  $region4: #{plain_seq2seq_forward.9} parent=0 // pred_region
    _
  $region5: #{plain_seq2seq_forward.9} parent=0 // pred_fallthru
    _
  // Predicated region
  $region6: #{plain_seq2seq_forward.9} parent=0 // pred_check
    _
  $region7: #{plain_seq2seq_forward.9} parent=0 // pred_check_branch
    %11 = sbr.rel (0) target = $region9
  $region8: #{plain_seq2seq_forward.9} parent=0 // pred_region
    _
  $region9: #{plain_seq2seq_forward.9} parent=0 // pred_fallthru
    _
  // Predicated region
  $region10: #{plain_seq2seq_forward.9} parent=0 // pred_check
    _
  $region11: #{plain_seq2seq_forward.9} parent=0 // pred_check_branch
    %13 = sbr.rel (0) target = $region13
  $region12: #{plain_seq2seq_forward.9} parent=0 // pred_region
    _
  $region13: #{plain_seq2seq_forward.9} parent=0 // pred_fallthru
    _
  %v14 = vld [vmem:[%s0] sm:$0xff]
  %v15 = vld [vmem:[%s0 + $0x8] sm:$0xff]
  %v16 = vld [vmem:[%s0 + $0x10] sm:$0xff]
  %v17 = vld [vmem:[%s0 + $0x18] sm:$0xff]
  %v18 = vld [vmem:[%s0 + $0x20] sm:$0xff]
  %v19 = vld [vmem:[%s0 + $0x28] sm:$0xff]
  %v20 = vld [vmem:[%s0 + $0x30] sm:$0xff]
  %v21 = vld [vmem:[%s1] sm:$0xff]
  %v22 = vld [vmem:[%s1 + $0x8] sm:$0xff]
  %v23 = vld [vmem:[%s1 + $0x10] sm:$0xff]
  %v24 = vld [vmem:[%s1 + $0x18] sm:$0xff]
  %v25 = vld [vmem:[%s2] sm:$0x1]
  %v27 = vlaneseq
  %v28 = vshrl.u32 %v27, 7
  %v29 = vsub.s32 0, %v28
  %v30 = vrot.slane %v25, %v29
  %vm32 = vcmask 261120
  %v34 = vsel %vm32, %v14, 0
  %v37 = vsel %vm32, %v15, 0
  %v40 = vsel %vm32, %v16, 0
  %v43 = vsel %vm32, %v17, 0
  %v46 = vsel %vm32, %v18, 0
  %v49 = vsel %vm32, %v19, 0
  %v52 = vsel %vm32, %v20, 0
  %54 = vmatprep.subr.mxu0 0.0
  %55 = vmatpush1.msra.mxu0 0.0
  %56 = vmatprep.subr.mxu0 0.0
  %57 = vmatpush1.msra.mxu0 0.0
  %58 = vmatprep.subr.mxu0 0.0
  %59 = vmatpush1.msra.mxu0 0.0
  %60 = vmatprep.subr.mxu0 0.0
  %61 = vmatpush1.msra.mxu0 0.0
  %62 = vmatprep.subr.mxu0 0.0
  %63 = vmatpush1.msra.mxu0 0.0
  %64 = vmatprep.subr.mxu0 0.0
  %65 = vmatpush1.msra.mxu0 0.0
  %66 = vmatprep.subr.mxu0 0.0
  %67 = vmatpush1.msra.mxu0 0.0
  %68 = vmatprep.subr.mxu0 0.0
  %69 = vmatpush1.msra.mxu0 0.0
  %70 = vmatprep.subr.mxu0 0.0
  %71 = vmatpush1.msra.mxu0 0.0
  %72 = vmatprep.subr.mxu0 0.0
  %73 = vmatpush1.msra.mxu0 0.0
  %74 = vmatprep.subr.mxu0 0.0
  %75 = vmatpush1.msra.mxu0 0.0
  %76 = vmatprep.subr.mxu0 0.0
  %77 = vmatpush1.msra.mxu0 0.0
  %78 = vmatprep.subr.mxu0 0.0
  %79 = vmatpush1.msra.mxu0 %v24
  %80 = vmatprep.subr.mxu0 0.0
  %81 = vmatpush1.msra.mxu0 %v23
  %82 = vmatprep.subr.mxu0 0.0
  %83 = vmatpush1.msra.mxu0 %v22
  %84 = vmatprep.subr.mxu0 0.0
  %85 = vmatpush1.msra.mxu0 %v21
  %86 = vmatprep.subr.mxu0 0.0
  %87 = vmatpush2.msra.mxu0 0.0
  %88 = vmatprep.subr.mxu0 0.0
  %89 = vmatpush2.msra.mxu0 0.0
  %90 = vmatprep.subr.mxu0 0.0
  %91 = vmatpush2.msra.mxu0 0.0
  %92 = vmatprep.subr.mxu0 0.0
  %93 = vmatpush2.msra.mxu0 0.0
  %94 = vmatprep.subr.mxu0 0.0
  %95 = vmatpush2.msra.mxu0 0.0
  %96 = vmatprep.subr.mxu0 0.0
  %97 = vmatpush2.msra.mxu0 0.0
  %98 = vmatprep.subr.mxu0 0.0
  %99 = vmatpush2.msra.mxu0 0.0
  %100 = vmatprep.subr.mxu0 0.0
  %101 = vmatpush2.msra.mxu0 0.0
  %102 = vmatprep.subr.mxu0 0.0
  %103 = vmatpush2.msra.mxu0 0.0
  %104 = vmatprep.subr.mxu0 0.0
  %105 = vmatpush2.msra.mxu0 0.0
  %106 = vmatprep.subr.mxu0 0.0
  %107 = vmatpush2.msra.mxu0 0.0
  %108 = vmatprep.subr.mxu0 0.0
  %109 = vmatpush2.msra.mxu0 0.0
  %110 = vmatprep.subr.mxu0 0.0
  %111 = vmatpush2.msra.mxu0 0.0
  %112 = vmatprep.subr.mxu0 0.0
  %113 = vmatpush2.msra.mxu0 0.0
  %114 = vmatprep.subr.mxu0 0.0
  %115 = vmatpush2.msra.mxu0 0.0
  %116 = vmatprep.subr.mxu0 0.0
  %117 = vmatpush2.msra.mxu0 0.0
  %118 = vmatprep.mubr.f32.mxu0 0.0
  %119 = vmatmul.mubr.f32.gmra.mxu0 %v34
  %v120 = vpop.f32.mrf.mxu0
  %v121 = vadd.f32 %v30, %v120
  %v122 = vpop.f32.mrf.mxu0
  %123 = vmatprep.mubr.f32.mxu0 0.0
  %124 = vmatmul.mubr.f32.gmra.mxu0 %v37
  %v125 = vpop.f32.mrf.mxu0
  %v126 = vadd.f32 %v30, %v125
  %v127 = vpop.f32.mrf.mxu0
  %128 = vmatprep.mubr.f32.mxu0 0.0
  %129 = vmatmul.mubr.f32.gmra.mxu0 %v40
  %v130 = vpop.f32.mrf.mxu0
  %v131 = vadd.f32 %v30, %v130
  %v132 = vpop.f32.mrf.mxu0
  %133 = vmatprep.mubr.f32.mxu0 0.0
  %134 = vmatmul.mubr.f32.gmra.mxu0 %v43
  %v135 = vpop.f32.mrf.mxu0
  %v136 = vadd.f32 %v30, %v135
  %v137 = vpop.f32.mrf.mxu0
  %138 = vmatprep.mubr.f32.mxu0 0.0
  %139 = vmatmul.mubr.f32.gmra.mxu0 %v46
  %v140 = vpop.f32.mrf.mxu0
  %v141 = vadd.f32 %v30, %v140
  %v142 = vpop.f32.mrf.mxu0
  %143 = vmatprep.mubr.f32.mxu0 0.0
  %144 = vmatmul.mubr.f32.gmra.mxu0 %v49
  %v145 = vpop.f32.mrf.mxu0
  %v146 = vadd.f32 %v30, %v145
  %v147 = vpop.f32.mrf.mxu0
  %148 = vmatprep.mubr.f32.mxu0 0.0
  %149 = vmatmul.mubr.f32.gmra.mxu0 %v52
  %v150 = vpop.f32.mrf.mxu0
  %v151 = vadd.f32 %v30, %v150
  %v152 = vpop.f32.mrf.mxu0
  %153 = vdwg.mxu0
  %vm154 = vcmask 490496
  %v155 = vsel %vm154, %v121, -inf
  %156 = vmax.xlane.f32.xlu0 %v155
  %v157 = vpop.xlane.xlu0 %156
  %v158 = vsel %vm154, %v126, -inf
  %159 = vmax.xlane.f32.xlu0 %v158
  %v160 = vpop.xlane.xlu0 %159
  %v161 = vsel %vm154, %v131, -inf
  %162 = vmax.xlane.f32.xlu0 %v161
  %v163 = vpop.xlane.xlu0 %162
  %v164 = vsel %vm154, %v136, -inf
  %165 = vmax.xlane.f32.xlu0 %v164
  %v166 = vpop.xlane.xlu0 %165
  %v167 = vsel %vm154, %v141, -inf
  %168 = vmax.xlane.f32.xlu0 %v167
  %v169 = vpop.xlane.xlu0 %168
  %v170 = vsel %vm154, %v146, -inf
  %171 = vmax.xlane.f32.xlu0 %v170
  %v172 = vpop.xlane.xlu0 %171
  %v173 = vsel %vm154, %v151, -inf
  %174 = vmax.xlane.f32.xlu0 %v173
  %v175 = vpop.xlane.xlu0 %174
  %v176 = vsub.f32 %v121, %v157
  %v177 = vsub.f32 %v126, %v160
  %v178 = vsub.f32 %v131, %v163
  %v179 = vsub.f32 %v136, %v166
  %v180 = vsub.f32 %v141, %v169
  %v181 = vsub.f32 %v146, %v172
  %v182 = vsub.f32 %v151, %v175
  %v183 = vmul.f32 %v176, 1.442695
  %v184 = vpow.pop %v183
  %v185 = vmul.f32 %v177, 1.442695
  %v186 = vpow.pop %v185
  %v187 = vmul.f32 %v178, 1.442695
  %v188 = vpow.pop %v187
  %v189 = vmul.f32 %v179, 1.442695
  %v190 = vpow.pop %v189
  %v191 = vmul.f32 %v180, 1.442695
  %v192 = vpow.pop %v191
  %v193 = vmul.f32 %v181, 1.442695
  %v194 = vpow.pop %v193
  %v195 = vmul.f32 %v182, 1.442695
  %v196 = vpow.pop %v195
  %v197 = vsel %vm154, %v184, 0.0
  %198 = vadd.xlane.f32.xlu0 %v197
  %v199 = vpop.xlane.xlu0 %198
  %v200 = vsel %vm154, %v186, 0.0
  %201 = vadd.xlane.f32.xlu0 %v200
  %v202 = vpop.xlane.xlu0 %201
  %v203 = vsel %vm154, %v188, 0.0
  %204 = vadd.xlane.f32.xlu0 %v203
  %v205 = vpop.xlane.xlu0 %204
  %v206 = vsel %vm154, %v190, 0.0
  %207 = vadd.xlane.f32.xlu0 %v206
  %v208 = vpop.xlane.xlu0 %207
  %v209 = vsel %vm154, %v192, 0.0
  %210 = vadd.xlane.f32.xlu0 %v209
  %v211 = vpop.xlane.xlu0 %210
  %v212 = vsel %vm154, %v194, 0.0
  %213 = vadd.xlane.f32.xlu0 %v212
  %v214 = vpop.xlane.xlu0 %213
  %v215 = vsel %vm154, %v196, 0.0
  %216 = vadd.xlane.f32.xlu0 %v215
  %v217 = vpop.xlane.xlu0 %216
  %v218 = vlog2.pop %v199
  %v219 = vmul.f32 %v218, 0.6931472
  %v220 = vlog2.pop %v202
  %v221 = vmul.f32 %v220, 0.6931472
  %v222 = vlog2.pop %v205
  %v223 = vmul.f32 %v222, 0.6931472
  %v224 = vlog2.pop %v208
  %v225 = vmul.f32 %v224, 0.6931472
  %v226 = vlog2.pop %v211
  %v227 = vmul.f32 %v226, 0.6931472
  %v228 = vlog2.pop %v214
  %v229 = vmul.f32 %v228, 0.6931472
  %v230 = vlog2.pop %v217
  %v231 = vmul.f32 %v230, 0.6931472
  %v232 = vadd.f32 %v157, %v219
  %v233 = vadd.f32 %v160, %v221
  %v234 = vadd.f32 %v163, %v223
  %v235 = vadd.f32 %v166, %v225
  %v236 = vadd.f32 %v169, %v227
  %v237 = vadd.f32 %v172, %v229
  %v238 = vadd.f32 %v175, %v231
  %v239 = vsub.f32 %v121, %v232
  %v240 = vsub.f32 %v126, %v233
  %v241 = vsub.f32 %v131, %v234
  %v242 = vsub.f32 %v136, %v235
  %v243 = vsub.f32 %v141, %v236
  %v244 = vsub.f32 %v146, %v237
  %v245 = vsub.f32 %v151, %v238
  %246 = vst.msk [vmem:[%s3] sm:$0xff] %vm154, %v239
  %247 = vst.msk [vmem:[%s3 + $0x8] sm:$0xff] %vm154, %v240
  %248 = vst.msk [vmem:[%s3 + $0x10] sm:$0xff] %vm154, %v241
  %249 = vst.msk [vmem:[%s3 + $0x18] sm:$0xff] %vm154, %v242
  %250 = vst.msk [vmem:[%s3 + $0x20] sm:$0xff] %vm154, %v243
  %251 = vst.msk [vmem:[%s3 + $0x28] sm:$0xff] %vm154, %v244
  %252 = vst.msk [vmem:[%s3 + $0x30] sm:$0xff] %vm154, %v245
  // Predicated region
  $region14: #{plain_seq2seq_forward.9} parent=0 // pred_check
    _
  $region15: #{plain_seq2seq_forward.9} parent=0 // pred_check_branch
    %254 = sbr.rel (0) target = $region17
  $region16: #{plain_seq2seq_forward.9} parent=0 // pred_region
    _
  $region17: #{plain_seq2seq_forward.9} parent=0 // pred_fallthru
    _
  // Predicated region
  $region18: #{plain_seq2seq_forward.9} parent=0 // pred_check
    _
  $region19: #{plain_seq2seq_forward.9} parent=0 // pred_check_branch
    %256 = sbr.rel (0) target = $region21
  $region20: #{plain_seq2seq_forward.9} parent=0 // pred_region
    _
  $region21: #{plain_seq2seq_forward.9} parent=0 // pred_fallthru
    _

</llo_original>
